<compile_context>
chip_gen: v7x
topology: tpu7x:2x2x1
jax: 0.10.0
libtpu: 0.0.40
codegen_flags: <defaults>
</compile_context>

<pallas_src>
import functools
import math

import jax
import jax.numpy as jnp
from jax.experimental import pallas as pl
from jax.experimental.pallas import tpu as pltpu


# ----------------------------------------------------------------------------- #
# In-kernel math helpers
# ----------------------------------------------------------------------------- #
def _erf_f32(x):
    # fp32-accurate erf (Abramowitz & Stegun 7.1.26, max abs err ~1.5e-7),
    # built from exp + elementwise ops that are guaranteed to lower on Mosaic.
    a1, a2, a3, a4, a5 = 0.254829592, -0.284496736, 1.421413741, -1.453152027, 1.061405429
    p = 0.3275911
    sgn = jnp.where(x >= 0.0, 1.0, -1.0)
    ax = jnp.abs(x)
    t = 1.0 / (1.0 + p * ax)
    poly = ((((a5 * t + a4) * t + a3) * t + a2) * t + a1) * t
    return sgn * (1.0 - poly * jnp.exp(-ax * ax))


def _gelu_exact(x):
    # matches torch.nn.GELU() (approximate='none'): 0.5 * x * (1 + erf(x / sqrt(2)))
    return 0.5 * x * (1.0 + _erf_f32(x * (1.0 / math.sqrt(2.0))))


# ----------------------------------------------------------------------------- #
# Fused Pallas kernel: the whole ResidualGNNConcatLayer in one pallas_call
# ----------------------------------------------------------------------------- #
def _make_fused_concat_layer_kernel(num_total_layers, num_edge_types):
    """Builds the kernel body.

    Ref layout (all VMEM, single block):
      x:    [N, I]           input node states
      a:    [N, T*N]         hstacked dense adjacency  (A_hstack[n, t*N+m] = #type-t edges m->n)
      deg:  [T, N, 1]        per-type in-degree of each target node
      then, per layer l (gnn_layers..., output_gnn):
        Wcat_l : [Din_l, 2*T*Din_l]   = [Wsrc_1..T | Wtgt_1..T]   (stored [in, out])
        gamma_l: [1, Din_l]
        beta_l : [1, Din_l]
        Wd_l   : [Din_l, H]           (stored [in, out])
        bd_l   : [1, H]
      out:  [N, H]
    """
    T = num_edge_types
    bf16 = jnp.bfloat16

    def kernel(*refs):
        x_ref, a_ref, d_ref = refs[0], refs[1], refs[2]
        o_ref = refs[-1]
        p_refs = refs[3:-1]

        # Loaded / cast ONCE, reused by every layer (feedback: no redundant A DMAs).
        a_bf = a_ref[...].astype(bf16)          # [N, T*N], small integer counts (exact in bf16)
        deg = d_ref[...]                        # [T, N, 1] f32

        def run_layer(x_val, wcat_ref, gamma_ref, beta_ref, wd_ref, bd_ref):
            din = wd_ref.shape[0]

            # --- message passing: two big MXU matmuls (bf16 in, f32 accumulate) ---
            xw = jnp.dot(x_val.astype(bf16), wcat_ref[...].astype(bf16),
                         preferred_element_type=jnp.float32)        # [N, 2*T*din]
            # vstack the per-type source projections: rows [t*N:(t+1)*N] = X @ Wsrc_t
            z = jnp.concatenate([xw[:, t * din:(t + 1) * din] for t in range(T)], axis=0)
            msg = jnp.dot(a_bf, z.astype(bf16),
                          preferred_element_type=jnp.float32)        # [N, din]
            # degree-scaled target term stays on the VPU (avoids doubling A / MXU K)
            for t in range(T):
                msg = msg + deg[t] * xw[:, (T + t) * din:(T + t + 1) * din]

            # --- state_update: GELU -> LayerNorm -> Linear -> Tanh -> Dropout(p=0) ---
            h = _gelu_exact(msg)
            mu = jnp.mean(h, axis=-1, keepdims=True)
            var = jnp.mean((h - mu) * (h - mu), axis=-1, keepdims=True)
            h = (h - mu) * jax.lax.rsqrt(var + 1e-5)
            h = h * gamma_ref[...] + beta_ref[...]
            y = jnp.dot(h.astype(bf16), wd_ref[...].astype(bf16),
                        preferred_element_type=jnp.float32) + bd_ref[...]
            return jnp.tanh(y)

        x0 = x_ref[...]
        h = x0
        for l in range(num_total_layers - 1):                      # gnn_layers (GNNSequential)
            h = run_layer(h, *p_refs[5 * l: 5 * l + 5])
        resid = jnp.concatenate([x0, h], axis=1)                   # residual concat, in VMEM
        out = run_layer(resid, *p_refs[5 * (num_total_layers - 1): 5 * num_total_layers])
        o_ref[...] = out.astype(o_ref.dtype)

    return kernel


def residual_gnn_concat_layer(state_embedding, a_hstack, deg, params):
    """Calls the fused ResidualGNNConcatLayer Pallas kernel (single pallas_call)."""
    all_layers = list(params["gnn_layers"]) + [params["output_gnn"]]
    n_nodes = state_embedding.shape[0]
    num_edge_types = deg.shape[0]
    hidden = all_layers[-1]["Wd"].shape[1]

    flat_args = [state_embedding, a_hstack, deg]
    for p in all_layers:
        t, din = p["Wsrc"].shape[0], p["Wsrc"].shape[1]
        # hstack per-edge-type weights: [din, T*din] for src, same for tgt -> [din, 2*T*din]
        wsrc_h = jnp.transpose(p["Wsrc"], (1, 0, 2)).reshape(din, t * din)
        wtgt_h = jnp.transpose(p["Wtgt"], (1, 0, 2)).reshape(din, t * din)
        wcat = jnp.concatenate([wsrc_h, wtgt_h], axis=1)
        flat_args += [wcat, p["gamma"], p["beta"], p["Wd"], p["bd"]]

    kernel = _make_fused_concat_layer_kernel(len(all_layers), num_edge_types)
    vmem_spec = pl.BlockSpec(memory_space=pltpu.MemorySpace.VMEM)
    return pl.pallas_call(
        kernel,
        out_shape=jax.ShapeDtypeStruct((n_nodes, hidden), jnp.float32),
        in_specs=[vmem_spec] * len(flat_args),
        out_specs=vmem_spec,
    )(*flat_args)


# ----------------------------------------------------------------------------- #
# Plain-JAX glue: dense adjacency construction + forward
# ----------------------------------------------------------------------------- #
def build_dense_adjacency(typed_edges, num_nodes, num_edge_types):
    """typed_edges: [3, E] int32 rows = (edge_type in 1..T, source, target).

    Returns A_hstack [N, T*N] (edge counts, target x source per type, hstacked)
    and deg [T, N, 1] (per-type in-degree of each target node)."""
    etype, src, tgt = typed_edges[0], typed_edges[1], typed_edges[2]
    node_ids = jnp.arange(num_nodes)
    onehot_src = (src[:, None] == node_ids[None, :]).astype(jnp.float32)   # [E, N]
    onehot_tgt = (tgt[:, None] == node_ids[None, :]).astype(jnp.float32)   # [E, N]
    a_blocks, d_list = [], []
    for t in range(1, num_edge_types + 1):
        mask = (etype == t).astype(jnp.float32)[:, None]                   # [E, 1]
        tgt_m = onehot_tgt * mask                                          # [E, N]
        a_blocks.append(tgt_m.T @ onehot_src)                              # [N, N]
        d_list.append(tgt_m.sum(axis=0)[:, None])                          # [N, 1]
    return jnp.concatenate(a_blocks, axis=1), jnp.stack(d_list, axis=0)


def concat_layer_forward(params, state_embedding, typed_edges, num_edge_types):
    """ResidualGNNConcatLayer.forward(state_embedding, typed_edges)."""
    a_hstack, deg = build_dense_adjacency(
        typed_edges, state_embedding.shape[0], num_edge_types)
    return residual_gnn_concat_layer(state_embedding, a_hstack, deg, params)


# ----------------------------------------------------------------------------- #
# Deterministic parameter init (shapes mirror the PyTorch module)
# ----------------------------------------------------------------------------- #
def init_residual_gnn_layer(key, d_in, d_out, num_edge_types):
    k0, k1, k2, k3 = jax.random.split(key, 4)
    # edge_linears: nn.Linear(2*d_in, d_in, bias=False) -> split into src/tgt halves
    b_e = 1.0 / math.sqrt(2 * d_in)
    Wsrc = jax.random.uniform(k0, (num_edge_types, d_in, d_in), jnp.float32, -b_e, b_e)
    Wtgt = jax.random.uniform(k1, (num_edge_types, d_in, d_in), jnp.float32, -b_e, b_e)
    gamma = jnp.ones((1, d_in), jnp.float32)
    beta = jnp.zeros((1, d_in), jnp.float32)
    # dense nn.Linear(d_in, d_out) with xavier_uniform weight
    b_x = math.sqrt(6.0 / (d_in + d_out))
    Wd = jax.random.uniform(k2, (d_in, d_out), jnp.float32, -b_x, b_x)
    b_b = 1.0 / math.sqrt(d_in)
    bd = jax.random.uniform(k3, (1, d_out), jnp.float32, -b_b, b_b)
    return dict(Wsrc=Wsrc, Wtgt=Wtgt, gamma=gamma, beta=beta, Wd=Wd, bd=bd)


def init_concat_layer(key, input_size, hidden_size, num_layers, num_edge_types):
    keys = jax.random.split(key, num_layers)
    gnn_layers, cur = [], input_size
    for i in range(num_layers - 1):
        gnn_layers.append(init_residual_gnn_layer(keys[i], cur, hidden_size, num_edge_types))
        cur = hidden_size
    output_gnn = init_residual_gnn_layer(keys[-1], input_size + cur, hidden_size, num_edge_types)
    return dict(gnn_layers=gnn_layers, output_gnn=output_gnn)


# ----------------------------------------------------------------------------- #
# Pure-JAX gather/scatter reference (mirrors the PyTorch code and the kernel's
# bf16 matmul precision) -- used only for the in-script correctness check.
# ----------------------------------------------------------------------------- #
def reference_concat_layer(params, state_embedding, typed_edges, num_edge_types):
    bf16 = jnp.bfloat16

    def gnn_layer_ref(p, x):
        n, din = x.shape[0], p["Wd"].shape[0]
        msg = jnp.zeros((n, din), jnp.float32)
        et, src, tgt = typed_edges[0], typed_edges[1], typed_edges[2]
        for t in range(num_edge_types):
            m = et == (t + 1)
            s, g = src[m], tgt[m]
            src_msg = jnp.dot(x[s].astype(bf16), p["Wsrc"][t].astype(bf16),
                              preferred_element_type=jnp.float32)
            src_msg = src_msg.astype(bf16).astype(jnp.float32)   # kernel rounds z to bf16
            tgt_msg = jnp.dot(x[g].astype(bf16), p["Wtgt"][t].astype(bf16),
                              preferred_element_type=jnp.float32)
            msg = msg.at[g].add(src_msg + tgt_msg)               # scatter-add over targets
        h = jax.nn.gelu(msg, approximate=False)
        mu = jnp.mean(h, axis=-1, keepdims=True)
        var = jnp.mean((h - mu) ** 2, axis=-1, keepdims=True)
        h = (h - mu) * jax.lax.rsqrt(var + 1e-5)
        h = h * p["gamma"] + p["beta"]
        y = jnp.dot(h.astype(bf16), p["Wd"].astype(bf16),
                    preferred_element_type=jnp.float32) + p["bd"]
        return jnp.tanh(y)

    hidden = state_embedding
    for p in params["gnn_layers"]:
        hidden = gnn_layer_ref(p, hidden)
    resid = jnp.concatenate([state_embedding, hidden], axis=1)
    return gnn_layer_ref(params["output_gnn"], resid)


# ----------------------------------------------------------------------------- #
# Main
# ----------------------------------------------------------------------------- #
if __name__ == "__main__":
    INPUT_SIZE = 128
    HIDDEN_SIZE = 128
    NUM_LAYERS = 4          # 3 gnn_layers + output_gnn
    NUM_EDGE_TYPES = 3
    N_NODES = 32
    N_EDGES = 96

    key = jax.random.PRNGKey(0)
    k_params, k_x, k_et, k_src, k_tgt = jax.random.split(key, 5)

    params = init_concat_layer(k_params, INPUT_SIZE, HIDDEN_SIZE, NUM_LAYERS, NUM_EDGE_TYPES)
    state_embedding = jax.random.normal(k_x, (N_NODES, INPUT_SIZE), jnp.float32)
    edge_types = jax.random.randint(k_et, (N_EDGES,), 1, NUM_EDGE_TYPES + 1, dtype=jnp.int32)
    src = jax.random.randint(k_src, (N_EDGES,), 0, N_NODES, dtype=jnp.int32)
    tgt = jax.random.randint(k_tgt, (N_EDGES,), 0, N_NODES, dtype=jnp.int32)
    typed_edges = jnp.stack([edge_types, src, tgt], axis=0)    # [3, E]

    forward = jax.jit(functools.partial(concat_layer_forward, num_edge_types=NUM_EDGE_TYPES))
    out = forward(params, state_embedding, typed_edges)
    out = jax.block_until_ready(out)

    assert out.shape == (N_NODES, HIDDEN_SIZE)
    assert bool(jnp.all(jnp.isfinite(out)))

    # correctness check against an eager gather/scatter reference of the PyTorch math
    ref = reference_concat_layer(params, state_embedding, typed_edges, NUM_EDGE_TYPES)
    max_err = float(jnp.max(jnp.abs(out - ref)))
    assert max_err < 1e-2, f"max abs err vs gather/scatter reference: {max_err}"

    print("KERNEL_OK")
</pallas_src>

<mosaic_0001>
module attributes {stable_mosaic.version = 11 : i64} {
  func.func @kernel(%arg0: memref<32x128xf32, #tpu.memory_space<vmem>>, %arg1: memref<32x96xf32, #tpu.memory_space<vmem>>, %arg2: memref<3x32x1xf32, #tpu.memory_space<vmem>>, %arg3: memref<128x768xf32, #tpu.memory_space<vmem>>, %arg4: memref<1x128xf32, #tpu.memory_space<vmem>>, %arg5: memref<1x128xf32, #tpu.memory_space<vmem>>, %arg6: memref<128x128xf32, #tpu.memory_space<vmem>>, %arg7: memref<1x128xf32, #tpu.memory_space<vmem>>, %arg8: memref<128x768xf32, #tpu.memory_space<vmem>>, %arg9: memref<1x128xf32, #tpu.memory_space<vmem>>, %arg10: memref<1x128xf32, #tpu.memory_space<vmem>>, %arg11: memref<128x128xf32, #tpu.memory_space<vmem>>, %arg12: memref<1x128xf32, #tpu.memory_space<vmem>>, %arg13: memref<128x768xf32, #tpu.memory_space<vmem>>, %arg14: memref<1x128xf32, #tpu.memory_space<vmem>>, %arg15: memref<1x128xf32, #tpu.memory_space<vmem>>, %arg16: memref<128x128xf32, #tpu.memory_space<vmem>>, %arg17: memref<1x128xf32, #tpu.memory_space<vmem>>, %arg18: memref<256x1536xf32, #tpu.memory_space<vmem>>, %arg19: memref<1x256xf32, #tpu.memory_space<vmem>>, %arg20: memref<1x256xf32, #tpu.memory_space<vmem>>, %arg21: memref<256x128xf32, #tpu.memory_space<vmem>>, %arg22: memref<1x128xf32, #tpu.memory_space<vmem>>, %arg23: memref<32x128xf32, #tpu.memory_space<vmem>>) attributes {dimension_semantics = [], scalar_prefetch = 0 : i64, scratch_operands = 0 : i64, tpu.core_type = #tpu.core_type<tc>} {
    %c0 = arith.constant 0 : index
    %c0_0 = arith.constant 0 : index
    %0 = vector.load %arg1[%c0, %c0_0] : memref<32x96xf32, #tpu.memory_space<vmem>>, vector<32x96xf32>
    %1 = arith.truncf %0 : vector<32x96xf32> to vector<32x96xbf16>
    %c0_1 = arith.constant 0 : index
    %c0_2 = arith.constant 0 : index
    %c0_3 = arith.constant 0 : index
    %2 = vector.load %arg2[%c0_1, %c0_2, %c0_3] : memref<3x32x1xf32, #tpu.memory_space<vmem>>, vector<3x32x1xf32>
    %c0_4 = arith.constant 0 : index
    %c0_5 = arith.constant 0 : index
    %3 = vector.load %arg0[%c0_4, %c0_5] : memref<32x128xf32, #tpu.memory_space<vmem>>, vector<32x128xf32>
    %4 = arith.truncf %3 : vector<32x128xf32> to vector<32x128xbf16>
    %c0_6 = arith.constant 0 : index
    %c0_7 = arith.constant 0 : index
    %5 = vector.load %arg3[%c0_6, %c0_7] : memref<128x768xf32, #tpu.memory_space<vmem>>, vector<128x768xf32>
    %6 = arith.truncf %5 : vector<128x768xf32> to vector<128x768xbf16>
    %cst = arith.constant dense<0.000000e+00> : vector<32x768xf32>
    %7 = tpu.matmul %4, %6, %cst {dimension_numbers = #tpu.dot_dimension_numbers<[1], [0], [0], [1], [0, 0, 1, 1], [], []>} : vector<32x128xbf16>, vector<128x768xbf16>, vector<32x768xf32> -> vector<32x768xf32>
    %8 = vector.extract_strided_slice %7 {offsets = [0, 0], sizes = [32, 128], strides = [1, 1]} : vector<32x768xf32> to vector<32x128xf32>
    %9 = vector.extract_strided_slice %7 {offsets = [0, 128], sizes = [32, 128], strides = [1, 1]} : vector<32x768xf32> to vector<32x128xf32>
    %10 = vector.extract_strided_slice %7 {offsets = [0, 256], sizes = [32, 128], strides = [1, 1]} : vector<32x768xf32> to vector<32x128xf32>
    %11 = tpu.concatenate %8, %9, %10 in 0 : vector<32x128xf32>, vector<32x128xf32>, vector<32x128xf32> -> vector<96x128xf32>
    %12 = arith.truncf %11 : vector<96x128xf32> to vector<96x128xbf16>
    %cst_8 = arith.constant dense<0.000000e+00> : vector<32x128xf32>
    %13 = tpu.matmul %1, %12, %cst_8 {dimension_numbers = #tpu.dot_dimension_numbers<[1], [0], [0], [1], [0, 0, 1, 1], [], []>} : vector<32x96xbf16>, vector<96x128xbf16>, vector<32x128xf32> -> vector<32x128xf32>
    %14 = vector.extract_strided_slice %2 {offsets = [0, 0, 0], sizes = [1, 32, 1], strides = [1, 1, 1]} : vector<3x32x1xf32> to vector<1x32x1xf32>
    %15 = vector.shape_cast %14 : vector<1x32x1xf32> to vector<32x1xf32>
    %16 = vector.extract_strided_slice %7 {offsets = [0, 384], sizes = [32, 128], strides = [1, 1]} : vector<32x768xf32> to vector<32x128xf32>
    %17 = vector.broadcast %15 : vector<32x1xf32> to vector<32x128xf32>
    %18 = arith.mulf %17, %16 : vector<32x128xf32>
    %19 = arith.addf %13, %18 : vector<32x128xf32>
    %20 = vector.extract_strided_slice %2 {offsets = [1, 0, 0], sizes = [1, 32, 1], strides = [1, 1, 1]} : vector<3x32x1xf32> to vector<1x32x1xf32>
    %21 = vector.shape_cast %20 : vector<1x32x1xf32> to vector<32x1xf32>
    %22 = vector.extract_strided_slice %7 {offsets = [0, 512], sizes = [32, 128], strides = [1, 1]} : vector<32x768xf32> to vector<32x128xf32>
    %23 = vector.broadcast %21 : vector<32x1xf32> to vector<32x128xf32>
    %24 = arith.mulf %23, %22 : vector<32x128xf32>
    %25 = arith.addf %19, %24 : vector<32x128xf32>
    %26 = vector.extract_strided_slice %2 {offsets = [2, 0, 0], sizes = [1, 32, 1], strides = [1, 1, 1]} : vector<3x32x1xf32> to vector<1x32x1xf32>
    %27 = vector.shape_cast %26 : vector<1x32x1xf32> to vector<32x1xf32>
    %28 = vector.extract_strided_slice %7 {offsets = [0, 640], sizes = [32, 128], strides = [1, 1]} : vector<32x768xf32> to vector<32x128xf32>
    %29 = vector.broadcast %27 : vector<32x1xf32> to vector<32x128xf32>
    %30 = arith.mulf %29, %28 : vector<32x128xf32>
    %31 = arith.addf %25, %30 : vector<32x128xf32>
    %cst_9 = arith.constant 5.000000e-01 : f32
    %32 = vector.broadcast %cst_9 : f32 to vector<32x128xf32>
    %33 = arith.mulf %32, %31 : vector<32x128xf32>
    %cst_10 = arith.constant 0.707106769 : f32
    %34 = vector.broadcast %cst_10 : f32 to vector<32x128xf32>
    %35 = arith.mulf %31, %34 : vector<32x128xf32>
    %cst_11 = arith.constant 0.000000e+00 : f32
    %36 = vector.broadcast %cst_11 : f32 to vector<32x128xf32>
    %37 = arith.cmpf oge, %35, %36 : vector<32x128xf32>
    %cst_12 = arith.constant 1.000000e+00 : f32
    %cst_13 = arith.constant -1.000000e+00 : f32
    %38 = vector.broadcast %cst_12 : f32 to vector<32x128xf32>
    %39 = vector.broadcast %cst_13 : f32 to vector<32x128xf32>
    %40 = arith.select %37, %38, %39 : vector<32x128xi1>, vector<32x128xf32>
    %41 = math.absf %35 : vector<32x128xf32>
    %cst_14 = arith.constant 0.327591091 : f32
    %42 = vector.broadcast %cst_14 : f32 to vector<32x128xf32>
    %43 = arith.mulf %42, %41 : vector<32x128xf32>
    %cst_15 = arith.constant 1.000000e+00 : f32
    %44 = vector.broadcast %cst_15 : f32 to vector<32x128xf32>
    %45 = arith.addf %44, %43 : vector<32x128xf32>
    %cst_16 = arith.constant 1.000000e+00 : f32
    %46 = vector.broadcast %cst_16 : f32 to vector<32x128xf32>
    %47 = arith.divf %46, %45 : vector<32x128xf32>
    %cst_17 = arith.constant 1.06140542 : f32
    %48 = vector.broadcast %cst_17 : f32 to vector<32x128xf32>
    %49 = arith.mulf %48, %47 : vector<32x128xf32>
    %cst_18 = arith.constant -1.45315206 : f32
    %50 = vector.broadcast %cst_18 : f32 to vector<32x128xf32>
    %51 = arith.addf %49, %50 : vector<32x128xf32>
    %52 = arith.mulf %51, %47 : vector<32x128xf32>
    %cst_19 = arith.constant 1.42141378 : f32
    %53 = vector.broadcast %cst_19 : f32 to vector<32x128xf32>
    %54 = arith.addf %52, %53 : vector<32x128xf32>
    %55 = arith.mulf %54, %47 : vector<32x128xf32>
    %cst_20 = arith.constant -0.284496725 : f32
    %56 = vector.broadcast %cst_20 : f32 to vector<32x128xf32>
    %57 = arith.addf %55, %56 : vector<32x128xf32>
    %58 = arith.mulf %57, %47 : vector<32x128xf32>
    %cst_21 = arith.constant 0.254829586 : f32
    %59 = vector.broadcast %cst_21 : f32 to vector<32x128xf32>
    %60 = arith.addf %58, %59 : vector<32x128xf32>
    %61 = arith.mulf %60, %47 : vector<32x128xf32>
    %cst_22 = arith.constant 0.000000e+00 : f32
    %62 = vector.broadcast %cst_22 : f32 to vector<32x128xf32>
    %63 = arith.subf %62, %41 : vector<32x128xf32>
    %64 = arith.mulf %63, %41 : vector<32x128xf32>
    %65 = math.exp %64 : vector<32x128xf32>
    %66 = arith.mulf %61, %65 : vector<32x128xf32>
    %cst_23 = arith.constant 1.000000e+00 : f32
    %67 = vector.broadcast %cst_23 : f32 to vector<32x128xf32>
    %68 = arith.subf %67, %66 : vector<32x128xf32>
    %69 = arith.mulf %40, %68 : vector<32x128xf32>
    %cst_24 = arith.constant 1.000000e+00 : f32
    %70 = vector.broadcast %cst_24 : f32 to vector<32x128xf32>
    %71 = arith.addf %70, %69 : vector<32x128xf32>
    %72 = arith.mulf %33, %71 : vector<32x128xf32>
    %cst_25 = arith.constant dense<0.000000e+00> : vector<32xf32>
    %73 = vector.multi_reduction <add>, %72, %cst_25 [1] : vector<32x128xf32> to vector<32xf32>
    %74 = vector.shape_cast %73 : vector<32xf32> to vector<32x1xf32>
    %cst_26 = arith.constant 1.280000e+02 : f32
    %75 = vector.broadcast %cst_26 : f32 to vector<32x1xf32>
    %76 = arith.divf %74, %75 : vector<32x1xf32>
    %77 = vector.broadcast %76 : vector<32x1xf32> to vector<32x128xf32>
    %78 = arith.subf %72, %77 : vector<32x128xf32>
    %79 = vector.broadcast %76 : vector<32x1xf32> to vector<32x128xf32>
    %80 = arith.subf %72, %79 : vector<32x128xf32>
    %81 = arith.mulf %78, %80 : vector<32x128xf32>
    %cst_27 = arith.constant dense<0.000000e+00> : vector<32xf32>
    %82 = vector.multi_reduction <add>, %81, %cst_27 [1] : vector<32x128xf32> to vector<32xf32>
    %83 = vector.shape_cast %82 : vector<32xf32> to vector<32x1xf32>
    %cst_28 = arith.constant 1.280000e+02 : f32
    %84 = vector.broadcast %cst_28 : f32 to vector<32x1xf32>
    %85 = arith.divf %83, %84 : vector<32x1xf32>
    %86 = vector.broadcast %76 : vector<32x1xf32> to vector<32x128xf32>
    %87 = arith.subf %72, %86 : vector<32x128xf32>
    %cst_29 = arith.constant 9.99999974E-6 : f32
    %88 = vector.broadcast %cst_29 : f32 to vector<32x1xf32>
    %89 = arith.addf %85, %88 : vector<32x1xf32>
    %90 = math.rsqrt %89 : vector<32x1xf32>
    %91 = vector.broadcast %90 : vector<32x1xf32> to vector<32x128xf32>
    %92 = arith.mulf %87, %91 : vector<32x128xf32>
    %c0_30 = arith.constant 0 : index
    %c0_31 = arith.constant 0 : index
    %93 = vector.load %arg4[%c0_30, %c0_31] : memref<1x128xf32, #tpu.memory_space<vmem>>, vector<1x128xf32>
    %94 = vector.broadcast %93 : vector<1x128xf32> to vector<32x128xf32>
    %95 = arith.mulf %92, %94 : vector<32x128xf32>
    %c0_32 = arith.constant 0 : index
    %c0_33 = arith.constant 0 : index
    %96 = vector.load %arg5[%c0_32, %c0_33] : memref<1x128xf32, #tpu.memory_space<vmem>>, vector<1x128xf32>
    %97 = vector.broadcast %96 : vector<1x128xf32> to vector<32x128xf32>
    %98 = arith.addf %95, %97 : vector<32x128xf32>
    %99 = arith.truncf %98 : vector<32x128xf32> to vector<32x128xbf16>
    %c0_34 = arith.constant 0 : index
    %c0_35 = arith.constant 0 : index
    %100 = vector.load %arg6[%c0_34, %c0_35] : memref<128x128xf32, #tpu.memory_space<vmem>>, vector<128x128xf32>
    %101 = arith.truncf %100 : vector<128x128xf32> to vector<128x128xbf16>
    %cst_36 = arith.constant dense<0.000000e+00> : vector<32x128xf32>
    %102 = tpu.matmul %99, %101, %cst_36 {dimension_numbers = #tpu.dot_dimension_numbers<[1], [0], [0], [1], [0, 0, 1, 1], [], []>} : vector<32x128xbf16>, vector<128x128xbf16>, vector<32x128xf32> -> vector<32x128xf32>
    %c0_37 = arith.constant 0 : index
    %c0_38 = arith.constant 0 : index
    %103 = vector.load %arg7[%c0_37, %c0_38] : memref<1x128xf32, #tpu.memory_space<vmem>>, vector<1x128xf32>
    %104 = vector.broadcast %103 : vector<1x128xf32> to vector<32x128xf32>
    %105 = arith.addf %102, %104 : vector<32x128xf32>
    %106 = math.tanh %105 : vector<32x128xf32>
    %107 = arith.truncf %106 : vector<32x128xf32> to vector<32x128xbf16>
    %c0_39 = arith.constant 0 : index
    %c0_40 = arith.constant 0 : index
    %108 = vector.load %arg8[%c0_39, %c0_40] : memref<128x768xf32, #tpu.memory_space<vmem>>, vector<128x768xf32>
    %109 = arith.truncf %108 : vector<128x768xf32> to vector<128x768xbf16>
    %cst_41 = arith.constant dense<0.000000e+00> : vector<32x768xf32>
    %110 = tpu.matmul %107, %109, %cst_41 {dimension_numbers = #tpu.dot_dimension_numbers<[1], [0], [0], [1], [0, 0, 1, 1], [], []>} : vector<32x128xbf16>, vector<128x768xbf16>, vector<32x768xf32> -> vector<32x768xf32>
    %111 = vector.extract_strided_slice %110 {offsets = [0, 0], sizes = [32, 128], strides = [1, 1]} : vector<32x768xf32> to vector<32x128xf32>
    %112 = vector.extract_strided_slice %110 {offsets = [0, 128], sizes = [32, 128], strides = [1, 1]} : vector<32x768xf32> to vector<32x128xf32>
    %113 = vector.extract_strided_slice %110 {offsets = [0, 256], sizes = [32, 128], strides = [1, 1]} : vector<32x768xf32> to vector<32x128xf32>
    %114 = tpu.concatenate %111, %112, %113 in 0 : vector<32x128xf32>, vector<32x128xf32>, vector<32x128xf32> -> vector<96x128xf32>
    %115 = arith.truncf %114 : vector<96x128xf32> to vector<96x128xbf16>
    %cst_42 = arith.constant dense<0.000000e+00> : vector<32x128xf32>
    %116 = tpu.matmul %1, %115, %cst_42 {dimension_numbers = #tpu.dot_dimension_numbers<[1], [0], [0], [1], [0, 0, 1, 1], [], []>} : vector<32x96xbf16>, vector<96x128xbf16>, vector<32x128xf32> -> vector<32x128xf32>
    %117 = vector.extract_strided_slice %2 {offsets = [0, 0, 0], sizes = [1, 32, 1], strides = [1, 1, 1]} : vector<3x32x1xf32> to vector<1x32x1xf32>
    %118 = vector.shape_cast %117 : vector<1x32x1xf32> to vector<32x1xf32>
    %119 = vector.extract_strided_slice %110 {offsets = [0, 384], sizes = [32, 128], strides = [1, 1]} : vector<32x768xf32> to vector<32x128xf32>
    %120 = vector.broadcast %118 : vector<32x1xf32> to vector<32x128xf32>
    %121 = arith.mulf %120, %119 : vector<32x128xf32>
    %122 = arith.addf %116, %121 : vector<32x128xf32>
    %123 = vector.extract_strided_slice %2 {offsets = [1, 0, 0], sizes = [1, 32, 1], strides = [1, 1, 1]} : vector<3x32x1xf32> to vector<1x32x1xf32>
    %124 = vector.shape_cast %123 : vector<1x32x1xf32> to vector<32x1xf32>
    %125 = vector.extract_strided_slice %110 {offsets = [0, 512], sizes = [32, 128], strides = [1, 1]} : vector<32x768xf32> to vector<32x128xf32>
    %126 = vector.broadcast %124 : vector<32x1xf32> to vector<32x128xf32>
    %127 = arith.mulf %126, %125 : vector<32x128xf32>
    %128 = arith.addf %122, %127 : vector<32x128xf32>
    %129 = vector.extract_strided_slice %2 {offsets = [2, 0, 0], sizes = [1, 32, 1], strides = [1, 1, 1]} : vector<3x32x1xf32> to vector<1x32x1xf32>
    %130 = vector.shape_cast %129 : vector<1x32x1xf32> to vector<32x1xf32>
    %131 = vector.extract_strided_slice %110 {offsets = [0, 640], sizes = [32, 128], strides = [1, 1]} : vector<32x768xf32> to vector<32x128xf32>
    %132 = vector.broadcast %130 : vector<32x1xf32> to vector<32x128xf32>
    %133 = arith.mulf %132, %131 : vector<32x128xf32>
    %134 = arith.addf %128, %133 : vector<32x128xf32>
    %cst_43 = arith.constant 5.000000e-01 : f32
    %135 = vector.broadcast %cst_43 : f32 to vector<32x128xf32>
    %136 = arith.mulf %135, %134 : vector<32x128xf32>
    %cst_44 = arith.constant 0.707106769 : f32
    %137 = vector.broadcast %cst_44 : f32 to vector<32x128xf32>
    %138 = arith.mulf %134, %137 : vector<32x128xf32>
    %cst_45 = arith.constant 0.000000e+00 : f32
    %139 = vector.broadcast %cst_45 : f32 to vector<32x128xf32>
    %140 = arith.cmpf oge, %138, %139 : vector<32x128xf32>
    %cst_46 = arith.constant 1.000000e+00 : f32
    %cst_47 = arith.constant -1.000000e+00 : f32
    %141 = vector.broadcast %cst_46 : f32 to vector<32x128xf32>
    %142 = vector.broadcast %cst_47 : f32 to vector<32x128xf32>
    %143 = arith.select %140, %141, %142 : vector<32x128xi1>, vector<32x128xf32>
    %144 = math.absf %138 : vector<32x128xf32>
    %cst_48 = arith.constant 0.327591091 : f32
    %145 = vector.broadcast %cst_48 : f32 to vector<32x128xf32>
    %146 = arith.mulf %145, %144 : vector<32x128xf32>
    %cst_49 = arith.constant 1.000000e+00 : f32
    %147 = vector.broadcast %cst_49 : f32 to vector<32x128xf32>
    %148 = arith.addf %147, %146 : vector<32x128xf32>
    %cst_50 = arith.constant 1.000000e+00 : f32
    %149 = vector.broadcast %cst_50 : f32 to vector<32x128xf32>
    %150 = arith.divf %149, %148 : vector<32x128xf32>
    %cst_51 = arith.constant 1.06140542 : f32
    %151 = vector.broadcast %cst_51 : f32 to vector<32x128xf32>
    %152 = arith.mulf %151, %150 : vector<32x128xf32>
    %cst_52 = arith.constant -1.45315206 : f32
    %153 = vector.broadcast %cst_52 : f32 to vector<32x128xf32>
    %154 = arith.addf %152, %153 : vector<32x128xf32>
    %155 = arith.mulf %154, %150 : vector<32x128xf32>
    %cst_53 = arith.constant 1.42141378 : f32
    %156 = vector.broadcast %cst_53 : f32 to vector<32x128xf32>
    %157 = arith.addf %155, %156 : vector<32x128xf32>
    %158 = arith.mulf %157, %150 : vector<32x128xf32>
    %cst_54 = arith.constant -0.284496725 : f32
    %159 = vector.broadcast %cst_54 : f32 to vector<32x128xf32>
    %160 = arith.addf %158, %159 : vector<32x128xf32>
    %161 = arith.mulf %160, %150 : vector<32x128xf32>
    %cst_55 = arith.constant 0.254829586 : f32
    %162 = vector.broadcast %cst_55 : f32 to vector<32x128xf32>
    %163 = arith.addf %161, %162 : vector<32x128xf32>
    %164 = arith.mulf %163, %150 : vector<32x128xf32>
    %cst_56 = arith.constant 0.000000e+00 : f32
    %165 = vector.broadcast %cst_56 : f32 to vector<32x128xf32>
    %166 = arith.subf %165, %144 : vector<32x128xf32>
    %167 = arith.mulf %166, %144 : vector<32x128xf32>
    %168 = math.exp %167 : vector<32x128xf32>
    %169 = arith.mulf %164, %168 : vector<32x128xf32>
    %cst_57 = arith.constant 1.000000e+00 : f32
    %170 = vector.broadcast %cst_57 : f32 to vector<32x128xf32>
    %171 = arith.subf %170, %169 : vector<32x128xf32>
    %172 = arith.mulf %143, %171 : vector<32x128xf32>
    %cst_58 = arith.constant 1.000000e+00 : f32
    %173 = vector.broadcast %cst_58 : f32 to vector<32x128xf32>
    %174 = arith.addf %173, %172 : vector<32x128xf32>
    %175 = arith.mulf %136, %174 : vector<32x128xf32>
    %cst_59 = arith.constant dense<0.000000e+00> : vector<32xf32>
    %176 = vector.multi_reduction <add>, %175, %cst_59 [1] : vector<32x128xf32> to vector<32xf32>
    %177 = vector.shape_cast %176 : vector<32xf32> to vector<32x1xf32>
    %cst_60 = arith.constant 1.280000e+02 : f32
    %178 = vector.broadcast %cst_60 : f32 to vector<32x1xf32>
    %179 = arith.divf %177, %178 : vector<32x1xf32>
    %180 = vector.broadcast %179 : vector<32x1xf32> to vector<32x128xf32>
    %181 = arith.subf %175, %180 : vector<32x128xf32>
    %182 = vector.broadcast %179 : vector<32x1xf32> to vector<32x128xf32>
    %183 = arith.subf %175, %182 : vector<32x128xf32>
    %184 = arith.mulf %181, %183 : vector<32x128xf32>
    %cst_61 = arith.constant dense<0.000000e+00> : vector<32xf32>
    %185 = vector.multi_reduction <add>, %184, %cst_61 [1] : vector<32x128xf32> to vector<32xf32>
    %186 = vector.shape_cast %185 : vector<32xf32> to vector<32x1xf32>
    %cst_62 = arith.constant 1.280000e+02 : f32
    %187 = vector.broadcast %cst_62 : f32 to vector<32x1xf32>
    %188 = arith.divf %186, %187 : vector<32x1xf32>
    %189 = vector.broadcast %179 : vector<32x1xf32> to vector<32x128xf32>
    %190 = arith.subf %175, %189 : vector<32x128xf32>
    %cst_63 = arith.constant 9.99999974E-6 : f32
    %191 = vector.broadcast %cst_63 : f32 to vector<32x1xf32>
    %192 = arith.addf %188, %191 : vector<32x1xf32>
    %193 = math.rsqrt %192 : vector<32x1xf32>
    %194 = vector.broadcast %193 : vector<32x1xf32> to vector<32x128xf32>
    %195 = arith.mulf %190, %194 : vector<32x128xf32>
    %c0_64 = arith.constant 0 : index
    %c0_65 = arith.constant 0 : index
    %196 = vector.load %arg9[%c0_64, %c0_65] : memref<1x128xf32, #tpu.memory_space<vmem>>, vector<1x128xf32>
    %197 = vector.broadcast %196 : vector<1x128xf32> to vector<32x128xf32>
    %198 = arith.mulf %195, %197 : vector<32x128xf32>
    %c0_66 = arith.constant 0 : index
    %c0_67 = arith.constant 0 : index
    %199 = vector.load %arg10[%c0_66, %c0_67] : memref<1x128xf32, #tpu.memory_space<vmem>>, vector<1x128xf32>
    %200 = vector.broadcast %199 : vector<1x128xf32> to vector<32x128xf32>
    %201 = arith.addf %198, %200 : vector<32x128xf32>
    %202 = arith.truncf %201 : vector<32x128xf32> to vector<32x128xbf16>
    %c0_68 = arith.constant 0 : index
    %c0_69 = arith.constant 0 : index
    %203 = vector.load %arg11[%c0_68, %c0_69] : memref<128x128xf32, #tpu.memory_space<vmem>>, vector<128x128xf32>
    %204 = arith.truncf %203 : vector<128x128xf32> to vector<128x128xbf16>
    %cst_70 = arith.constant dense<0.000000e+00> : vector<32x128xf32>
    %205 = tpu.matmul %202, %204, %cst_70 {dimension_numbers = #tpu.dot_dimension_numbers<[1], [0], [0], [1], [0, 0, 1, 1], [], []>} : vector<32x128xbf16>, vector<128x128xbf16>, vector<32x128xf32> -> vector<32x128xf32>
    %c0_71 = arith.constant 0 : index
    %c0_72 = arith.constant 0 : index
    %206 = vector.load %arg12[%c0_71, %c0_72] : memref<1x128xf32, #tpu.memory_space<vmem>>, vector<1x128xf32>
    %207 = vector.broadcast %206 : vector<1x128xf32> to vector<32x128xf32>
    %208 = arith.addf %205, %207 : vector<32x128xf32>
    %209 = math.tanh %208 : vector<32x128xf32>
    %210 = arith.truncf %209 : vector<32x128xf32> to vector<32x128xbf16>
    %c0_73 = arith.constant 0 : index
    %c0_74 = arith.constant 0 : index
    %211 = vector.load %arg13[%c0_73, %c0_74] : memref<128x768xf32, #tpu.memory_space<vmem>>, vector<128x768xf32>
    %212 = arith.truncf %211 : vector<128x768xf32> to vector<128x768xbf16>
    %cst_75 = arith.constant dense<0.000000e+00> : vector<32x768xf32>
    %213 = tpu.matmul %210, %212, %cst_75 {dimension_numbers = #tpu.dot_dimension_numbers<[1], [0], [0], [1], [0, 0, 1, 1], [], []>} : vector<32x128xbf16>, vector<128x768xbf16>, vector<32x768xf32> -> vector<32x768xf32>
    %214 = vector.extract_strided_slice %213 {offsets = [0, 0], sizes = [32, 128], strides = [1, 1]} : vector<32x768xf32> to vector<32x128xf32>
    %215 = vector.extract_strided_slice %213 {offsets = [0, 128], sizes = [32, 128], strides = [1, 1]} : vector<32x768xf32> to vector<32x128xf32>
    %216 = vector.extract_strided_slice %213 {offsets = [0, 256], sizes = [32, 128], strides = [1, 1]} : vector<32x768xf32> to vector<32x128xf32>
    %217 = tpu.concatenate %214, %215, %216 in 0 : vector<32x128xf32>, vector<32x128xf32>, vector<32x128xf32> -> vector<96x128xf32>
    %218 = arith.truncf %217 : vector<96x128xf32> to vector<96x128xbf16>
    %cst_76 = arith.constant dense<0.000000e+00> : vector<32x128xf32>
    %219 = tpu.matmul %1, %218, %cst_76 {dimension_numbers = #tpu.dot_dimension_numbers<[1], [0], [0], [1], [0, 0, 1, 1], [], []>} : vector<32x96xbf16>, vector<96x128xbf16>, vector<32x128xf32> -> vector<32x128xf32>
    %220 = vector.extract_strided_slice %2 {offsets = [0, 0, 0], sizes = [1, 32, 1], strides = [1, 1, 1]} : vector<3x32x1xf32> to vector<1x32x1xf32>
    %221 = vector.shape_cast %220 : vector<1x32x1xf32> to vector<32x1xf32>
    %222 = vector.extract_strided_slice %213 {offsets = [0, 384], sizes = [32, 128], strides = [1, 1]} : vector<32x768xf32> to vector<32x128xf32>
    %223 = vector.broadcast %221 : vector<32x1xf32> to vector<32x128xf32>
    %224 = arith.mulf %223, %222 : vector<32x128xf32>
    %225 = arith.addf %219, %224 : vector<32x128xf32>
    %226 = vector.extract_strided_slice %2 {offsets = [1, 0, 0], sizes = [1, 32, 1], strides = [1, 1, 1]} : vector<3x32x1xf32> to vector<1x32x1xf32>
    %227 = vector.shape_cast %226 : vector<1x32x1xf32> to vector<32x1xf32>
    %228 = vector.extract_strided_slice %213 {offsets = [0, 512], sizes = [32, 128], strides = [1, 1]} : vector<32x768xf32> to vector<32x128xf32>
    %229 = vector.broadcast %227 : vector<32x1xf32> to vector<32x128xf32>
    %230 = arith.mulf %229, %228 : vector<32x128xf32>
    %231 = arith.addf %225, %230 : vector<32x128xf32>
    %232 = vector.extract_strided_slice %2 {offsets = [2, 0, 0], sizes = [1, 32, 1], strides = [1, 1, 1]} : vector<3x32x1xf32> to vector<1x32x1xf32>
    %233 = vector.shape_cast %232 : vector<1x32x1xf32> to vector<32x1xf32>
    %234 = vector.extract_strided_slice %213 {offsets = [0, 640], sizes = [32, 128], strides = [1, 1]} : vector<32x768xf32> to vector<32x128xf32>
    %235 = vector.broadcast %233 : vector<32x1xf32> to vector<32x128xf32>
    %236 = arith.mulf %235, %234 : vector<32x128xf32>
    %237 = arith.addf %231, %236 : vector<32x128xf32>
    %cst_77 = arith.constant 5.000000e-01 : f32
    %238 = vector.broadcast %cst_77 : f32 to vector<32x128xf32>
    %239 = arith.mulf %238, %237 : vector<32x128xf32>
    %cst_78 = arith.constant 0.707106769 : f32
    %240 = vector.broadcast %cst_78 : f32 to vector<32x128xf32>
    %241 = arith.mulf %237, %240 : vector<32x128xf32>
    %cst_79 = arith.constant 0.000000e+00 : f32
    %242 = vector.broadcast %cst_79 : f32 to vector<32x128xf32>
    %243 = arith.cmpf oge, %241, %242 : vector<32x128xf32>
    %cst_80 = arith.constant 1.000000e+00 : f32
    %cst_81 = arith.constant -1.000000e+00 : f32
    %244 = vector.broadcast %cst_80 : f32 to vector<32x128xf32>
    %245 = vector.broadcast %cst_81 : f32 to vector<32x128xf32>
    %246 = arith.select %243, %244, %245 : vector<32x128xi1>, vector<32x128xf32>
    %247 = math.absf %241 : vector<32x128xf32>
    %cst_82 = arith.constant 0.327591091 : f32
    %248 = vector.broadcast %cst_82 : f32 to vector<32x128xf32>
    %249 = arith.mulf %248, %247 : vector<32x128xf32>
    %cst_83 = arith.constant 1.000000e+00 : f32
    %250 = vector.broadcast %cst_83 : f32 to vector<32x128xf32>
    %251 = arith.addf %250, %249 : vector<32x128xf32>
    %cst_84 = arith.constant 1.000000e+00 : f32
    %252 = vector.broadcast %cst_84 : f32 to vector<32x128xf32>
    %253 = arith.divf %252, %251 : vector<32x128xf32>
    %cst_85 = arith.constant 1.06140542 : f32
    %254 = vector.broadcast %cst_85 : f32 to vector<32x128xf32>
    %255 = arith.mulf %254, %253 : vector<32x128xf32>
    %cst_86 = arith.constant -1.45315206 : f32
    %256 = vector.broadcast %cst_86 : f32 to vector<32x128xf32>
    %257 = arith.addf %255, %256 : vector<32x128xf32>
    %258 = arith.mulf %257, %253 : vector<32x128xf32>
    %cst_87 = arith.constant 1.42141378 : f32
    %259 = vector.broadcast %cst_87 : f32 to vector<32x128xf32>
    %260 = arith.addf %258, %259 : vector<32x128xf32>
    %261 = arith.mulf %260, %253 : vector<32x128xf32>
    %cst_88 = arith.constant -0.284496725 : f32
    %262 = vector.broadcast %cst_88 : f32 to vector<32x128xf32>
    %263 = arith.addf %261, %262 : vector<32x128xf32>
    %264 = arith.mulf %263, %253 : vector<32x128xf32>
    %cst_89 = arith.constant 0.254829586 : f32
    %265 = vector.broadcast %cst_89 : f32 to vector<32x128xf32>
    %266 = arith.addf %264, %265 : vector<32x128xf32>
    %267 = arith.mulf %266, %253 : vector<32x128xf32>
    %cst_90 = arith.constant 0.000000e+00 : f32
    %268 = vector.broadcast %cst_90 : f32 to vector<32x128xf32>
    %269 = arith.subf %268, %247 : vector<32x128xf32>
    %270 = arith.mulf %269, %247 : vector<32x128xf32>
    %271 = math.exp %270 : vector<32x128xf32>
    %272 = arith.mulf %267, %271 : vector<32x128xf32>
    %cst_91 = arith.constant 1.000000e+00 : f32
    %273 = vector.broadcast %cst_91 : f32 to vector<32x128xf32>
    %274 = arith.subf %273, %272 : vector<32x128xf32>
    %275 = arith.mulf %246, %274 : vector<32x128xf32>
    %cst_92 = arith.constant 1.000000e+00 : f32
    %276 = vector.broadcast %cst_92 : f32 to vector<32x128xf32>
    %277 = arith.addf %276, %275 : vector<32x128xf32>
    %278 = arith.mulf %239, %277 : vector<32x128xf32>
    %cst_93 = arith.constant dense<0.000000e+00> : vector<32xf32>
    %279 = vector.multi_reduction <add>, %278, %cst_93 [1] : vector<32x128xf32> to vector<32xf32>
    %280 = vector.shape_cast %279 : vector<32xf32> to vector<32x1xf32>
    %cst_94 = arith.constant 1.280000e+02 : f32
    %281 = vector.broadcast %cst_94 : f32 to vector<32x1xf32>
    %282 = arith.divf %280, %281 : vector<32x1xf32>
    %283 = vector.broadcast %282 : vector<32x1xf32> to vector<32x128xf32>
    %284 = arith.subf %278, %283 : vector<32x128xf32>
    %285 = vector.broadcast %282 : vector<32x1xf32> to vector<32x128xf32>
    %286 = arith.subf %278, %285 : vector<32x128xf32>
    %287 = arith.mulf %284, %286 : vector<32x128xf32>
    %cst_95 = arith.constant dense<0.000000e+00> : vector<32xf32>
    %288 = vector.multi_reduction <add>, %287, %cst_95 [1] : vector<32x128xf32> to vector<32xf32>
    %289 = vector.shape_cast %288 : vector<32xf32> to vector<32x1xf32>
    %cst_96 = arith.constant 1.280000e+02 : f32
    %290 = vector.broadcast %cst_96 : f32 to vector<32x1xf32>
    %291 = arith.divf %289, %290 : vector<32x1xf32>
    %292 = vector.broadcast %282 : vector<32x1xf32> to vector<32x128xf32>
    %293 = arith.subf %278, %292 : vector<32x128xf32>
    %cst_97 = arith.constant 9.99999974E-6 : f32
    %294 = vector.broadcast %cst_97 : f32 to vector<32x1xf32>
    %295 = arith.addf %291, %294 : vector<32x1xf32>
    %296 = math.rsqrt %295 : vector<32x1xf32>
    %297 = vector.broadcast %296 : vector<32x1xf32> to vector<32x128xf32>
    %298 = arith.mulf %293, %297 : vector<32x128xf32>
    %c0_98 = arith.constant 0 : index
    %c0_99 = arith.constant 0 : index
    %299 = vector.load %arg14[%c0_98, %c0_99] : memref<1x128xf32, #tpu.memory_space<vmem>>, vector<1x128xf32>
    %300 = vector.broadcast %299 : vector<1x128xf32> to vector<32x128xf32>
    %301 = arith.mulf %298, %300 : vector<32x128xf32>
    %c0_100 = arith.constant 0 : index
    %c0_101 = arith.constant 0 : index
    %302 = vector.load %arg15[%c0_100, %c0_101] : memref<1x128xf32, #tpu.memory_space<vmem>>, vector<1x128xf32>
    %303 = vector.broadcast %302 : vector<1x128xf32> to vector<32x128xf32>
    %304 = arith.addf %301, %303 : vector<32x128xf32>
    %305 = arith.truncf %304 : vector<32x128xf32> to vector<32x128xbf16>
    %c0_102 = arith.constant 0 : index
    %c0_103 = arith.constant 0 : index
    %306 = vector.load %arg16[%c0_102, %c0_103] : memref<128x128xf32, #tpu.memory_space<vmem>>, vector<128x128xf32>
    %307 = arith.truncf %306 : vector<128x128xf32> to vector<128x128xbf16>
    %cst_104 = arith.constant dense<0.000000e+00> : vector<32x128xf32>
    %308 = tpu.matmul %305, %307, %cst_104 {dimension_numbers = #tpu.dot_dimension_numbers<[1], [0], [0], [1], [0, 0, 1, 1], [], []>} : vector<32x128xbf16>, vector<128x128xbf16>, vector<32x128xf32> -> vector<32x128xf32>
    %c0_105 = arith.constant 0 : index
    %c0_106 = arith.constant 0 : index
    %309 = vector.load %arg17[%c0_105, %c0_106] : memref<1x128xf32, #tpu.memory_space<vmem>>, vector<1x128xf32>
    %310 = vector.broadcast %309 : vector<1x128xf32> to vector<32x128xf32>
    %311 = arith.addf %308, %310 : vector<32x128xf32>
    %312 = math.tanh %311 : vector<32x128xf32>
    %313 = tpu.concatenate %3, %312 in 1 : vector<32x128xf32>, vector<32x128xf32> -> vector<32x256xf32>
    %314 = arith.truncf %313 : vector<32x256xf32> to vector<32x256xbf16>
    %c0_107 = arith.constant 0 : index
    %c0_108 = arith.constant 0 : index
    %315 = vector.load %arg18[%c0_107, %c0_108] : memref<256x1536xf32, #tpu.memory_space<vmem>>, vector<256x1536xf32>
    %316 = arith.truncf %315 : vector<256x1536xf32> to vector<256x1536xbf16>
    %cst_109 = arith.constant dense<0.000000e+00> : vector<32x1536xf32>
    %317 = tpu.matmul %314, %316, %cst_109 {dimension_numbers = #tpu.dot_dimension_numbers<[1], [0], [0], [1], [0, 0, 1, 1], [], []>} : vector<32x256xbf16>, vector<256x1536xbf16>, vector<32x1536xf32> -> vector<32x1536xf32>
    %318 = vector.extract_strided_slice %317 {offsets = [0, 0], sizes = [32, 256], strides = [1, 1]} : vector<32x1536xf32> to vector<32x256xf32>
    %319 = vector.extract_strided_slice %317 {offsets = [0, 256], sizes = [32, 256], strides = [1, 1]} : vector<32x1536xf32> to vector<32x256xf32>
    %320 = vector.extract_strided_slice %317 {offsets = [0, 512], sizes = [32, 256], strides = [1, 1]} : vector<32x1536xf32> to vector<32x256xf32>
    %321 = tpu.concatenate %318, %319, %320 in 0 : vector<32x256xf32>, vector<32x256xf32>, vector<32x256xf32> -> vector<96x256xf32>
    %322 = arith.truncf %321 : vector<96x256xf32> to vector<96x256xbf16>
    %cst_110 = arith.constant dense<0.000000e+00> : vector<32x256xf32>
    %323 = tpu.matmul %1, %322, %cst_110 {dimension_numbers = #tpu.dot_dimension_numbers<[1], [0], [0], [1], [0, 0, 1, 1], [], []>} : vector<32x96xbf16>, vector<96x256xbf16>, vector<32x256xf32> -> vector<32x256xf32>
    %324 = vector.extract_strided_slice %2 {offsets = [0, 0, 0], sizes = [1, 32, 1], strides = [1, 1, 1]} : vector<3x32x1xf32> to vector<1x32x1xf32>
    %325 = vector.shape_cast %324 : vector<1x32x1xf32> to vector<32x1xf32>
    %326 = vector.extract_strided_slice %317 {offsets = [0, 768], sizes = [32, 256], strides = [1, 1]} : vector<32x1536xf32> to vector<32x256xf32>
    %327 = vector.broadcast %325 : vector<32x1xf32> to vector<32x256xf32>
    %328 = arith.mulf %327, %326 : vector<32x256xf32>
    %329 = arith.addf %323, %328 : vector<32x256xf32>
    %330 = vector.extract_strided_slice %2 {offsets = [1, 0, 0], sizes = [1, 32, 1], strides = [1, 1, 1]} : vector<3x32x1xf32> to vector<1x32x1xf32>
    %331 = vector.shape_cast %330 : vector<1x32x1xf32> to vector<32x1xf32>
    %332 = vector.extract_strided_slice %317 {offsets = [0, 1024], sizes = [32, 256], strides = [1, 1]} : vector<32x1536xf32> to vector<32x256xf32>
    %333 = vector.broadcast %331 : vector<32x1xf32> to vector<32x256xf32>
    %334 = arith.mulf %333, %332 : vector<32x256xf32>
    %335 = arith.addf %329, %334 : vector<32x256xf32>
    %336 = vector.extract_strided_slice %2 {offsets = [2, 0, 0], sizes = [1, 32, 1], strides = [1, 1, 1]} : vector<3x32x1xf32> to vector<1x32x1xf32>
    %337 = vector.shape_cast %336 : vector<1x32x1xf32> to vector<32x1xf32>
    %338 = vector.extract_strided_slice %317 {offsets = [0, 1280], sizes = [32, 256], strides = [1, 1]} : vector<32x1536xf32> to vector<32x256xf32>
    %339 = vector.broadcast %337 : vector<32x1xf32> to vector<32x256xf32>
    %340 = arith.mulf %339, %338 : vector<32x256xf32>
    %341 = arith.addf %335, %340 : vector<32x256xf32>
    %cst_111 = arith.constant 5.000000e-01 : f32
    %342 = vector.broadcast %cst_111 : f32 to vector<32x256xf32>
    %343 = arith.mulf %342, %341 : vector<32x256xf32>
    %cst_112 = arith.constant 0.707106769 : f32
    %344 = vector.broadcast %cst_112 : f32 to vector<32x256xf32>
    %345 = arith.mulf %341, %344 : vector<32x256xf32>
    %cst_113 = arith.constant 0.000000e+00 : f32
    %346 = vector.broadcast %cst_113 : f32 to vector<32x256xf32>
    %347 = arith.cmpf oge, %345, %346 : vector<32x256xf32>
    %cst_114 = arith.constant 1.000000e+00 : f32
    %cst_115 = arith.constant -1.000000e+00 : f32
    %348 = vector.broadcast %cst_114 : f32 to vector<32x256xf32>
    %349 = vector.broadcast %cst_115 : f32 to vector<32x256xf32>
    %350 = arith.select %347, %348, %349 : vector<32x256xi1>, vector<32x256xf32>
    %351 = math.absf %345 : vector<32x256xf32>
    %cst_116 = arith.constant 0.327591091 : f32
    %352 = vector.broadcast %cst_116 : f32 to vector<32x256xf32>
    %353 = arith.mulf %352, %351 : vector<32x256xf32>
    %cst_117 = arith.constant 1.000000e+00 : f32
    %354 = vector.broadcast %cst_117 : f32 to vector<32x256xf32>
    %355 = arith.addf %354, %353 : vector<32x256xf32>
    %cst_118 = arith.constant 1.000000e+00 : f32
    %356 = vector.broadcast %cst_118 : f32 to vector<32x256xf32>
    %357 = arith.divf %356, %355 : vector<32x256xf32>
    %cst_119 = arith.constant 1.06140542 : f32
    %358 = vector.broadcast %cst_119 : f32 to vector<32x256xf32>
    %359 = arith.mulf %358, %357 : vector<32x256xf32>
    %cst_120 = arith.constant -1.45315206 : f32
    %360 = vector.broadcast %cst_120 : f32 to vector<32x256xf32>
    %361 = arith.addf %359, %360 : vector<32x256xf32>
    %362 = arith.mulf %361, %357 : vector<32x256xf32>
    %cst_121 = arith.constant 1.42141378 : f32
    %363 = vector.broadcast %cst_121 : f32 to vector<32x256xf32>
    %364 = arith.addf %362, %363 : vector<32x256xf32>
    %365 = arith.mulf %364, %357 : vector<32x256xf32>
    %cst_122 = arith.constant -0.284496725 : f32
    %366 = vector.broadcast %cst_122 : f32 to vector<32x256xf32>
    %367 = arith.addf %365, %366 : vector<32x256xf32>
    %368 = arith.mulf %367, %357 : vector<32x256xf32>
    %cst_123 = arith.constant 0.254829586 : f32
    %369 = vector.broadcast %cst_123 : f32 to vector<32x256xf32>
    %370 = arith.addf %368, %369 : vector<32x256xf32>
    %371 = arith.mulf %370, %357 : vector<32x256xf32>
    %cst_124 = arith.constant 0.000000e+00 : f32
    %372 = vector.broadcast %cst_124 : f32 to vector<32x256xf32>
    %373 = arith.subf %372, %351 : vector<32x256xf32>
    %374 = arith.mulf %373, %351 : vector<32x256xf32>
    %375 = math.exp %374 : vector<32x256xf32>
    %376 = arith.mulf %371, %375 : vector<32x256xf32>
    %cst_125 = arith.constant 1.000000e+00 : f32
    %377 = vector.broadcast %cst_125 : f32 to vector<32x256xf32>
    %378 = arith.subf %377, %376 : vector<32x256xf32>
    %379 = arith.mulf %350, %378 : vector<32x256xf32>
    %cst_126 = arith.constant 1.000000e+00 : f32
    %380 = vector.broadcast %cst_126 : f32 to vector<32x256xf32>
    %381 = arith.addf %380, %379 : vector<32x256xf32>
    %382 = arith.mulf %343, %381 : vector<32x256xf32>
    %cst_127 = arith.constant dense<0.000000e+00> : vector<32xf32>
    %383 = vector.multi_reduction <add>, %382, %cst_127 [1] : vector<32x256xf32> to vector<32xf32>
    %384 = vector.shape_cast %383 : vector<32xf32> to vector<32x1xf32>
    %cst_128 = arith.constant 2.560000e+02 : f32
    %385 = vector.broadcast %cst_128 : f32 to vector<32x1xf32>
    %386 = arith.divf %384, %385 : vector<32x1xf32>
    %387 = vector.broadcast %386 : vector<32x1xf32> to vector<32x256xf32>
    %388 = arith.subf %382, %387 : vector<32x256xf32>
    %389 = vector.broadcast %386 : vector<32x1xf32> to vector<32x256xf32>
    %390 = arith.subf %382, %389 : vector<32x256xf32>
    %391 = arith.mulf %388, %390 : vector<32x256xf32>
    %cst_129 = arith.constant dense<0.000000e+00> : vector<32xf32>
    %392 = vector.multi_reduction <add>, %391, %cst_129 [1] : vector<32x256xf32> to vector<32xf32>
    %393 = vector.shape_cast %392 : vector<32xf32> to vector<32x1xf32>
    %cst_130 = arith.constant 2.560000e+02 : f32
    %394 = vector.broadcast %cst_130 : f32 to vector<32x1xf32>
    %395 = arith.divf %393, %394 : vector<32x1xf32>
    %396 = vector.broadcast %386 : vector<32x1xf32> to vector<32x256xf32>
    %397 = arith.subf %382, %396 : vector<32x256xf32>
    %cst_131 = arith.constant 9.99999974E-6 : f32
    %398 = vector.broadcast %cst_131 : f32 to vector<32x1xf32>
    %399 = arith.addf %395, %398 : vector<32x1xf32>
    %400 = math.rsqrt %399 : vector<32x1xf32>
    %401 = vector.broadcast %400 : vector<32x1xf32> to vector<32x256xf32>
    %402 = arith.mulf %397, %401 : vector<32x256xf32>
    %c0_132 = arith.constant 0 : index
    %c0_133 = arith.constant 0 : index
    %403 = vector.load %arg19[%c0_132, %c0_133] : memref<1x256xf32, #tpu.memory_space<vmem>>, vector<1x256xf32>
    %404 = vector.broadcast %403 : vector<1x256xf32> to vector<32x256xf32>
    %405 = arith.mulf %402, %404 : vector<32x256xf32>
    %c0_134 = arith.constant 0 : index
    %c0_135 = arith.constant 0 : index
    %406 = vector.load %arg20[%c0_134, %c0_135] : memref<1x256xf32, #tpu.memory_space<vmem>>, vector<1x256xf32>
    %407 = vector.broadcast %406 : vector<1x256xf32> to vector<32x256xf32>
    %408 = arith.addf %405, %407 : vector<32x256xf32>
    %409 = arith.truncf %408 : vector<32x256xf32> to vector<32x256xbf16>
    %c0_136 = arith.constant 0 : index
    %c0_137 = arith.constant 0 : index
    %410 = vector.load %arg21[%c0_136, %c0_137] : memref<256x128xf32, #tpu.memory_space<vmem>>, vector<256x128xf32>
    %411 = arith.truncf %410 : vector<256x128xf32> to vector<256x128xbf16>
    %cst_138 = arith.constant dense<0.000000e+00> : vector<32x128xf32>
    %412 = tpu.matmul %409, %411, %cst_138 {dimension_numbers = #tpu.dot_dimension_numbers<[1], [0], [0], [1], [0, 0, 1, 1], [], []>} : vector<32x256xbf16>, vector<256x128xbf16>, vector<32x128xf32> -> vector<32x128xf32>
    %c0_139 = arith.constant 0 : index
    %c0_140 = arith.constant 0 : index
    %413 = vector.load %arg22[%c0_139, %c0_140] : memref<1x128xf32, #tpu.memory_space<vmem>>, vector<1x128xf32>
    %414 = vector.broadcast %413 : vector<1x128xf32> to vector<32x128xf32>
    %415 = arith.addf %412, %414 : vector<32x128xf32>
    %416 = math.tanh %415 : vector<32x128xf32>
    %c0_141 = arith.constant 0 : index
    %c0_142 = arith.constant 0 : index
    %417 = vector.load %arg23[%c0_141, %c0_142] : memref<32x128xf32, #tpu.memory_space<vmem>>, vector<32x128xf32>
    tpu.vector_store %arg23[%c0_141, %c0_142], %416 {strides = array<i32>} : memref<32x128xf32, #tpu.memory_space<vmem>>, vector<32x128xf32>,
    return
  }
}

</mosaic_0001>

<llo_original>
// kernel: concat_layer_forward.1
$region0: #{concat_layer_forward.1}
  #allocation0 [shape = 'u32[]', space=smem, size = 0x4, offset = 0x4, fixed_abs, tag = 'smem constant byte address 0x4 - core index']
  #allocation1 [shape = 'u32[144,128]{1,0:T(1,128)}', space=vmem, size = 0x12000, scoped, tag = 'internal scratch']
  %s0 = inlined_call_operand.vmem [shape: f32[32,128], index: 0, kind: input, shape index: {}]
  %s1 = inlined_call_operand.vmem [shape: f32[32,96], index: 1, kind: input, shape index: {}]
  %s2 = inlined_call_operand.vmem [shape: f32[3,32,1], index: 2, kind: input, shape index: {}]
  %s3 = inlined_call_operand.vmem [shape: f32[128,768], index: 3, kind: input, shape index: {}]
  %s4 = inlined_call_operand.vmem [shape: f32[1,128], index: 4, kind: input, shape index: {}]
  %s5 = inlined_call_operand.vmem [shape: f32[1,128], index: 5, kind: input, shape index: {}]
  %s6 = inlined_call_operand.vmem [shape: f32[128,128], index: 6, kind: input, shape index: {}]
  %s7 = inlined_call_operand.vmem [shape: f32[1,128], index: 7, kind: input, shape index: {}]
  %s8 = inlined_call_operand.vmem [shape: f32[128,768], index: 8, kind: input, shape index: {}]
  %s9 = inlined_call_operand.vmem [shape: f32[1,128], index: 9, kind: input, shape index: {}]
  %s10 = inlined_call_operand.vmem [shape: f32[1,128], index: 10, kind: input, shape index: {}]
  %s11 = inlined_call_operand.vmem [shape: f32[128,128], index: 11, kind: input, shape index: {}]
  %s12 = inlined_call_operand.vmem [shape: f32[1,128], index: 12, kind: input, shape index: {}]
  %s13 = inlined_call_operand.vmem [shape: f32[128,768], index: 13, kind: input, shape index: {}]
  %s14 = inlined_call_operand.vmem [shape: f32[1,128], index: 14, kind: input, shape index: {}]
  %s15 = inlined_call_operand.vmem [shape: f32[1,128], index: 15, kind: input, shape index: {}]
  %s16 = inlined_call_operand.vmem [shape: f32[128,128], index: 16, kind: input, shape index: {}]
  %s17 = inlined_call_operand.vmem [shape: f32[1,128], index: 17, kind: input, shape index: {}]
  %s18 = inlined_call_operand.vmem [shape: f32[256,1536], index: 18, kind: input, shape index: {}]
  %s19 = inlined_call_operand.vmem [shape: f32[1,256], index: 19, kind: input, shape index: {}]
  %s20 = inlined_call_operand.vmem [shape: f32[1,256], index: 20, kind: input, shape index: {}]
  %s21 = inlined_call_operand.vmem [shape: f32[256,128], index: 21, kind: input, shape index: {}]
  %s22 = inlined_call_operand.vmem [shape: f32[1,128], index: 22, kind: input, shape index: {}]
  %s23 = inlined_call_operand.hbm [shape: f32[32,128], index: 23, kind: output, shape index: {}]
  %s24 = sld [smem:[#allocation0]]
  $region102: #{concat_layer_forward.1} parent=0
    _
  %s26 = ssub.s32 1, %s24
  %s27 = scalar_select 0, %s26, %s24
  $region1: #{concat_layer_forward.1} parent=0
    #allocation2 [shape = 'u8[16384]{0}', space=vmem, size = 0x4000, scoped, tag = 'output window, operand 0, single buffered']
    #allocation3 [shape = 's32[1]{0}', space=sflag, size = 0x4, scoped, tag = 'scoped memory for concat_layer_forward.1']
    %28 = vsyncpa [#allocation3], 0
    // Predicated region
    $region2: #{concat_layer_forward.1} parent=1 // pred_check
      _
    $region3: #{concat_layer_forward.1} parent=1 // pred_check_branch
      %30 = sbr.rel (0) target = $region5
    $region4: #{concat_layer_forward.1} parent=1 // pred_region
      _
    $region5: #{concat_layer_forward.1} parent=1 // pred_fallthru
      _
    // Predicated region
    $region6: #{concat_layer_forward.1} parent=1 // pred_check
      _
    $region7: #{concat_layer_forward.1} parent=1 // pred_check_branch
      %32 = sbr.rel (0) target = $region9
    $region8: #{concat_layer_forward.1} parent=1 // pred_region
      _
    $region9: #{concat_layer_forward.1} parent=1 // pred_fallthru
      _
    // Predicated region
    $region10: #{concat_layer_forward.1} parent=1 // pred_check
      _
    $region11: #{concat_layer_forward.1} parent=1 // pred_check_branch
      %34 = sbr.rel (0) target = $region13
    $region12: #{concat_layer_forward.1} parent=1 // pred_region
      _
    $region13: #{concat_layer_forward.1} parent=1 // pred_fallthru
      _
    // Predicated region
    $region14: #{concat_layer_forward.1} parent=1 // pred_check
      _
    $region15: #{concat_layer_forward.1} parent=1 // pred_check_branch
      %36 = sbr.rel (0) target = $region17
    $region16: #{concat_layer_forward.1} parent=1 // pred_region
      _
    $region17: #{concat_layer_forward.1} parent=1 // pred_fallthru
      _
    // Predicated region
    $region18: #{concat_layer_forward.1} parent=1 // pred_check
      _
    $region19: #{concat_layer_forward.1} parent=1 // pred_check_branch
      %38 = sbr.rel (0) target = $region21
    $region20: #{concat_layer_forward.1} parent=1 // pred_region
      _
    $region21: #{concat_layer_forward.1} parent=1 // pred_fallthru
      _
    // Predicated region
    $region22: #{concat_layer_forward.1} parent=1 // pred_check
      _
    $region23: #{concat_layer_forward.1} parent=1 // pred_check_branch
      %40 = sbr.rel (0) target = $region25
    $region24: #{concat_layer_forward.1} parent=1 // pred_region
      _
    $region25: #{concat_layer_forward.1} parent=1 // pred_fallthru
      _
    // Predicated region
    $region26: #{concat_layer_forward.1} parent=1 // pred_check
      _
    $region27: #{concat_layer_forward.1} parent=1 // pred_check_branch
      %42 = sbr.rel (0) target = $region29
    $region28: #{concat_layer_forward.1} parent=1 // pred_region
      _
    $region29: #{concat_layer_forward.1} parent=1 // pred_fallthru
      _
    // Predicated region
    $region30: #{concat_layer_forward.1} parent=1 // pred_check
      _
    $region31: #{concat_layer_forward.1} parent=1 // pred_check_branch
      %44 = sbr.rel (0) target = $region33
    $region32: #{concat_layer_forward.1} parent=1 // pred_region
      _
    $region33: #{concat_layer_forward.1} parent=1 // pred_fallthru
      _
    // Predicated region
    $region34: #{concat_layer_forward.1} parent=1 // pred_check
      _
    $region35: #{concat_layer_forward.1} parent=1 // pred_check_branch
      %46 = sbr.rel (0) target = $region37
    $region36: #{concat_layer_forward.1} parent=1 // pred_region
      _
    $region37: #{concat_layer_forward.1} parent=1 // pred_fallthru
      _
    // Predicated region
    $region38: #{concat_layer_forward.1} parent=1 // pred_check
      _
    $region39: #{concat_layer_forward.1} parent=1 // pred_check_branch
      %48 = sbr.rel (0) target = $region41
    $region40: #{concat_layer_forward.1} parent=1 // pred_region
      _
    $region41: #{concat_layer_forward.1} parent=1 // pred_fallthru
      _
    // Predicated region
    $region42: #{concat_layer_forward.1} parent=1 // pred_check
      _
    $region43: #{concat_layer_forward.1} parent=1 // pred_check_branch
      %50 = sbr.rel (0) target = $region45
    $region44: #{concat_layer_forward.1} parent=1 // pred_region
      _
    $region45: #{concat_layer_forward.1} parent=1 // pred_fallthru
      _
    // Predicated region
    $region46: #{concat_layer_forward.1} parent=1 // pred_check
      _
    $region47: #{concat_layer_forward.1} parent=1 // pred_check_branch
      %52 = sbr.rel (0) target = $region49
    $region48: #{concat_layer_forward.1} parent=1 // pred_region
      _
    $region49: #{concat_layer_forward.1} parent=1 // pred_fallthru
      _
    // Predicated region
    $region50: #{concat_layer_forward.1} parent=1 // pred_check
      _
    $region51: #{concat_layer_forward.1} parent=1 // pred_check_branch
      %54 = sbr.rel (0) target = $region53
    $region52: #{concat_layer_forward.1} parent=1 // pred_region
      _
    $region53: #{concat_layer_forward.1} parent=1 // pred_fallthru
      _
    // Predicated region
    $region54: #{concat_layer_forward.1} parent=1 // pred_check
      _
    $region55: #{concat_layer_forward.1} parent=1 // pred_check_branch
      %56 = sbr.rel (0) target = $region57
    $region56: #{concat_layer_forward.1} parent=1 // pred_region
      _
    $region57: #{concat_layer_forward.1} parent=1 // pred_fallthru
      _
    // Predicated region
    $region58: #{concat_layer_forward.1} parent=1 // pred_check
      _
    $region59: #{concat_layer_forward.1} parent=1 // pred_check_branch
      %58 = sbr.rel (0) target = $region61
    $region60: #{concat_layer_forward.1} parent=1 // pred_region
      _
    $region61: #{concat_layer_forward.1} parent=1 // pred_fallthru
      _
    // Predicated region
    $region62: #{concat_layer_forward.1} parent=1 // pred_check
      _
    $region63: #{concat_layer_forward.1} parent=1 // pred_check_branch
      %60 = sbr.rel (0) target = $region65
    $region64: #{concat_layer_forward.1} parent=1 // pred_region
      _
    $region65: #{concat_layer_forward.1} parent=1 // pred_fallthru
      _
    // Predicated region
    $region66: #{concat_layer_forward.1} parent=1 // pred_check
      _
    $region67: #{concat_layer_forward.1} parent=1 // pred_check_branch
      %62 = sbr.rel (0) target = $region69
    $region68: #{concat_layer_forward.1} parent=1 // pred_region
      _
    $region69: #{concat_layer_forward.1} parent=1 // pred_fallthru
      _
    // Predicated region
    $region70: #{concat_layer_forward.1} parent=1 // pred_check
      _
    $region71: #{concat_layer_forward.1} parent=1 // pred_check_branch
      %64 = sbr.rel (0) target = $region73
    $region72: #{concat_layer_forward.1} parent=1 // pred_region
      _
    $region73: #{concat_layer_forward.1} parent=1 // pred_fallthru
      _
    // Predicated region
    $region74: #{concat_layer_forward.1} parent=1 // pred_check
      _
    $region75: #{concat_layer_forward.1} parent=1 // pred_check_branch
      %66 = sbr.rel (0) target = $region77
    $region76: #{concat_layer_forward.1} parent=1 // pred_region
      _
    $region77: #{concat_layer_forward.1} parent=1 // pred_fallthru
      _
    // Predicated region
    $region78: #{concat_layer_forward.1} parent=1 // pred_check
      _
    $region79: #{concat_layer_forward.1} parent=1 // pred_check_branch
      %68 = sbr.rel (0) target = $region81
    $region80: #{concat_layer_forward.1} parent=1 // pred_region
      _
    $region81: #{concat_layer_forward.1} parent=1 // pred_fallthru
      _
    // Predicated region
    $region82: #{concat_layer_forward.1} parent=1 // pred_check
      _
    $region83: #{concat_layer_forward.1} parent=1 // pred_check_branch
      %70 = sbr.rel (0) target = $region85
    $region84: #{concat_layer_forward.1} parent=1 // pred_region
      _
    $region85: #{concat_layer_forward.1} parent=1 // pred_fallthru
      _
    // Predicated region
    $region86: #{concat_layer_forward.1} parent=1 // pred_check
      _
    $region87: #{concat_layer_forward.1} parent=1 // pred_check_branch
      %72 = sbr.rel (0) target = $region89
    $region88: #{concat_layer_forward.1} parent=1 // pred_region
      _
    $region89: #{concat_layer_forward.1} parent=1 // pred_fallthru
      _
    // Predicated region
    $region90: #{concat_layer_forward.1} parent=1 // pred_check
      _
    $region91: #{concat_layer_forward.1} parent=1 // pred_check_branch
      %74 = sbr.rel (0) target = $region93
    $region92: #{concat_layer_forward.1} parent=1 // pred_region
      _
    $region93: #{concat_layer_forward.1} parent=1 // pred_fallthru
      _
    %v76 = vld [vmem:[%s1] sm:$0xff]
    %v77 = vld [vmem:[%s1 + $0x8] sm:$0xff]
    %v78 = vld [vmem:[%s1 + $0x10] sm:$0xff]
    %v79 = vld [vmem:[%s1 + $0x18] sm:$0xff]
    %v80 = vpack.c.bf16 %v77, %v76
    %v81 = vpack.c.bf16 %v79, %v78
    %v82 = vld [vmem:[%s2] sm:$0xff]
    %v83 = vld [vmem:[%s2 + $0x8] sm:$0xff]
    %v84 = vld [vmem:[%s2 + $0x10] sm:$0xff]
    %v85 = vld [vmem:[%s2 + $0x18] sm:$0xff]
    %v86 = vld [vmem:[%s2 + $0x20] sm:$0xff]
    %v87 = vld [vmem:[%s2 + $0x28] sm:$0xff]
    %v88 = vld [vmem:[%s2 + $0x30] sm:$0xff]
    %v89 = vld [vmem:[%s2 + $0x38] sm:$0xff]
    %v90 = vld [vmem:[%s2 + $0x40] sm:$0xff]
    %v91 = vld [vmem:[%s2 + $0x48] sm:$0xff]
    %v92 = vld [vmem:[%s2 + $0x50] sm:$0xff]
    %v93 = vld [vmem:[%s2 + $0x58] sm:$0xff]
    %v94 = vld [vmem:[%s0] sm:$0xff]
    %v95 = vld [vmem:[%s0 + $0x8] sm:$0xff]
    %v96 = vld [vmem:[%s0 + $0x10] sm:$0xff]
    %v97 = vld [vmem:[%s0 + $0x18] sm:$0xff]
    %v98 = vpack.c.bf16 %v95, %v94
    %v99 = vpack.c.bf16 %v97, %v96
    %v100 = vld [vmem:[%s3] sm:$0xff]
    %v101 = vld [vmem:[%s3 + $0x8] sm:$0xff]
    %v102 = vld [vmem:[%s3 + $0x10] sm:$0xff]
    %v103 = vld [vmem:[%s3 + $0x18] sm:$0xff]
    %v104 = vld [vmem:[%s3 + $0x20] sm:$0xff]
    %v105 = vld [vmem:[%s3 + $0x28] sm:$0xff]
    %v106 = vld [vmem:[%s3 + $0x30] sm:$0xff]
    %v107 = vld [vmem:[%s3 + $0x38] sm:$0xff]
    %v108 = vld [vmem:[%s3 + $0x40] sm:$0xff]
    %v109 = vld [vmem:[%s3 + $0x48] sm:$0xff]
    %v110 = vld [vmem:[%s3 + $0x50] sm:$0xff]
    %v111 = vld [vmem:[%s3 + $0x58] sm:$0xff]
    %v112 = vld [vmem:[%s3 + $0x60] sm:$0xff]
    %v113 = vld [vmem:[%s3 + $0x68] sm:$0xff]
    %v114 = vld [vmem:[%s3 + $0x70] sm:$0xff]
    %v115 = vld [vmem:[%s3 + $0x78] sm:$0xff]
    %v116 = vld [vmem:[%s3 + $0x80] sm:$0xff]
    %v117 = vld [vmem:[%s3 + $0x88] sm:$0xff]
    %v118 = vld [vmem:[%s3 + $0x90] sm:$0xff]
    %v119 = vld [vmem:[%s3 + $0x98] sm:$0xff]
    %v120 = vld [vmem:[%s3 + $0xa0] sm:$0xff]
    %v121 = vld [vmem:[%s3 + $0xa8] sm:$0xff]
    %v122 = vld [vmem:[%s3 + $0xb0] sm:$0xff]
    %v123 = vld [vmem:[%s3 + $0xb8] sm:$0xff]
    %v124 = vld [vmem:[%s3 + $0xc0] sm:$0xff]
    %v125 = vld [vmem:[%s3 + $0xc8] sm:$0xff]
    %v126 = vld [vmem:[%s3 + $0xd0] sm:$0xff]
    %v127 = vld [vmem:[%s3 + $0xd8] sm:$0xff]
    %v128 = vld [vmem:[%s3 + $0xe0] sm:$0xff]
    %v129 = vld [vmem:[%s3 + $0xe8] sm:$0xff]
    %v130 = vld [vmem:[%s3 + $0xf0] sm:$0xff]
    %v131 = vld [vmem:[%s3 + $0xf8] sm:$0xff]
    %v132 = vld [vmem:[%s3 + $0x100] sm:$0xff]
    %v133 = vld [vmem:[%s3 + $0x108] sm:$0xff]
    %v134 = vld [vmem:[%s3 + $0x110] sm:$0xff]
    %v135 = vld [vmem:[%s3 + $0x118] sm:$0xff]
    %v136 = vld [vmem:[%s3 + $0x120] sm:$0xff]
    %v137 = vld [vmem:[%s3 + $0x128] sm:$0xff]
    %v138 = vld [vmem:[%s3 + $0x130] sm:$0xff]
    %v139 = vld [vmem:[%s3 + $0x138] sm:$0xff]
    %v140 = vld [vmem:[%s3 + $0x140] sm:$0xff]
    %v141 = vld [vmem:[%s3 + $0x148] sm:$0xff]
    %v142 = vld [vmem:[%s3 + $0x150] sm:$0xff]
    %v143 = vld [vmem:[%s3 + $0x158] sm:$0xff]
    %v144 = vld [vmem:[%s3 + $0x160] sm:$0xff]
    %v145 = vld [vmem:[%s3 + $0x168] sm:$0xff]
    %v146 = vld [vmem:[%s3 + $0x170] sm:$0xff]
    %v147 = vld [vmem:[%s3 + $0x178] sm:$0xff]
    %v148 = vld [vmem:[%s3 + $0x180] sm:$0xff]
    %v149 = vld [vmem:[%s3 + $0x188] sm:$0xff]
    %v150 = vld [vmem:[%s3 + $0x190] sm:$0xff]
    %v151 = vld [vmem:[%s3 + $0x198] sm:$0xff]
    %v152 = vld [vmem:[%s3 + $0x1a0] sm:$0xff]
    %v153 = vld [vmem:[%s3 + $0x1a8] sm:$0xff]
    %v154 = vld [vmem:[%s3 + $0x1b0] sm:$0xff]
    %v155 = vld [vmem:[%s3 + $0x1b8] sm:$0xff]
    %v156 = vld [vmem:[%s3 + $0x1c0] sm:$0xff]
    %v157 = vld [vmem:[%s3 + $0x1c8] sm:$0xff]
    %v158 = vld [vmem:[%s3 + $0x1d0] sm:$0xff]
    %v159 = vld [vmem:[%s3 + $0x1d8] sm:$0xff]
    %v160 = vld [vmem:[%s3 + $0x1e0] sm:$0xff]
    %v161 = vld [vmem:[%s3 + $0x1e8] sm:$0xff]
    %v162 = vld [vmem:[%s3 + $0x1f0] sm:$0xff]
    %v163 = vld [vmem:[%s3 + $0x1f8] sm:$0xff]
    %v164 = vld [vmem:[%s3 + $0x200] sm:$0xff]
    %v165 = vld [vmem:[%s3 + $0x208] sm:$0xff]
    %v166 = vld [vmem:[%s3 + $0x210] sm:$0xff]
    %v167 = vld [vmem:[%s3 + $0x218] sm:$0xff]
    %v168 = vld [vmem:[%s3 + $0x220] sm:$0xff]
    %v169 = vld [vmem:[%s3 + $0x228] sm:$0xff]
    %v170 = vld [vmem:[%s3 + $0x230] sm:$0xff]
    %v171 = vld [vmem:[%s3 + $0x238] sm:$0xff]
    %v172 = vld [vmem:[%s3 + $0x240] sm:$0xff]
    %v173 = vld [vmem:[%s3 + $0x248] sm:$0xff]
    %v174 = vld [vmem:[%s3 + $0x250] sm:$0xff]
    %v175 = vld [vmem:[%s3 + $0x258] sm:$0xff]
    %v176 = vld [vmem:[%s3 + $0x260] sm:$0xff]
    %v177 = vld [vmem:[%s3 + $0x268] sm:$0xff]
    %v178 = vld [vmem:[%s3 + $0x270] sm:$0xff]
    %v179 = vld [vmem:[%s3 + $0x278] sm:$0xff]
    %v180 = vld [vmem:[%s3 + $0x280] sm:$0xff]
    %v181 = vld [vmem:[%s3 + $0x288] sm:$0xff]
    %v182 = vld [vmem:[%s3 + $0x290] sm:$0xff]
    %v183 = vld [vmem:[%s3 + $0x298] sm:$0xff]
    %v184 = vld [vmem:[%s3 + $0x2a0] sm:$0xff]
    %v185 = vld [vmem:[%s3 + $0x2a8] sm:$0xff]
    %v186 = vld [vmem:[%s3 + $0x2b0] sm:$0xff]
    %v187 = vld [vmem:[%s3 + $0x2b8] sm:$0xff]
    %v188 = vld [vmem:[%s3 + $0x2c0] sm:$0xff]
    %v189 = vld [vmem:[%s3 + $0x2c8] sm:$0xff]
    %v190 = vld [vmem:[%s3 + $0x2d0] sm:$0xff]
    %v191 = vld [vmem:[%s3 + $0x2d8] sm:$0xff]
    %v192 = vld [vmem:[%s3 + $0x2e0] sm:$0xff]
    %v193 = vld [vmem:[%s3 + $0x2e8] sm:$0xff]
    %v194 = vld [vmem:[%s3 + $0x2f0] sm:$0xff]
    %v195 = vld [vmem:[%s3 + $0x2f8] sm:$0xff]
    %v196 = vpack.c.bf16 %v106, %v100
    %v197 = vpack.c.bf16 %v107, %v101
    %v198 = vpack.c.bf16 %v108, %v102
    %v199 = vpack.c.bf16 %v109, %v103
    %v200 = vpack.c.bf16 %v110, %v104
    %v201 = vpack.c.bf16 %v111, %v105
    %v202 = vpack.c.bf16 %v118, %v112
    %v203 = vpack.c.bf16 %v119, %v113
    %v204 = vpack.c.bf16 %v120, %v114
    %v205 = vpack.c.bf16 %v121, %v115
    %v206 = vpack.c.bf16 %v122, %v116
    %v207 = vpack.c.bf16 %v123, %v117
    %v208 = vpack.c.bf16 %v130, %v124
    %v209 = vpack.c.bf16 %v131, %v125
    %v210 = vpack.c.bf16 %v132, %v126
    %v211 = vpack.c.bf16 %v133, %v127
    %v212 = vpack.c.bf16 %v134, %v128
    %v213 = vpack.c.bf16 %v135, %v129
    %v214 = vpack.c.bf16 %v142, %v136
    %v215 = vpack.c.bf16 %v143, %v137
    %v216 = vpack.c.bf16 %v144, %v138
    %v217 = vpack.c.bf16 %v145, %v139
    %v218 = vpack.c.bf16 %v146, %v140
    %v219 = vpack.c.bf16 %v147, %v141
    %v220 = vpack.c.bf16 %v154, %v148
    %v221 = vpack.c.bf16 %v155, %v149
    %v222 = vpack.c.bf16 %v156, %v150
    %v223 = vpack.c.bf16 %v157, %v151
    %v224 = vpack.c.bf16 %v158, %v152
    %v225 = vpack.c.bf16 %v159, %v153
    %v226 = vpack.c.bf16 %v166, %v160
    %v227 = vpack.c.bf16 %v167, %v161
    %v228 = vpack.c.bf16 %v168, %v162
    %v229 = vpack.c.bf16 %v169, %v163
    %v230 = vpack.c.bf16 %v170, %v164
    %v231 = vpack.c.bf16 %v171, %v165
    %v232 = vpack.c.bf16 %v178, %v172
    %v233 = vpack.c.bf16 %v179, %v173
    %v234 = vpack.c.bf16 %v180, %v174
    %v235 = vpack.c.bf16 %v181, %v175
    %v236 = vpack.c.bf16 %v182, %v176
    %v237 = vpack.c.bf16 %v183, %v177
    %v238 = vpack.c.bf16 %v190, %v184
    %v239 = vpack.c.bf16 %v191, %v185
    %v240 = vpack.c.bf16 %v192, %v186
    %v241 = vpack.c.bf16 %v193, %v187
    %v242 = vpack.c.bf16 %v194, %v188
    %v243 = vpack.c.bf16 %v195, %v189
    %244 = vmatprep.subr.bf16.mxu0 %v197
    %245 = vmatpush1.bf16.msra.mxu0 %v196
    %246 = vmatprep.subr.bf16.mxu0 %v203
    %247 = vmatpush1.bf16.msra.mxu0 %v202
    %248 = vmatprep.subr.bf16.mxu0 %v209
    %249 = vmatpush1.bf16.msra.mxu0 %v208
    %250 = vmatprep.subr.bf16.mxu0 %v215
    %251 = vmatpush1.bf16.msra.mxu0 %v214
    %252 = vmatprep.subr.bf16.mxu0 %v221
    %253 = vmatpush1.bf16.msra.mxu0 %v220
    %254 = vmatprep.subr.bf16.mxu0 %v227
    %255 = vmatpush1.bf16.msra.mxu0 %v226
    %256 = vmatprep.subr.bf16.mxu0 %v233
    %257 = vmatpush1.bf16.msra.mxu0 %v232
    %258 = vmatprep.subr.bf16.mxu0 %v239
    %259 = vmatpush1.bf16.msra.mxu0 %v238
    %260 = vmatprep.subr.bf16.mxu0 0
    %261 = vmatpush1.bf16.msra.mxu0 0
    %262 = vmatprep.subr.bf16.mxu0 0
    %263 = vmatpush1.bf16.msra.mxu0 0
    %264 = vmatprep.subr.bf16.mxu0 0
    %265 = vmatpush1.bf16.msra.mxu0 0
    %266 = vmatprep.subr.bf16.mxu0 0
    %267 = vmatpush1.bf16.msra.mxu0 0
    %268 = vmatprep.subr.bf16.mxu0 0
    %269 = vmatpush1.bf16.msra.mxu0 0
    %270 = vmatprep.subr.bf16.mxu0 0
    %271 = vmatpush1.bf16.msra.mxu0 0
    %272 = vmatprep.subr.bf16.mxu0 0
    %273 = vmatpush1.bf16.msra.mxu0 0
    %274 = vmatprep.subr.bf16.mxu0 0
    %275 = vmatpush1.bf16.msra.mxu0 0
    %276 = vmatprep.mubr.bf16.mxu0 0
    %277 = vmatmul.mubr.bf16.gmra.mrb[0].mxu0 %v98
    %v278 = vpop.f32.mrb[0].mxu0
    %v279 = vadd.f32 0.0, %v278
    %v280 = vpop.f32.mrb[0].mxu0
    %v281 = vadd.f32 0.0, %v280
    %v282 = vpop.f32.mrb[0].mxu0
    %v283 = vadd.f32 0.0, %v282
    %v284 = vpop.f32.mrb[0].mxu0
    %v285 = vadd.f32 0.0, %v284
    %286 = vmatprep.mubr.bf16.mxu0 0
    %287 = vmatmul.mubr.bf16.gmra.mrb[0].mxu0 %v99
    %v288 = vpop.f32.mrb[0].mxu0
    %v289 = vadd.f32 0.0, %v288
    %v290 = vpop.f32.mrb[0].mxu0
    %v291 = vadd.f32 0.0, %v290
    %v292 = vpop.f32.mrb[0].mxu0
    %v293 = vadd.f32 0.0, %v292
    %v294 = vpop.f32.mrb[0].mxu0
    %v295 = vadd.f32 0.0, %v294
    %296 = vdwg.mxu0
    %297 = vmatprep.subr.bf16.mxu0 %v199
    %298 = vmatpush1.bf16.msra.mxu0 %v198
    %299 = vmatprep.subr.bf16.mxu0 %v205
    %300 = vmatpush1.bf16.msra.mxu0 %v204
    %301 = vmatprep.subr.bf16.mxu0 %v211
    %302 = vmatpush1.bf16.msra.mxu0 %v210
    %303 = vmatprep.subr.bf16.mxu0 %v217
    %304 = vmatpush1.bf16.msra.mxu0 %v216
    %305 = vmatprep.subr.bf16.mxu0 %v223
    %306 = vmatpush1.bf16.msra.mxu0 %v222
    %307 = vmatprep.subr.bf16.mxu0 %v229
    %308 = vmatpush1.bf16.msra.mxu0 %v228
    %309 = vmatprep.subr.bf16.mxu0 %v235
    %310 = vmatpush1.bf16.msra.mxu0 %v234
    %311 = vmatprep.subr.bf16.mxu0 %v241
    %312 = vmatpush1.bf16.msra.mxu0 %v240
    %313 = vmatprep.subr.bf16.mxu0 0
    %314 = vmatpush1.bf16.msra.mxu0 0
    %315 = vmatprep.subr.bf16.mxu0 0
    %316 = vmatpush1.bf16.msra.mxu0 0
    %317 = vmatprep.subr.bf16.mxu0 0
    %318 = vmatpush1.bf16.msra.mxu0 0
    %319 = vmatprep.subr.bf16.mxu0 0
    %320 = vmatpush1.bf16.msra.mxu0 0
    %321 = vmatprep.subr.bf16.mxu0 0
    %322 = vmatpush1.bf16.msra.mxu0 0
    %323 = vmatprep.subr.bf16.mxu0 0
    %324 = vmatpush1.bf16.msra.mxu0 0
    %325 = vmatprep.subr.bf16.mxu0 0
    %326 = vmatpush1.bf16.msra.mxu0 0
    %327 = vmatprep.subr.bf16.mxu0 0
    %328 = vmatpush1.bf16.msra.mxu0 0
    %329 = vmatprep.mubr.bf16.mxu0 0
    %330 = vmatmul.mubr.bf16.gmra.mrb[0].mxu0 %v98
    %v331 = vpop.f32.mrb[0].mxu0
    %v332 = vadd.f32 0.0, %v331
    %v333 = vpop.f32.mrb[0].mxu0
    %v334 = vadd.f32 0.0, %v333
    %v335 = vpop.f32.mrb[0].mxu0
    %v336 = vadd.f32 0.0, %v335
    %v337 = vpop.f32.mrb[0].mxu0
    %v338 = vadd.f32 0.0, %v337
    %339 = vmatprep.mubr.bf16.mxu0 0
    %340 = vmatmul.mubr.bf16.gmra.mrb[0].mxu0 %v99
    %v341 = vpop.f32.mrb[0].mxu0
    %v342 = vadd.f32 0.0, %v341
    %v343 = vpop.f32.mrb[0].mxu0
    %v344 = vadd.f32 0.0, %v343
    %v345 = vpop.f32.mrb[0].mxu0
    %v346 = vadd.f32 0.0, %v345
    %v347 = vpop.f32.mrb[0].mxu0
    %v348 = vadd.f32 0.0, %v347
    %349 = vdwg.mxu0
    %350 = vmatprep.subr.bf16.mxu0 %v201
    %351 = vmatpush1.bf16.msra.mxu0 %v200
    %352 = vmatprep.subr.bf16.mxu0 %v207
    %353 = vmatpush1.bf16.msra.mxu0 %v206
    %354 = vmatprep.subr.bf16.mxu0 %v213
    %355 = vmatpush1.bf16.msra.mxu0 %v212
    %356 = vmatprep.subr.bf16.mxu0 %v219
    %357 = vmatpush1.bf16.msra.mxu0 %v218
    %358 = vmatprep.subr.bf16.mxu0 %v225
    %359 = vmatpush1.bf16.msra.mxu0 %v224
    %360 = vmatprep.subr.bf16.mxu0 %v231
    %361 = vmatpush1.bf16.msra.mxu0 %v230
    %362 = vmatprep.subr.bf16.mxu0 %v237
    %363 = vmatpush1.bf16.msra.mxu0 %v236
    %364 = vmatprep.subr.bf16.mxu0 %v243
    %365 = vmatpush1.bf16.msra.mxu0 %v242
    %366 = vmatprep.subr.bf16.mxu0 0
    %367 = vmatpush1.bf16.msra.mxu0 0
    %368 = vmatprep.subr.bf16.mxu0 0
    %369 = vmatpush1.bf16.msra.mxu0 0
    %370 = vmatprep.subr.bf16.mxu0 0
    %371 = vmatpush1.bf16.msra.mxu0 0
    %372 = vmatprep.subr.bf16.mxu0 0
    %373 = vmatpush1.bf16.msra.mxu0 0
    %374 = vmatprep.subr.bf16.mxu0 0
    %375 = vmatpush1.bf16.msra.mxu0 0
    %376 = vmatprep.subr.bf16.mxu0 0
    %377 = vmatpush1.bf16.msra.mxu0 0
    %378 = vmatprep.subr.bf16.mxu0 0
    %379 = vmatpush1.bf16.msra.mxu0 0
    %380 = vmatprep.subr.bf16.mxu0 0
    %381 = vmatpush1.bf16.msra.mxu0 0
    %382 = vmatprep.mubr.bf16.mxu0 0
    %383 = vmatmul.mubr.bf16.gmra.mrb[0].mxu0 %v98
    %v384 = vpop.f32.mrb[0].mxu0
    %v385 = vadd.f32 0.0, %v384
    %v386 = vpop.f32.mrb[0].mxu0
    %v387 = vadd.f32 0.0, %v386
    %v388 = vpop.f32.mrb[0].mxu0
    %v389 = vadd.f32 0.0, %v388
    %v390 = vpop.f32.mrb[0].mxu0
    %v391 = vadd.f32 0.0, %v390
    %392 = vmatprep.mubr.bf16.mxu0 0
    %393 = vmatmul.mubr.bf16.gmra.mrb[0].mxu0 %v99
    %v394 = vpop.f32.mrb[0].mxu0
    %v395 = vadd.f32 0.0, %v394
    %v396 = vpop.f32.mrb[0].mxu0
    %v397 = vadd.f32 0.0, %v396
    %v398 = vpop.f32.mrb[0].mxu0
    %v399 = vadd.f32 0.0, %v398
    %v400 = vpop.f32.mrb[0].mxu0
    %v401 = vadd.f32 0.0, %v400
    %402 = vdwg.mxu0
    %v403 = vpack.c.bf16 %v283, %v279
    %v404 = vpack.c.bf16 %v293, %v289
    %v405 = vpack.c.bf16 %v285, %v281
    %v406 = vpack.c.bf16 %v295, %v291
    %v407 = vpack.c.bf16 %v336, %v332
    %v408 = vpack.c.bf16 %v346, %v342
    %410 = vset.pattern.permute.xlu0 0
    %411 = vperm.xlu0 %410, %v82
    %v412 = vpop.permute.xlu0 %411
    %415 = vset.pattern.permute.xlu0 0
    %416 = vperm.xlu0 %415, %v83
    %v417 = vpop.permute.xlu0 %416
    %420 = vset.pattern.permute.xlu0 0
    %421 = vperm.xlu0 %420, %v84
    %v422 = vpop.permute.xlu0 %421
    %425 = vset.pattern.permute.xlu0 0
    %426 = vperm.xlu0 %425, %v85
    %v427 = vpop.permute.xlu0 %426
    %v429 = vmul.f32 %v412, %v334
    %v430 = vmul.f32 %v417, %v338
    %v431 = vmul.f32 %v422, %v344
    %v432 = vmul.f32 %v427, %v348
    %vm433 = vcmask 785408
    %v435 = vsel %vm433, %v80, 0
    %v438 = vsel %vm433, %v81, 0
    %440 = vmatprep.subr.bf16.mxu0 0
    %441 = vmatpush1.bf16.msra.mxu0 %v403
    %442 = vmatprep.subr.bf16.mxu0 0
    %443 = vmatpush1.bf16.msra.mxu0 %v404
    %444 = vmatprep.subr.bf16.mxu0 0
    %445 = vmatpush1.bf16.msra.mxu0 %v405
    %446 = vmatprep.subr.bf16.mxu0 0
    %447 = vmatpush1.bf16.msra.mxu0 %v406
    %448 = vmatprep.subr.bf16.mxu0 0
    %449 = vmatpush1.bf16.msra.mxu0 %v407
    %450 = vmatprep.subr.bf16.mxu0 0
    %451 = vmatpush1.bf16.msra.mxu0 %v408
    %452 = vmatprep.subr.bf16.mxu0 0
    %453 = vmatpush1.bf16.msra.mxu0 0
    %454 = vmatprep.subr.bf16.mxu0 0
    %455 = vmatpush1.bf16.msra.mxu0 0
    %456 = vmatprep.subr.bf16.mxu0 0
    %457 = vmatpush1.bf16.msra.mxu0 0
    %458 = vmatprep.subr.bf16.mxu0 0
    %459 = vmatpush1.bf16.msra.mxu0 0
    %460 = vmatprep.subr.bf16.mxu0 0
    %461 = vmatpush1.bf16.msra.mxu0 0
    %462 = vmatprep.subr.bf16.mxu0 0
    %463 = vmatpush1.bf16.msra.mxu0 0
    %464 = vmatprep.subr.bf16.mxu0 0
    %465 = vmatpush1.bf16.msra.mxu0 0
    %466 = vmatprep.subr.bf16.mxu0 0
    %467 = vmatpush1.bf16.msra.mxu0 0
    %468 = vmatprep.subr.bf16.mxu0 0
    %469 = vmatpush1.bf16.msra.mxu0 0
    %470 = vmatprep.subr.bf16.mxu0 0
    %471 = vmatpush1.bf16.msra.mxu0 0
    %472 = vmatprep.mubr.bf16.mxu0 0
    %473 = vmatmul.mubr.bf16.gmra.mrb[0].mxu0 %v435
    %v474 = vpop.f32.mrb[0].mxu0
    %v475 = vadd.f32 %v429, %v474
    %v476 = vpop.f32.mrb[0].mxu0
    %v477 = vpop.f32.mrb[0].mxu0
    %v478 = vadd.f32 %v430, %v477
    %v479 = vpop.f32.mrb[0].mxu0
    %480 = vmatprep.mubr.bf16.mxu0 0
    %481 = vmatmul.mubr.bf16.gmra.mrb[0].mxu0 %v438
    %v482 = vpop.f32.mrb[0].mxu0
    %v483 = vadd.f32 %v431, %v482
    %v484 = vpop.f32.mrb[0].mxu0
    %v485 = vpop.f32.mrb[0].mxu0
    %v486 = vadd.f32 %v432, %v485
    %v487 = vpop.f32.mrb[0].mxu0
    %488 = vdwg.mxu0
    %490 = vset.pattern.permute.xlu0 0
    %491 = vperm.xlu0 %490, %v86
    %v492 = vpop.permute.xlu0 %491
    %495 = vset.pattern.permute.xlu0 0
    %496 = vperm.xlu0 %495, %v87
    %v497 = vpop.permute.xlu0 %496
    %500 = vset.pattern.permute.xlu0 0
    %501 = vperm.xlu0 %500, %v88
    %v502 = vpop.permute.xlu0 %501
    %505 = vset.pattern.permute.xlu0 0
    %506 = vperm.xlu0 %505, %v89
    %v507 = vpop.permute.xlu0 %506
    %v509 = vmul.f32 %v492, %v385
    %v510 = vmul.f32 %v497, %v389
    %v511 = vmul.f32 %v502, %v395
    %v512 = vmul.f32 %v507, %v399
    %v513 = vadd.f32 %v475, %v509
    %v514 = vadd.f32 %v478, %v510
    %v515 = vadd.f32 %v483, %v511
    %v516 = vadd.f32 %v486, %v512
    %518 = vset.pattern.permute.xlu0 0
    %519 = vperm.xlu0 %518, %v90
    %v520 = vpop.permute.xlu0 %519
    %523 = vset.pattern.permute.xlu0 0
    %524 = vperm.xlu0 %523, %v91
    %v525 = vpop.permute.xlu0 %524
    %528 = vset.pattern.permute.xlu0 0
    %529 = vperm.xlu0 %528, %v92
    %v530 = vpop.permute.xlu0 %529
    %533 = vset.pattern.permute.xlu0 0
    %534 = vperm.xlu0 %533, %v93
    %v535 = vpop.permute.xlu0 %534
    %v537 = vmul.f32 %v520, %v387
    %v538 = vmul.f32 %v525, %v391
    %v539 = vmul.f32 %v530, %v397
    %v540 = vmul.f32 %v535, %v401
    %v541 = vadd.f32 %v513, %v537
    %v542 = vadd.f32 %v514, %v538
    %v543 = vadd.f32 %v515, %v539
    %v544 = vadd.f32 %v516, %v540
    %v545 = vmul.f32 %v541, 0.5
    %v546 = vmul.f32 %v542, 0.5
    %v547 = vmul.f32 %v543, 0.5
    %v548 = vmul.f32 %v544, 0.5
    %v549 = vmul.f32 %v541, 0.70710677
    %v550 = vmul.f32 %v542, 0.70710677
    %v551 = vmul.f32 %v543, 0.70710677
    %v552 = vmul.f32 %v544, 0.70710677
    %vm553 = vcmp.ge.f32.partialorder %v549, 0.0
    %vm554 = vcmp.ge.f32.partialorder %v550, 0.0
    %vm555 = vcmp.ge.f32.partialorder %v551, 0.0
    %vm556 = vcmp.ge.f32.partialorder %v552, 0.0
    %v557 = vsel %vm553, 1.0, -1.0
    %v558 = vsel %vm554, 1.0, -1.0
    %v559 = vsel %vm555, 1.0, -1.0
    %v560 = vsel %vm556, 1.0, -1.0
    %v561 = vand.u32 2147483647, %v549
    %v562 = vand.u32 2147483647, %v550
    %v563 = vand.u32 2147483647, %v551
    %v564 = vand.u32 2147483647, %v552
    %v565 = vmul.f32 %v561, 0.3275911
    %v566 = vmul.f32 %v562, 0.3275911
    %v567 = vmul.f32 %v563, 0.3275911
    %v568 = vmul.f32 %v564, 0.3275911
    %v569 = vadd.f32 %v565, 1.0
    %v570 = vadd.f32 %v566, 1.0
    %v571 = vadd.f32 %v567, 1.0
    %v572 = vadd.f32 %v568, 1.0
    %v573 = vrcp.pop %v569
    %v574 = vmul.f32 1.0, %v573
    %v575 = vrcp.pop %v570
    %v576 = vmul.f32 1.0, %v575
    %v577 = vrcp.pop %v571
    %v578 = vmul.f32 1.0, %v577
    %v579 = vrcp.pop %v572
    %v580 = vmul.f32 1.0, %v579
    %v581 = vmul.f32 %v574, 1.0614054
    %v582 = vmul.f32 %v576, 1.0614054
    %v583 = vmul.f32 %v578, 1.0614054
    %v584 = vmul.f32 %v580, 1.0614054
    %v585 = vadd.f32 %v581, -1.4531521
    %v586 = vadd.f32 %v582, -1.4531521
    %v587 = vadd.f32 %v583, -1.4531521
    %v588 = vadd.f32 %v584, -1.4531521
    %v589 = vmul.f32 %v585, %v574
    %v590 = vmul.f32 %v586, %v576
    %v591 = vmul.f32 %v587, %v578
    %v592 = vmul.f32 %v588, %v580
    %v593 = vadd.f32 %v589, 1.4214138
    %v594 = vadd.f32 %v590, 1.4214138
    %v595 = vadd.f32 %v591, 1.4214138
    %v596 = vadd.f32 %v592, 1.4214138
    %v597 = vmul.f32 %v593, %v574
    %v598 = vmul.f32 %v594, %v576
    %v599 = vmul.f32 %v595, %v578
    %v600 = vmul.f32 %v596, %v580
    %v601 = vadd.f32 %v597, -0.28449672
    %v602 = vadd.f32 %v598, -0.28449672
    %v603 = vadd.f32 %v599, -0.28449672
    %v604 = vadd.f32 %v600, -0.28449672
    %v605 = vmul.f32 %v601, %v574
    %v606 = vmul.f32 %v602, %v576
    %v607 = vmul.f32 %v603, %v578
    %v608 = vmul.f32 %v604, %v580
    %v609 = vadd.f32 %v605, 0.2548296
    %v610 = vadd.f32 %v606, 0.2548296
    %v611 = vadd.f32 %v607, 0.2548296
    %v612 = vadd.f32 %v608, 0.2548296
    %v613 = vmul.f32 %v609, %v574
    %v614 = vmul.f32 %v610, %v576
    %v615 = vmul.f32 %v611, %v578
    %v616 = vmul.f32 %v612, %v580
    %v617 = vsub.f32 0.0, %v561
    %v618 = vsub.f32 0.0, %v562
    %v619 = vsub.f32 0.0, %v563
    %v620 = vsub.f32 0.0, %v564
    %v621 = vmul.f32 %v617, %v561
    %v622 = vmul.f32 %v618, %v562
    %v623 = vmul.f32 %v619, %v563
    %v624 = vmul.f32 %v620, %v564
    %v625 = vmul.f32 %v621, 1.442695
    %v626 = vpow.pop %v625
    %v627 = vmul.f32 %v622, 1.442695
    %v628 = vpow.pop %v627
    %v629 = vmul.f32 %v623, 1.442695
    %v630 = vpow.pop %v629
    %v631 = vmul.f32 %v624, 1.442695
    %v632 = vpow.pop %v631
    %v633 = vmul.f32 %v613, %v626
    %v634 = vmul.f32 %v614, %v628
    %v635 = vmul.f32 %v615, %v630
    %v636 = vmul.f32 %v616, %v632
    %v637 = vsub.f32 1.0, %v633
    %v638 = vsub.f32 1.0, %v634
    %v639 = vsub.f32 1.0, %v635
    %v640 = vsub.f32 1.0, %v636
    %v641 = vmul.f32 %v557, %v637
    %v642 = vmul.f32 %v558, %v638
    %v643 = vmul.f32 %v559, %v639
    %v644 = vmul.f32 %v560, %v640
    %v645 = vadd.f32 %v641, 1.0
    %v646 = vadd.f32 %v642, 1.0
    %v647 = vadd.f32 %v643, 1.0
    %v648 = vadd.f32 %v644, 1.0
    %v649 = vmul.f32 %v545, %v645
    %v650 = vmul.f32 %v546, %v646
    %v651 = vmul.f32 %v547, %v647
    %v652 = vmul.f32 %v548, %v648
    %653 = vadd.xlane.f32.xlu0 %v649
    %v654 = vpop.xlane.xlu0 %653
    %655 = vadd.xlane.f32.xlu0 %v650
    %v656 = vpop.xlane.xlu0 %655
    %657 = vadd.xlane.f32.xlu0 %v651
    %v658 = vpop.xlane.xlu0 %657
    %659 = vadd.xlane.f32.xlu0 %v652
    %v660 = vpop.xlane.xlu0 %659
    %v661 = vrcp.pop 128.0
    %v662 = vmul.f32 %v654, %v661
    %v663 = vmul.f32 %v656, %v661
    %v664 = vmul.f32 %v658, %v661
    %v665 = vmul.f32 %v660, %v661
    %v666 = vsub.f32 %v649, %v662
    %v667 = vsub.f32 %v650, %v663
    %v668 = vsub.f32 %v651, %v664
    %v669 = vsub.f32 %v652, %v665
    %v670 = vmul.f32 %v666, %v666
    %v671 = vmul.f32 %v667, %v667
    %v672 = vmul.f32 %v668, %v668
    %v673 = vmul.f32 %v669, %v669
    %674 = vadd.xlane.f32.xlu0 %v670
    %v675 = vpop.xlane.xlu0 %674
    %676 = vadd.xlane.f32.xlu0 %v671
    %v677 = vpop.xlane.xlu0 %676
    %678 = vadd.xlane.f32.xlu0 %v672
    %v679 = vpop.xlane.xlu0 %678
    %680 = vadd.xlane.f32.xlu0 %v673
    %v681 = vpop.xlane.xlu0 %680
    %v682 = vmul.f32 %v675, %v661
    %v683 = vmul.f32 %v677, %v661
    %v684 = vmul.f32 %v679, %v661
    %v685 = vmul.f32 %v681, %v661
    %v686 = vadd.f32 %v682, 1e-05
    %v687 = vadd.f32 %v683, 1e-05
    %v688 = vadd.f32 %v684, 1e-05
    %v689 = vadd.f32 %v685, 1e-05
    %v690 = vrsqrt.pop %v686
    %v691 = vrsqrt.pop %v687
    %v692 = vrsqrt.pop %v688
    %v693 = vrsqrt.pop %v689
    %v694 = vmul.f32 %v666, %v690
    %v695 = vmul.f32 %v667, %v691
    %v696 = vmul.f32 %v668, %v692
    %v697 = vmul.f32 %v669, %v693
    %v698 = vld [vmem:[%s4] sm:$0x1]
    %v700 = vlaneseq
    %v701 = vshrl.u32 %v700, 7
    %v702 = vsub.s32 0, %v701
    %v703 = vrot.slane %v698, %v702
    %v705 = vmul.f32 %v694, %v703
    %v706 = vmul.f32 %v695, %v703
    %v707 = vmul.f32 %v696, %v703
    %v708 = vmul.f32 %v697, %v703
    %v709 = vld [vmem:[%s5] sm:$0x1]
    %v711 = vlaneseq
    %v712 = vshrl.u32 %v711, 7
    %v713 = vsub.s32 0, %v712
    %v714 = vrot.slane %v709, %v713
    %v716 = vadd.f32 %v705, %v714
    %v717 = vadd.f32 %v706, %v714
    %v718 = vadd.f32 %v707, %v714
    %v719 = vadd.f32 %v708, %v714
    %v720 = vpack.c.bf16 %v717, %v716
    %v721 = vpack.c.bf16 %v719, %v718
    %v722 = vld [vmem:[%s6] sm:$0xff]
    %v723 = vld [vmem:[%s6 + $0x8] sm:$0xff]
    %v724 = vld [vmem:[%s6 + $0x10] sm:$0xff]
    %v725 = vld [vmem:[%s6 + $0x18] sm:$0xff]
    %v726 = vld [vmem:[%s6 + $0x20] sm:$0xff]
    %v727 = vld [vmem:[%s6 + $0x28] sm:$0xff]
    %v728 = vld [vmem:[%s6 + $0x30] sm:$0xff]
    %v729 = vld [vmem:[%s6 + $0x38] sm:$0xff]
    %v730 = vld [vmem:[%s6 + $0x40] sm:$0xff]
    %v731 = vld [vmem:[%s6 + $0x48] sm:$0xff]
    %v732 = vld [vmem:[%s6 + $0x50] sm:$0xff]
    %v733 = vld [vmem:[%s6 + $0x58] sm:$0xff]
    %v734 = vld [vmem:[%s6 + $0x60] sm:$0xff]
    %v735 = vld [vmem:[%s6 + $0x68] sm:$0xff]
    %v736 = vld [vmem:[%s6 + $0x70] sm:$0xff]
    %v737 = vld [vmem:[%s6 + $0x78] sm:$0xff]
    %v738 = vpack.c.bf16 %v723, %v722
    %v739 = vpack.c.bf16 %v725, %v724
    %v740 = vpack.c.bf16 %v727, %v726
    %v741 = vpack.c.bf16 %v729, %v728
    %v742 = vpack.c.bf16 %v731, %v730
    %v743 = vpack.c.bf16 %v733, %v732
    %v744 = vpack.c.bf16 %v735, %v734
    %v745 = vpack.c.bf16 %v737, %v736
    %v746 = vld [vmem:[%s7] sm:$0x1]
    %v748 = vlaneseq
    %v749 = vshrl.u32 %v748, 7
    %v750 = vsub.s32 0, %v749
    %v751 = vrot.slane %v746, %v750
    %753 = vmatprep.subr.bf16.mxu0 0
    %754 = vmatpush1.bf16.msra.mxu0 %v738
    %755 = vmatprep.subr.bf16.mxu0 0
    %756 = vmatpush1.bf16.msra.mxu0 %v739
    %757 = vmatprep.subr.bf16.mxu0 0
    %758 = vmatpush1.bf16.msra.mxu0 %v740
    %759 = vmatprep.subr.bf16.mxu0 0
    %760 = vmatpush1.bf16.msra.mxu0 %v741
    %761 = vmatprep.subr.bf16.mxu0 0
    %762 = vmatpush1.bf16.msra.mxu0 %v742
    %763 = vmatprep.subr.bf16.mxu0 0
    %764 = vmatpush1.bf16.msra.mxu0 %v743
    %765 = vmatprep.subr.bf16.mxu0 0
    %766 = vmatpush1.bf16.msra.mxu0 %v744
    %767 = vmatprep.subr.bf16.mxu0 0
    %768 = vmatpush1.bf16.msra.mxu0 %v745
    %769 = vmatprep.subr.bf16.mxu0 0
    %770 = vmatpush1.bf16.msra.mxu0 0
    %771 = vmatprep.subr.bf16.mxu0 0
    %772 = vmatpush1.bf16.msra.mxu0 0
    %773 = vmatprep.subr.bf16.mxu0 0
    %774 = vmatpush1.bf16.msra.mxu0 0
    %775 = vmatprep.subr.bf16.mxu0 0
    %776 = vmatpush1.bf16.msra.mxu0 0
    %777 = vmatprep.subr.bf16.mxu0 0
    %778 = vmatpush1.bf16.msra.mxu0 0
    %779 = vmatprep.subr.bf16.mxu0 0
    %780 = vmatpush1.bf16.msra.mxu0 0
    %781 = vmatprep.subr.bf16.mxu0 0
    %782 = vmatpush1.bf16.msra.mxu0 0
    %783 = vmatprep.subr.bf16.mxu0 0
    %784 = vmatpush1.bf16.msra.mxu0 0
    %785 = vmatprep.mubr.bf16.mxu0 0
    %786 = vmatmul.mubr.bf16.gmra.mrb[0].mxu0 %v720
    %v787 = vpop.f32.mrb[0].mxu0
    %v788 = vadd.f32 %v751, %v787
    %v789 = vpop.f32.mrb[0].mxu0
    %v790 = vpop.f32.mrb[0].mxu0
    %v791 = vadd.f32 %v751, %v790
    %v792 = vpop.f32.mrb[0].mxu0
    %793 = vmatprep.mubr.bf16.mxu0 0
    %794 = vmatmul.mubr.bf16.gmra.mrb[0].mxu0 %v721
    %v795 = vpop.f32.mrb[0].mxu0
    %v796 = vadd.f32 %v751, %v795
    %v797 = vpop.f32.mrb[0].mxu0
    %v798 = vpop.f32.mrb[0].mxu0
    %v799 = vadd.f32 %v751, %v798
    %v800 = vpop.f32.mrb[0].mxu0
    %801 = vdwg.mxu0
    %v802 = vtanh.pop %v788
    %v803 = vtanh.pop %v791
    %v804 = vtanh.pop %v796
    %v805 = vtanh.pop %v799
    %v806 = vpack.c.bf16 %v803, %v802
    %v807 = vpack.c.bf16 %v805, %v804
    %v808 = vld [vmem:[%s8] sm:$0xff]
    %v809 = vld [vmem:[%s8 + $0x8] sm:$0xff]
    %v810 = vld [vmem:[%s8 + $0x10] sm:$0xff]
    %v811 = vld [vmem:[%s8 + $0x18] sm:$0xff]
    %v812 = vld [vmem:[%s8 + $0x20] sm:$0xff]
    %v813 = vld [vmem:[%s8 + $0x28] sm:$0xff]
    %v814 = vld [vmem:[%s8 + $0x30] sm:$0xff]
    %v815 = vld [vmem:[%s8 + $0x38] sm:$0xff]
    %v816 = vld [vmem:[%s8 + $0x40] sm:$0xff]
    %v817 = vld [vmem:[%s8 + $0x48] sm:$0xff]
    %v818 = vld [vmem:[%s8 + $0x50] sm:$0xff]
    %v819 = vld [vmem:[%s8 + $0x58] sm:$0xff]
    %v820 = vld [vmem:[%s8 + $0x60] sm:$0xff]
    %v821 = vld [vmem:[%s8 + $0x68] sm:$0xff]
    %v822 = vld [vmem:[%s8 + $0x70] sm:$0xff]
    %v823 = vld [vmem:[%s8 + $0x78] sm:$0xff]
    %v824 = vld [vmem:[%s8 + $0x80] sm:$0xff]
    %v825 = vld [vmem:[%s8 + $0x88] sm:$0xff]
    %v826 = vld [vmem:[%s8 + $0x90] sm:$0xff]
    %v827 = vld [vmem:[%s8 + $0x98] sm:$0xff]
    %v828 = vld [vmem:[%s8 + $0xa0] sm:$0xff]
    %v829 = vld [vmem:[%s8 + $0xa8] sm:$0xff]
    %v830 = vld [vmem:[%s8 + $0xb0] sm:$0xff]
    %v831 = vld [vmem:[%s8 + $0xb8] sm:$0xff]
    %v832 = vld [vmem:[%s8 + $0xc0] sm:$0xff]
    %v833 = vld [vmem:[%s8 + $0xc8] sm:$0xff]
    %v834 = vld [vmem:[%s8 + $0xd0] sm:$0xff]
    %v835 = vld [vmem:[%s8 + $0xd8] sm:$0xff]
    %v836 = vld [vmem:[%s8 + $0xe0] sm:$0xff]
    %v837 = vld [vmem:[%s8 + $0xe8] sm:$0xff]
    %v838 = vld [vmem:[%s8 + $0xf0] sm:$0xff]
    %v839 = vld [vmem:[%s8 + $0xf8] sm:$0xff]
    %v840 = vld [vmem:[%s8 + $0x100] sm:$0xff]
    %v841 = vld [vmem:[%s8 + $0x108] sm:$0xff]
    %v842 = vld [vmem:[%s8 + $0x110] sm:$0xff]
    %v843 = vld [vmem:[%s8 + $0x118] sm:$0xff]
    %v844 = vld [vmem:[%s8 + $0x120] sm:$0xff]
    %v845 = vld [vmem:[%s8 + $0x128] sm:$0xff]
    %v846 = vld [vmem:[%s8 + $0x130] sm:$0xff]
    %v847 = vld [vmem:[%s8 + $0x138] sm:$0xff]
    %v848 = vld [vmem:[%s8 + $0x140] sm:$0xff]
    %v849 = vld [vmem:[%s8 + $0x148] sm:$0xff]
    %v850 = vld [vmem:[%s8 + $0x150] sm:$0xff]
    %v851 = vld [vmem:[%s8 + $0x158] sm:$0xff]
    %v852 = vld [vmem:[%s8 + $0x160] sm:$0xff]
    %v853 = vld [vmem:[%s8 + $0x168] sm:$0xff]
    %v854 = vld [vmem:[%s8 + $0x170] sm:$0xff]
    %v855 = vld [vmem:[%s8 + $0x178] sm:$0xff]
    %v856 = vld [vmem:[%s8 + $0x180] sm:$0xff]
    %v857 = vld [vmem:[%s8 + $0x188] sm:$0xff]
    %v858 = vld [vmem:[%s8 + $0x190] sm:$0xff]
    %v859 = vld [vmem:[%s8 + $0x198] sm:$0xff]
    %v860 = vld [vmem:[%s8 + $0x1a0] sm:$0xff]
    %v861 = vld [vmem:[%s8 + $0x1a8] sm:$0xff]
    %v862 = vld [vmem:[%s8 + $0x1b0] sm:$0xff]
    %v863 = vld [vmem:[%s8 + $0x1b8] sm:$0xff]
    %v864 = vld [vmem:[%s8 + $0x1c0] sm:$0xff]
    %v865 = vld [vmem:[%s8 + $0x1c8] sm:$0xff]
    %v866 = vld [vmem:[%s8 + $0x1d0] sm:$0xff]
    %v867 = vld [vmem:[%s8 + $0x1d8] sm:$0xff]
    %v868 = vld [vmem:[%s8 + $0x1e0] sm:$0xff]
    %v869 = vld [vmem:[%s8 + $0x1e8] sm:$0xff]
    %v870 = vld [vmem:[%s8 + $0x1f0] sm:$0xff]
    %v871 = vld [vmem:[%s8 + $0x1f8] sm:$0xff]
    %v872 = vld [vmem:[%s8 + $0x200] sm:$0xff]
    %v873 = vld [vmem:[%s8 + $0x208] sm:$0xff]
    %v874 = vld [vmem:[%s8 + $0x210] sm:$0xff]
    %v875 = vld [vmem:[%s8 + $0x218] sm:$0xff]
    %v876 = vld [vmem:[%s8 + $0x220] sm:$0xff]
    %v877 = vld [vmem:[%s8 + $0x228] sm:$0xff]
    %v878 = vld [vmem:[%s8 + $0x230] sm:$0xff]
    %v879 = vld [vmem:[%s8 + $0x238] sm:$0xff]
    %v880 = vld [vmem:[%s8 + $0x240] sm:$0xff]
    %v881 = vld [vmem:[%s8 + $0x248] sm:$0xff]
    %v882 = vld [vmem:[%s8 + $0x250] sm:$0xff]
    %v883 = vld [vmem:[%s8 + $0x258] sm:$0xff]
    %v884 = vld [vmem:[%s8 + $0x260] sm:$0xff]
    %v885 = vld [vmem:[%s8 + $0x268] sm:$0xff]
    %v886 = vld [vmem:[%s8 + $0x270] sm:$0xff]
    %v887 = vld [vmem:[%s8 + $0x278] sm:$0xff]
    %v888 = vld [vmem:[%s8 + $0x280] sm:$0xff]
    %v889 = vld [vmem:[%s8 + $0x288] sm:$0xff]
    %v890 = vld [vmem:[%s8 + $0x290] sm:$0xff]
    %v891 = vld [vmem:[%s8 + $0x298] sm:$0xff]
    %v892 = vld [vmem:[%s8 + $0x2a0] sm:$0xff]
    %v893 = vld [vmem:[%s8 + $0x2a8] sm:$0xff]
    %v894 = vld [vmem:[%s8 + $0x2b0] sm:$0xff]
    %v895 = vld [vmem:[%s8 + $0x2b8] sm:$0xff]
    %v896 = vld [vmem:[%s8 + $0x2c0] sm:$0xff]
    %v897 = vld [vmem:[%s8 + $0x2c8] sm:$0xff]
    %v898 = vld [vmem:[%s8 + $0x2d0] sm:$0xff]
    %v899 = vld [vmem:[%s8 + $0x2d8] sm:$0xff]
    %v900 = vld [vmem:[%s8 + $0x2e0] sm:$0xff]
    %v901 = vld [vmem:[%s8 + $0x2e8] sm:$0xff]
    %v902 = vld [vmem:[%s8 + $0x2f0] sm:$0xff]
    %v903 = vld [vmem:[%s8 + $0x2f8] sm:$0xff]
    %v904 = vpack.c.bf16 %v814, %v808
    %v905 = vpack.c.bf16 %v815, %v809
    %v906 = vpack.c.bf16 %v816, %v810
    %v907 = vpack.c.bf16 %v817, %v811
    %v908 = vpack.c.bf16 %v818, %v812
    %v909 = vpack.c.bf16 %v819, %v813
    %v910 = vpack.c.bf16 %v826, %v820
    %v911 = vpack.c.bf16 %v827, %v821
    %v912 = vpack.c.bf16 %v828, %v822
    %v913 = vpack.c.bf16 %v829, %v823
    %v914 = vpack.c.bf16 %v830, %v824
    %v915 = vpack.c.bf16 %v831, %v825
    %v916 = vpack.c.bf16 %v838, %v832
    %v917 = vpack.c.bf16 %v839, %v833
    %v918 = vpack.c.bf16 %v840, %v834
    %v919 = vpack.c.bf16 %v841, %v835
    %v920 = vpack.c.bf16 %v842, %v836
    %v921 = vpack.c.bf16 %v843, %v837
    %v922 = vpack.c.bf16 %v850, %v844
    %v923 = vpack.c.bf16 %v851, %v845
    %v924 = vpack.c.bf16 %v852, %v846
    %v925 = vpack.c.bf16 %v853, %v847
    %v926 = vpack.c.bf16 %v854, %v848
    %v927 = vpack.c.bf16 %v855, %v849
    %v928 = vpack.c.bf16 %v862, %v856
    %v929 = vpack.c.bf16 %v863, %v857
    %v930 = vpack.c.bf16 %v864, %v858
    %v931 = vpack.c.bf16 %v865, %v859
    %v932 = vpack.c.bf16 %v866, %v860
    %v933 = vpack.c.bf16 %v867, %v861
    %v934 = vpack.c.bf16 %v874, %v868
    %v935 = vpack.c.bf16 %v875, %v869
    %v936 = vpack.c.bf16 %v876, %v870
    %v937 = vpack.c.bf16 %v877, %v871
    %v938 = vpack.c.bf16 %v878, %v872
    %v939 = vpack.c.bf16 %v879, %v873
    %v940 = vpack.c.bf16 %v886, %v880
    %v941 = vpack.c.bf16 %v887, %v881
    %v942 = vpack.c.bf16 %v888, %v882
    %v943 = vpack.c.bf16 %v889, %v883
    %v944 = vpack.c.bf16 %v890, %v884
    %v945 = vpack.c.bf16 %v891, %v885
    %v946 = vpack.c.bf16 %v898, %v892
    %v947 = vpack.c.bf16 %v899, %v893
    %v948 = vpack.c.bf16 %v900, %v894
    %v949 = vpack.c.bf16 %v901, %v895
    %v950 = vpack.c.bf16 %v902, %v896
    %v951 = vpack.c.bf16 %v903, %v897
    %952 = vmatprep.subr.bf16.mxu0 %v905
    %953 = vmatpush1.bf16.msra.mxu0 %v904
    %954 = vmatprep.subr.bf16.mxu0 %v911
    %955 = vmatpush1.bf16.msra.mxu0 %v910
    %956 = vmatprep.subr.bf16.mxu0 %v917
    %957 = vmatpush1.bf16.msra.mxu0 %v916
    %958 = vmatprep.subr.bf16.mxu0 %v923
    %959 = vmatpush1.bf16.msra.mxu0 %v922
    %960 = vmatprep.subr.bf16.mxu0 %v929
    %961 = vmatpush1.bf16.msra.mxu0 %v928
    %962 = vmatprep.subr.bf16.mxu0 %v935
    %963 = vmatpush1.bf16.msra.mxu0 %v934
    %964 = vmatprep.subr.bf16.mxu0 %v941
    %965 = vmatpush1.bf16.msra.mxu0 %v940
    %966 = vmatprep.subr.bf16.mxu0 %v947
    %967 = vmatpush1.bf16.msra.mxu0 %v946
    %968 = vmatprep.subr.bf16.mxu0 0
    %969 = vmatpush1.bf16.msra.mxu0 0
    %970 = vmatprep.subr.bf16.mxu0 0
    %971 = vmatpush1.bf16.msra.mxu0 0
    %972 = vmatprep.subr.bf16.mxu0 0
    %973 = vmatpush1.bf16.msra.mxu0 0
    %974 = vmatprep.subr.bf16.mxu0 0
    %975 = vmatpush1.bf16.msra.mxu0 0
    %976 = vmatprep.subr.bf16.mxu0 0
    %977 = vmatpush1.bf16.msra.mxu0 0
    %978 = vmatprep.subr.bf16.mxu0 0
    %979 = vmatpush1.bf16.msra.mxu0 0
    %980 = vmatprep.subr.bf16.mxu0 0
    %981 = vmatpush1.bf16.msra.mxu0 0
    %982 = vmatprep.subr.bf16.mxu0 0
    %983 = vmatpush1.bf16.msra.mxu0 0
    %984 = vmatprep.mubr.bf16.mxu0 0
    %985 = vmatmul.mubr.bf16.gmra.mrb[0].mxu0 %v806
    %v986 = vpop.f32.mrb[0].mxu0
    %v987 = vadd.f32 0.0, %v986
    %v988 = vpop.f32.mrb[0].mxu0
    %v989 = vadd.f32 0.0, %v988
    %v990 = vpop.f32.mrb[0].mxu0
    %v991 = vadd.f32 0.0, %v990
    %v992 = vpop.f32.mrb[0].mxu0
    %v993 = vadd.f32 0.0, %v992
    %994 = vmatprep.mubr.bf16.mxu0 0
    %995 = vmatmul.mubr.bf16.gmra.mrb[0].mxu0 %v807
    %v996 = vpop.f32.mrb[0].mxu0
    %v997 = vadd.f32 0.0, %v996
    %v998 = vpop.f32.mrb[0].mxu0
    %v999 = vadd.f32 0.0, %v998
    %v1000 = vpop.f32.mrb[0].mxu0
    %v1001 = vadd.f32 0.0, %v1000
    %v1002 = vpop.f32.mrb[0].mxu0
    %v1003 = vadd.f32 0.0, %v1002
    %1004 = vdwg.mxu0
    %1005 = vmatprep.subr.bf16.mxu0 %v907
    %1006 = vmatpush1.bf16.msra.mxu0 %v906
    %1007 = vmatprep.subr.bf16.mxu0 %v913
    %1008 = vmatpush1.bf16.msra.mxu0 %v912
    %1009 = vmatprep.subr.bf16.mxu0 %v919
    %1010 = vmatpush1.bf16.msra.mxu0 %v918
    %1011 = vmatprep.subr.bf16.mxu0 %v925
    %1012 = vmatpush1.bf16.msra.mxu0 %v924
    %1013 = vmatprep.subr.bf16.mxu0 %v931
    %1014 = vmatpush1.bf16.msra.mxu0 %v930
    %1015 = vmatprep.subr.bf16.mxu0 %v937
    %1016 = vmatpush1.bf16.msra.mxu0 %v936
    %1017 = vmatprep.subr.bf16.mxu0 %v943
    %1018 = vmatpush1.bf16.msra.mxu0 %v942
    %1019 = vmatprep.subr.bf16.mxu0 %v949
    %1020 = vmatpush1.bf16.msra.mxu0 %v948
    %1021 = vmatprep.subr.bf16.mxu0 0
    %1022 = vmatpush1.bf16.msra.mxu0 0
    %1023 = vmatprep.subr.bf16.mxu0 0
    %1024 = vmatpush1.bf16.msra.mxu0 0
    %1025 = vmatprep.subr.bf16.mxu0 0
    %1026 = vmatpush1.bf16.msra.mxu0 0
    %1027 = vmatprep.subr.bf16.mxu0 0
    %1028 = vmatpush1.bf16.msra.mxu0 0
    %1029 = vmatprep.subr.bf16.mxu0 0
    %1030 = vmatpush1.bf16.msra.mxu0 0
    %1031 = vmatprep.subr.bf16.mxu0 0
    %1032 = vmatpush1.bf16.msra.mxu0 0
    %1033 = vmatprep.subr.bf16.mxu0 0
    %1034 = vmatpush1.bf16.msra.mxu0 0
    %1035 = vmatprep.subr.bf16.mxu0 0
    %1036 = vmatpush1.bf16.msra.mxu0 0
    %1037 = vmatprep.mubr.bf16.mxu0 0
    %1038 = vmatmul.mubr.bf16.gmra.mrb[0].mxu0 %v806
    %v1039 = vpop.f32.mrb[0].mxu0
    %v1040 = vadd.f32 0.0, %v1039
    %v1041 = vpop.f32.mrb[0].mxu0
    %v1042 = vadd.f32 0.0, %v1041
    %v1043 = vpop.f32.mrb[0].mxu0
    %v1044 = vadd.f32 0.0, %v1043
    %v1045 = vpop.f32.mrb[0].mxu0
    %v1046 = vadd.f32 0.0, %v1045
    %1047 = vmatprep.mubr.bf16.mxu0 0
    %1048 = vmatmul.mubr.bf16.gmra.mrb[0].mxu0 %v807
    %v1049 = vpop.f32.mrb[0].mxu0
    %v1050 = vadd.f32 0.0, %v1049
    %v1051 = vpop.f32.mrb[0].mxu0
    %v1052 = vadd.f32 0.0, %v1051
    %v1053 = vpop.f32.mrb[0].mxu0
    %v1054 = vadd.f32 0.0, %v1053
    %v1055 = vpop.f32.mrb[0].mxu0
    %v1056 = vadd.f32 0.0, %v1055
    %1057 = vdwg.mxu0
    %1058 = vmatprep.subr.bf16.mxu0 %v909
    %1059 = vmatpush1.bf16.msra.mxu0 %v908
    %1060 = vmatprep.subr.bf16.mxu0 %v915
    %1061 = vmatpush1.bf16.msra.mxu0 %v914
    %1062 = vmatprep.subr.bf16.mxu0 %v921
    %1063 = vmatpush1.bf16.msra.mxu0 %v920
    %1064 = vmatprep.subr.bf16.mxu0 %v927
    %1065 = vmatpush1.bf16.msra.mxu0 %v926
    %1066 = vmatprep.subr.bf16.mxu0 %v933
    %1067 = vmatpush1.bf16.msra.mxu0 %v932
    %1068 = vmatprep.subr.bf16.mxu0 %v939
    %1069 = vmatpush1.bf16.msra.mxu0 %v938
    %1070 = vmatprep.subr.bf16.mxu0 %v945
    %1071 = vmatpush1.bf16.msra.mxu0 %v944
    %1072 = vmatprep.subr.bf16.mxu0 %v951
    %1073 = vmatpush1.bf16.msra.mxu0 %v950
    %1074 = vmatprep.subr.bf16.mxu0 0
    %1075 = vmatpush1.bf16.msra.mxu0 0
    %1076 = vmatprep.subr.bf16.mxu0 0
    %1077 = vmatpush1.bf16.msra.mxu0 0
    %1078 = vmatprep.subr.bf16.mxu0 0
    %1079 = vmatpush1.bf16.msra.mxu0 0
    %1080 = vmatprep.subr.bf16.mxu0 0
    %1081 = vmatpush1.bf16.msra.mxu0 0
    %1082 = vmatprep.subr.bf16.mxu0 0
    %1083 = vmatpush1.bf16.msra.mxu0 0
    %1084 = vmatprep.subr.bf16.mxu0 0
    %1085 = vmatpush1.bf16.msra.mxu0 0
    %1086 = vmatprep.subr.bf16.mxu0 0
    %1087 = vmatpush1.bf16.msra.mxu0 0
    %1088 = vmatprep.subr.bf16.mxu0 0
    %1089 = vmatpush1.bf16.msra.mxu0 0
    %1090 = vmatprep.mubr.bf16.mxu0 0
    %1091 = vmatmul.mubr.bf16.gmra.mrb[0].mxu0 %v806
    %v1092 = vpop.f32.mrb[0].mxu0
    %v1093 = vadd.f32 0.0, %v1092
    %v1094 = vpop.f32.mrb[0].mxu0
    %v1095 = vadd.f32 0.0, %v1094
    %v1096 = vpop.f32.mrb[0].mxu0
    %v1097 = vadd.f32 0.0, %v1096
    %v1098 = vpop.f32.mrb[0].mxu0
    %v1099 = vadd.f32 0.0, %v1098
    %1100 = vmatprep.mubr.bf16.mxu0 0
    %1101 = vmatmul.mubr.bf16.gmra.mrb[0].mxu0 %v807
    %v1102 = vpop.f32.mrb[0].mxu0
    %v1103 = vadd.f32 0.0, %v1102
    %v1104 = vpop.f32.mrb[0].mxu0
    %v1105 = vadd.f32 0.0, %v1104
    %v1106 = vpop.f32.mrb[0].mxu0
    %v1107 = vadd.f32 0.0, %v1106
    %v1108 = vpop.f32.mrb[0].mxu0
    %v1109 = vadd.f32 0.0, %v1108
    %1110 = vdwg.mxu0
    %v1111 = vpack.c.bf16 %v991, %v987
    %v1112 = vpack.c.bf16 %v1001, %v997
    %v1113 = vpack.c.bf16 %v993, %v989
    %v1114 = vpack.c.bf16 %v1003, %v999
    %v1115 = vpack.c.bf16 %v1044, %v1040
    %v1116 = vpack.c.bf16 %v1054, %v1050
    %v1117 = vmul.f32 %v412, %v1042
    %v1118 = vmul.f32 %v417, %v1046
    %v1119 = vmul.f32 %v422, %v1052
    %v1120 = vmul.f32 %v427, %v1056
    %1121 = vmatprep.subr.bf16.mxu0 0
    %1122 = vmatpush1.bf16.msra.mxu0 %v1111
    %1123 = vmatprep.subr.bf16.mxu0 0
    %1124 = vmatpush1.bf16.msra.mxu0 %v1112
    %1125 = vmatprep.subr.bf16.mxu0 0
    %1126 = vmatpush1.bf16.msra.mxu0 %v1113
    %1127 = vmatprep.subr.bf16.mxu0 0
    %1128 = vmatpush1.bf16.msra.mxu0 %v1114
    %1129 = vmatprep.subr.bf16.mxu0 0
    %1130 = vmatpush1.bf16.msra.mxu0 %v1115
    %1131 = vmatprep.subr.bf16.mxu0 0
    %1132 = vmatpush1.bf16.msra.mxu0 %v1116
    %1133 = vmatprep.subr.bf16.mxu0 0
    %1134 = vmatpush1.bf16.msra.mxu0 0
    %1135 = vmatprep.subr.bf16.mxu0 0
    %1136 = vmatpush1.bf16.msra.mxu0 0
    %1137 = vmatprep.subr.bf16.mxu0 0
    %1138 = vmatpush1.bf16.msra.mxu0 0
    %1139 = vmatprep.subr.bf16.mxu0 0
    %1140 = vmatpush1.bf16.msra.mxu0 0
    %1141 = vmatprep.subr.bf16.mxu0 0
    %1142 = vmatpush1.bf16.msra.mxu0 0
    %1143 = vmatprep.subr.bf16.mxu0 0
    %1144 = vmatpush1.bf16.msra.mxu0 0
    %1145 = vmatprep.subr.bf16.mxu0 0
    %1146 = vmatpush1.bf16.msra.mxu0 0
    %1147 = vmatprep.subr.bf16.mxu0 0
    %1148 = vmatpush1.bf16.msra.mxu0 0
    %1149 = vmatprep.subr.bf16.mxu0 0
    %1150 = vmatpush1.bf16.msra.mxu0 0
    %1151 = vmatprep.subr.bf16.mxu0 0
    %1152 = vmatpush1.bf16.msra.mxu0 0
    %1153 = vmatprep.mubr.bf16.mxu0 0
    %1154 = vmatmul.mubr.bf16.gmra.mrb[0].mxu0 %v435
    %v1155 = vpop.f32.mrb[0].mxu0
    %v1156 = vadd.f32 %v1117, %v1155
    %v1157 = vpop.f32.mrb[0].mxu0
    %v1158 = vpop.f32.mrb[0].mxu0
    %v1159 = vadd.f32 %v1118, %v1158
    %v1160 = vpop.f32.mrb[0].mxu0
    %1161 = vmatprep.mubr.bf16.mxu0 0
    %1162 = vmatmul.mubr.bf16.gmra.mrb[0].mxu0 %v438
    %v1163 = vpop.f32.mrb[0].mxu0
    %v1164 = vadd.f32 %v1119, %v1163
    %v1165 = vpop.f32.mrb[0].mxu0
    %v1166 = vpop.f32.mrb[0].mxu0
    %v1167 = vadd.f32 %v1120, %v1166
    %v1168 = vpop.f32.mrb[0].mxu0
    %1169 = vdwg.mxu0
    %v1170 = vmul.f32 %v492, %v1093
    %v1171 = vmul.f32 %v497, %v1097
    %v1172 = vmul.f32 %v502, %v1103
    %v1173 = vmul.f32 %v507, %v1107
    %v1174 = vadd.f32 %v1156, %v1170
    %v1175 = vadd.f32 %v1159, %v1171
    %v1176 = vadd.f32 %v1164, %v1172
    %v1177 = vadd.f32 %v1167, %v1173
    %v1178 = vmul.f32 %v520, %v1095
    %v1179 = vmul.f32 %v525, %v1099
    %v1180 = vmul.f32 %v530, %v1105
    %v1181 = vmul.f32 %v535, %v1109
    %v1182 = vadd.f32 %v1174, %v1178
    %v1183 = vadd.f32 %v1175, %v1179
    %v1184 = vadd.f32 %v1176, %v1180
    %v1185 = vadd.f32 %v1177, %v1181
    %v1186 = vmul.f32 %v1182, 0.5
    %v1187 = vmul.f32 %v1183, 0.5
    %v1188 = vmul.f32 %v1184, 0.5
    %v1189 = vmul.f32 %v1185, 0.5
    %v1190 = vmul.f32 %v1182, 0.70710677
    %v1191 = vmul.f32 %v1183, 0.70710677
    %v1192 = vmul.f32 %v1184, 0.70710677
    %v1193 = vmul.f32 %v1185, 0.70710677
    %vm1194 = vcmp.ge.f32.partialorder %v1190, 0.0
    %vm1195 = vcmp.ge.f32.partialorder %v1191, 0.0
    %vm1196 = vcmp.ge.f32.partialorder %v1192, 0.0
    %vm1197 = vcmp.ge.f32.partialorder %v1193, 0.0
    %v1198 = vsel %vm1194, 1.0, -1.0
    %v1199 = vsel %vm1195, 1.0, -1.0
    %v1200 = vsel %vm1196, 1.0, -1.0
    %v1201 = vsel %vm1197, 1.0, -1.0
    %v1202 = vand.u32 2147483647, %v1190
    %v1203 = vand.u32 2147483647, %v1191
    %v1204 = vand.u32 2147483647, %v1192
    %v1205 = vand.u32 2147483647, %v1193
    %v1206 = vmul.f32 %v1202, 0.3275911
    %v1207 = vmul.f32 %v1203, 0.3275911
    %v1208 = vmul.f32 %v1204, 0.3275911
    %v1209 = vmul.f32 %v1205, 0.3275911
    %v1210 = vadd.f32 %v1206, 1.0
    %v1211 = vadd.f32 %v1207, 1.0
    %v1212 = vadd.f32 %v1208, 1.0
    %v1213 = vadd.f32 %v1209, 1.0
    %v1214 = vrcp.pop %v1210
    %v1215 = vmul.f32 1.0, %v1214
    %v1216 = vrcp.pop %v1211
    %v1217 = vmul.f32 1.0, %v1216
    %v1218 = vrcp.pop %v1212
    %v1219 = vmul.f32 1.0, %v1218
    %v1220 = vrcp.pop %v1213
    %v1221 = vmul.f32 1.0, %v1220
    %v1222 = vmul.f32 %v1215, 1.0614054
    %v1223 = vmul.f32 %v1217, 1.0614054
    %v1224 = vmul.f32 %v1219, 1.0614054
    %v1225 = vmul.f32 %v1221, 1.0614054
    %v1226 = vadd.f32 %v1222, -1.4531521
    %v1227 = vadd.f32 %v1223, -1.4531521
    %v1228 = vadd.f32 %v1224, -1.4531521
    %v1229 = vadd.f32 %v1225, -1.4531521
    %v1230 = vmul.f32 %v1226, %v1215
    %v1231 = vmul.f32 %v1227, %v1217
    %v1232 = vmul.f32 %v1228, %v1219
    %v1233 = vmul.f32 %v1229, %v1221
    %v1234 = vadd.f32 %v1230, 1.4214138
    %v1235 = vadd.f32 %v1231, 1.4214138
    %v1236 = vadd.f32 %v1232, 1.4214138
    %v1237 = vadd.f32 %v1233, 1.4214138
    %v1238 = vmul.f32 %v1234, %v1215
    %v1239 = vmul.f32 %v1235, %v1217
    %v1240 = vmul.f32 %v1236, %v1219
    %v1241 = vmul.f32 %v1237, %v1221
    %v1242 = vadd.f32 %v1238, -0.28449672
    %v1243 = vadd.f32 %v1239, -0.28449672
    %v1244 = vadd.f32 %v1240, -0.28449672
    %v1245 = vadd.f32 %v1241, -0.28449672
    %v1246 = vmul.f32 %v1242, %v1215
    %v1247 = vmul.f32 %v1243, %v1217
    %v1248 = vmul.f32 %v1244, %v1219
    %v1249 = vmul.f32 %v1245, %v1221
    %v1250 = vadd.f32 %v1246, 0.2548296
    %v1251 = vadd.f32 %v1247, 0.2548296
    %v1252 = vadd.f32 %v1248, 0.2548296
    %v1253 = vadd.f32 %v1249, 0.2548296
    %v1254 = vmul.f32 %v1250, %v1215
    %v1255 = vmul.f32 %v1251, %v1217
    %v1256 = vmul.f32 %v1252, %v1219
    %v1257 = vmul.f32 %v1253, %v1221
    %v1258 = vsub.f32 0.0, %v1202
    %v1259 = vsub.f32 0.0, %v1203
    %v1260 = vsub.f32 0.0, %v1204
    %v1261 = vsub.f32 0.0, %v1205
    %v1262 = vmul.f32 %v1258, %v1202
    %v1263 = vmul.f32 %v1259, %v1203
    %v1264 = vmul.f32 %v1260, %v1204
    %v1265 = vmul.f32 %v1261, %v1205
    %v1266 = vmul.f32 %v1262, 1.442695
    %v1267 = vpow.pop %v1266
    %v1268 = vmul.f32 %v1263, 1.442695
    %v1269 = vpow.pop %v1268
    %v1270 = vmul.f32 %v1264, 1.442695
    %v1271 = vpow.pop %v1270
    %v1272 = vmul.f32 %v1265, 1.442695
    %v1273 = vpow.pop %v1272
    %v1274 = vmul.f32 %v1254, %v1267
    %v1275 = vmul.f32 %v1255, %v1269
    %v1276 = vmul.f32 %v1256, %v1271
    %v1277 = vmul.f32 %v1257, %v1273
    %v1278 = vsub.f32 1.0, %v1274
    %v1279 = vsub.f32 1.0, %v1275
    %v1280 = vsub.f32 1.0, %v1276
    %v1281 = vsub.f32 1.0, %v1277
    %v1282 = vmul.f32 %v1198, %v1278
    %v1283 = vmul.f32 %v1199, %v1279
    %v1284 = vmul.f32 %v1200, %v1280
    %v1285 = vmul.f32 %v1201, %v1281
    %v1286 = vadd.f32 %v1282, 1.0
    %v1287 = vadd.f32 %v1283, 1.0
    %v1288 = vadd.f32 %v1284, 1.0
    %v1289 = vadd.f32 %v1285, 1.0
    %v1290 = vmul.f32 %v1186, %v1286
    %v1291 = vmul.f32 %v1187, %v1287
    %v1292 = vmul.f32 %v1188, %v1288
    %v1293 = vmul.f32 %v1189, %v1289
    %1294 = vadd.xlane.f32.xlu0 %v1290
    %v1295 = vpop.xlane.xlu0 %1294
    %1296 = vadd.xlane.f32.xlu0 %v1291
    %v1297 = vpop.xlane.xlu0 %1296
    %1298 = vadd.xlane.f32.xlu0 %v1292
    %v1299 = vpop.xlane.xlu0 %1298
    %1300 = vadd.xlane.f32.xlu0 %v1293
    %v1301 = vpop.xlane.xlu0 %1300
    %v1302 = vmul.f32 %v1295, %v661
    %v1303 = vmul.f32 %v1297, %v661
    %v1304 = vmul.f32 %v1299, %v661
    %v1305 = vmul.f32 %v1301, %v661
    %v1306 = vsub.f32 %v1290, %v1302
    %v1307 = vsub.f32 %v1291, %v1303
    %v1308 = vsub.f32 %v1292, %v1304
    %v1309 = vsub.f32 %v1293, %v1305
    %v1310 = vmul.f32 %v1306, %v1306
    %v1311 = vmul.f32 %v1307, %v1307
    %v1312 = vmul.f32 %v1308, %v1308
    %v1313 = vmul.f32 %v1309, %v1309
    %1314 = vadd.xlane.f32.xlu0 %v1310
    %v1315 = vpop.xlane.xlu0 %1314
    %1316 = vadd.xlane.f32.xlu0 %v1311
    %v1317 = vpop.xlane.xlu0 %1316
    %1318 = vadd.xlane.f32.xlu0 %v1312
    %v1319 = vpop.xlane.xlu0 %1318
    %1320 = vadd.xlane.f32.xlu0 %v1313
    %v1321 = vpop.xlane.xlu0 %1320
    %v1322 = vmul.f32 %v1315, %v661
    %v1323 = vmul.f32 %v1317, %v661
    %v1324 = vmul.f32 %v1319, %v661
    %v1325 = vmul.f32 %v1321, %v661
    %v1326 = vadd.f32 %v1322, 1e-05
    %v1327 = vadd.f32 %v1323, 1e-05
    %v1328 = vadd.f32 %v1324, 1e-05
    %v1329 = vadd.f32 %v1325, 1e-05
    %v1330 = vrsqrt.pop %v1326
    %v1331 = vrsqrt.pop %v1327
    %v1332 = vrsqrt.pop %v1328
    %v1333 = vrsqrt.pop %v1329
    %v1334 = vmul.f32 %v1306, %v1330
    %v1335 = vmul.f32 %v1307, %v1331
    %v1336 = vmul.f32 %v1308, %v1332
    %v1337 = vmul.f32 %v1309, %v1333
    %v1338 = vld [vmem:[%s9] sm:$0x1]
    %v1340 = vlaneseq
    %v1341 = vshrl.u32 %v1340, 7
    %v1342 = vsub.s32 0, %v1341
    %v1343 = vrot.slane %v1338, %v1342
    %v1345 = vmul.f32 %v1334, %v1343
    %v1346 = vmul.f32 %v1335, %v1343
    %v1347 = vmul.f32 %v1336, %v1343
    %v1348 = vmul.f32 %v1337, %v1343
    %v1349 = vld [vmem:[%s10] sm:$0x1]
    %v1351 = vlaneseq
    %v1352 = vshrl.u32 %v1351, 7
    %v1353 = vsub.s32 0, %v1352
    %v1354 = vrot.slane %v1349, %v1353
    %v1356 = vadd.f32 %v1345, %v1354
    %v1357 = vadd.f32 %v1346, %v1354
    %v1358 = vadd.f32 %v1347, %v1354
    %v1359 = vadd.f32 %v1348, %v1354
    %v1360 = vpack.c.bf16 %v1357, %v1356
    %v1361 = vpack.c.bf16 %v1359, %v1358
    %v1362 = vld [vmem:[%s11] sm:$0xff]
    %v1363 = vld [vmem:[%s11 + $0x8] sm:$0xff]
    %v1364 = vld [vmem:[%s11 + $0x10] sm:$0xff]
    %v1365 = vld [vmem:[%s11 + $0x18] sm:$0xff]
    %v1366 = vld [vmem:[%s11 + $0x20] sm:$0xff]
    %v1367 = vld [vmem:[%s11 + $0x28] sm:$0xff]
    %v1368 = vld [vmem:[%s11 + $0x30] sm:$0xff]
    %v1369 = vld [vmem:[%s11 + $0x38] sm:$0xff]
    %v1370 = vld [vmem:[%s11 + $0x40] sm:$0xff]
    %v1371 = vld [vmem:[%s11 + $0x48] sm:$0xff]
    %v1372 = vld [vmem:[%s11 + $0x50] sm:$0xff]
    %v1373 = vld [vmem:[%s11 + $0x58] sm:$0xff]
    %v1374 = vld [vmem:[%s11 + $0x60] sm:$0xff]
    %v1375 = vld [vmem:[%s11 + $0x68] sm:$0xff]
    %v1376 = vld [vmem:[%s11 + $0x70] sm:$0xff]
    %v1377 = vld [vmem:[%s11 + $0x78] sm:$0xff]
    %v1378 = vpack.c.bf16 %v1363, %v1362
    %v1379 = vpack.c.bf16 %v1365, %v1364
    %v1380 = vpack.c.bf16 %v1367, %v1366
    %v1381 = vpack.c.bf16 %v1369, %v1368
    %v1382 = vpack.c.bf16 %v1371, %v1370
    %v1383 = vpack.c.bf16 %v1373, %v1372
    %v1384 = vpack.c.bf16 %v1375, %v1374
    %v1385 = vpack.c.bf16 %v1377, %v1376
    %v1386 = vld [vmem:[%s12] sm:$0x1]
    %v1388 = vlaneseq
    %v1389 = vshrl.u32 %v1388, 7
    %v1390 = vsub.s32 0, %v1389
    %v1391 = vrot.slane %v1386, %v1390
    %1393 = vmatprep.subr.bf16.mxu0 0
    %1394 = vmatpush1.bf16.msra.mxu0 %v1378
    %1395 = vmatprep.subr.bf16.mxu0 0
    %1396 = vmatpush1.bf16.msra.mxu0 %v1379
    %1397 = vmatprep.subr.bf16.mxu0 0
    %1398 = vmatpush1.bf16.msra.mxu0 %v1380
    %1399 = vmatprep.subr.bf16.mxu0 0
    %1400 = vmatpush1.bf16.msra.mxu0 %v1381
    %1401 = vmatprep.subr.bf16.mxu0 0
    %1402 = vmatpush1.bf16.msra.mxu0 %v1382
    %1403 = vmatprep.subr.bf16.mxu0 0
    %1404 = vmatpush1.bf16.msra.mxu0 %v1383
    %1405 = vmatprep.subr.bf16.mxu0 0
    %1406 = vmatpush1.bf16.msra.mxu0 %v1384
    %1407 = vmatprep.subr.bf16.mxu0 0
    %1408 = vmatpush1.bf16.msra.mxu0 %v1385
    %1409 = vmatprep.subr.bf16.mxu0 0
    %1410 = vmatpush1.bf16.msra.mxu0 0
    %1411 = vmatprep.subr.bf16.mxu0 0
    %1412 = vmatpush1.bf16.msra.mxu0 0
    %1413 = vmatprep.subr.bf16.mxu0 0
    %1414 = vmatpush1.bf16.msra.mxu0 0
    %1415 = vmatprep.subr.bf16.mxu0 0
    %1416 = vmatpush1.bf16.msra.mxu0 0
    %1417 = vmatprep.subr.bf16.mxu0 0
    %1418 = vmatpush1.bf16.msra.mxu0 0
    %1419 = vmatprep.subr.bf16.mxu0 0
    %1420 = vmatpush1.bf16.msra.mxu0 0
    %1421 = vmatprep.subr.bf16.mxu0 0
    %1422 = vmatpush1.bf16.msra.mxu0 0
    %1423 = vmatprep.subr.bf16.mxu0 0
    %1424 = vmatpush1.bf16.msra.mxu0 0
    %1425 = vmatprep.mubr.bf16.mxu0 0
    %1426 = vmatmul.mubr.bf16.gmra.mrb[0].mxu0 %v1360
    %v1427 = vpop.f32.mrb[0].mxu0
    %v1428 = vadd.f32 %v1391, %v1427
    %v1429 = vpop.f32.mrb[0].mxu0
    %v1430 = vpop.f32.mrb[0].mxu0
    %v1431 = vadd.f32 %v1391, %v1430
    %v1432 = vpop.f32.mrb[0].mxu0
    %1433 = vmatprep.mubr.bf16.mxu0 0
    %1434 = vmatmul.mubr.bf16.gmra.mrb[0].mxu0 %v1361
    %v1435 = vpop.f32.mrb[0].mxu0
    %v1436 = vadd.f32 %v1391, %v1435
    %v1437 = vpop.f32.mrb[0].mxu0
    %v1438 = vpop.f32.mrb[0].mxu0
    %v1439 = vadd.f32 %v1391, %v1438
    %v1440 = vpop.f32.mrb[0].mxu0
    %1441 = vdwg.mxu0
    %v1442 = vtanh.pop %v1428
    %v1443 = vtanh.pop %v1431
    %v1444 = vtanh.pop %v1436
    %v1445 = vtanh.pop %v1439
    %v1446 = vpack.c.bf16 %v1443, %v1442
    %v1447 = vpack.c.bf16 %v1445, %v1444
    %v1448 = vld [vmem:[%s13] sm:$0xff]
    %v1449 = vld [vmem:[%s13 + $0x8] sm:$0xff]
    %v1450 = vld [vmem:[%s13 + $0x10] sm:$0xff]
    %v1451 = vld [vmem:[%s13 + $0x18] sm:$0xff]
    %v1452 = vld [vmem:[%s13 + $0x20] sm:$0xff]
    %v1453 = vld [vmem:[%s13 + $0x28] sm:$0xff]
    %v1454 = vld [vmem:[%s13 + $0x30] sm:$0xff]
    %v1455 = vld [vmem:[%s13 + $0x38] sm:$0xff]
    %v1456 = vld [vmem:[%s13 + $0x40] sm:$0xff]
    %v1457 = vld [vmem:[%s13 + $0x48] sm:$0xff]
    %v1458 = vld [vmem:[%s13 + $0x50] sm:$0xff]
    %v1459 = vld [vmem:[%s13 + $0x58] sm:$0xff]
    %v1460 = vld [vmem:[%s13 + $0x60] sm:$0xff]
    %v1461 = vld [vmem:[%s13 + $0x68] sm:$0xff]
    %v1462 = vld [vmem:[%s13 + $0x70] sm:$0xff]
    %v1463 = vld [vmem:[%s13 + $0x78] sm:$0xff]
    %v1464 = vld [vmem:[%s13 + $0x80] sm:$0xff]
    %v1465 = vld [vmem:[%s13 + $0x88] sm:$0xff]
    %v1466 = vld [vmem:[%s13 + $0x90] sm:$0xff]
    %v1467 = vld [vmem:[%s13 + $0x98] sm:$0xff]
    %v1468 = vld [vmem:[%s13 + $0xa0] sm:$0xff]
    %v1469 = vld [vmem:[%s13 + $0xa8] sm:$0xff]
    %v1470 = vld [vmem:[%s13 + $0xb0] sm:$0xff]
    %v1471 = vld [vmem:[%s13 + $0xb8] sm:$0xff]
    %v1472 = vld [vmem:[%s13 + $0xc0] sm:$0xff]
    %v1473 = vld [vmem:[%s13 + $0xc8] sm:$0xff]
    %v1474 = vld [vmem:[%s13 + $0xd0] sm:$0xff]
    %v1475 = vld [vmem:[%s13 + $0xd8] sm:$0xff]
    %v1476 = vld [vmem:[%s13 + $0xe0] sm:$0xff]
    %v1477 = vld [vmem:[%s13 + $0xe8] sm:$0xff]
    %v1478 = vld [vmem:[%s13 + $0xf0] sm:$0xff]
    %v1479 = vld [vmem:[%s13 + $0xf8] sm:$0xff]
    %v1480 = vld [vmem:[%s13 + $0x100] sm:$0xff]
    %v1481 = vld [vmem:[%s13 + $0x108] sm:$0xff]
    %v1482 = vld [vmem:[%s13 + $0x110] sm:$0xff]
    %v1483 = vld [vmem:[%s13 + $0x118] sm:$0xff]
    %v1484 = vld [vmem:[%s13 + $0x120] sm:$0xff]
    %v1485 = vld [vmem:[%s13 + $0x128] sm:$0xff]
    %v1486 = vld [vmem:[%s13 + $0x130] sm:$0xff]
    %v1487 = vld [vmem:[%s13 + $0x138] sm:$0xff]
    %v1488 = vld [vmem:[%s13 + $0x140] sm:$0xff]
    %v1489 = vld [vmem:[%s13 + $0x148] sm:$0xff]
    %v1490 = vld [vmem:[%s13 + $0x150] sm:$0xff]
    %v1491 = vld [vmem:[%s13 + $0x158] sm:$0xff]
    %v1492 = vld [vmem:[%s13 + $0x160] sm:$0xff]
    %v1493 = vld [vmem:[%s13 + $0x168] sm:$0xff]
    %v1494 = vld [vmem:[%s13 + $0x170] sm:$0xff]
    %v1495 = vld [vmem:[%s13 + $0x178] sm:$0xff]
    %v1496 = vld [vmem:[%s13 + $0x180] sm:$0xff]
    %v1497 = vld [vmem:[%s13 + $0x188] sm:$0xff]
    %v1498 = vld [vmem:[%s13 + $0x190] sm:$0xff]
    %v1499 = vld [vmem:[%s13 + $0x198] sm:$0xff]
    %v1500 = vld [vmem:[%s13 + $0x1a0] sm:$0xff]
    %v1501 = vld [vmem:[%s13 + $0x1a8] sm:$0xff]
    %v1502 = vld [vmem:[%s13 + $0x1b0] sm:$0xff]
    %v1503 = vld [vmem:[%s13 + $0x1b8] sm:$0xff]
    %v1504 = vld [vmem:[%s13 + $0x1c0] sm:$0xff]
    %v1505 = vld [vmem:[%s13 + $0x1c8] sm:$0xff]
    %v1506 = vld [vmem:[%s13 + $0x1d0] sm:$0xff]
    %v1507 = vld [vmem:[%s13 + $0x1d8] sm:$0xff]
    %v1508 = vld [vmem:[%s13 + $0x1e0] sm:$0xff]
    %v1509 = vld [vmem:[%s13 + $0x1e8] sm:$0xff]
    %v1510 = vld [vmem:[%s13 + $0x1f0] sm:$0xff]
    %v1511 = vld [vmem:[%s13 + $0x1f8] sm:$0xff]
    %v1512 = vld [vmem:[%s13 + $0x200] sm:$0xff]
    %v1513 = vld [vmem:[%s13 + $0x208] sm:$0xff]
    %v1514 = vld [vmem:[%s13 + $0x210] sm:$0xff]
    %v1515 = vld [vmem:[%s13 + $0x218] sm:$0xff]
    %v1516 = vld [vmem:[%s13 + $0x220] sm:$0xff]
    %v1517 = vld [vmem:[%s13 + $0x228] sm:$0xff]
    %v1518 = vld [vmem:[%s13 + $0x230] sm:$0xff]
    %v1519 = vld [vmem:[%s13 + $0x238] sm:$0xff]
    %v1520 = vld [vmem:[%s13 + $0x240] sm:$0xff]
    %v1521 = vld [vmem:[%s13 + $0x248] sm:$0xff]
    %v1522 = vld [vmem:[%s13 + $0x250] sm:$0xff]
    %v1523 = vld [vmem:[%s13 + $0x258] sm:$0xff]
    %v1524 = vld [vmem:[%s13 + $0x260] sm:$0xff]
    %v1525 = vld [vmem:[%s13 + $0x268] sm:$0xff]
    %v1526 = vld [vmem:[%s13 + $0x270] sm:$0xff]
    %v1527 = vld [vmem:[%s13 + $0x278] sm:$0xff]
    %v1528 = vld [vmem:[%s13 + $0x280] sm:$0xff]
    %v1529 = vld [vmem:[%s13 + $0x288] sm:$0xff]
    %v1530 = vld [vmem:[%s13 + $0x290] sm:$0xff]
    %v1531 = vld [vmem:[%s13 + $0x298] sm:$0xff]
    %v1532 = vld [vmem:[%s13 + $0x2a0] sm:$0xff]
    %v1533 = vld [vmem:[%s13 + $0x2a8] sm:$0xff]
    %v1534 = vld [vmem:[%s13 + $0x2b0] sm:$0xff]
    %v1535 = vld [vmem:[%s13 + $0x2b8] sm:$0xff]
    %v1536 = vld [vmem:[%s13 + $0x2c0] sm:$0xff]
    %v1537 = vld [vmem:[%s13 + $0x2c8] sm:$0xff]
    %v1538 = vld [vmem:[%s13 + $0x2d0] sm:$0xff]
    %v1539 = vld [vmem:[%s13 + $0x2d8] sm:$0xff]
    %v1540 = vld [vmem:[%s13 + $0x2e0] sm:$0xff]
    %v1541 = vld [vmem:[%s13 + $0x2e8] sm:$0xff]
    %v1542 = vld [vmem:[%s13 + $0x2f0] sm:$0xff]
    %v1543 = vld [vmem:[%s13 + $0x2f8] sm:$0xff]
    %v1544 = vpack.c.bf16 %v1454, %v1448
    %v1545 = vpack.c.bf16 %v1455, %v1449
    %v1546 = vpack.c.bf16 %v1456, %v1450
    %v1547 = vpack.c.bf16 %v1457, %v1451
    %v1548 = vpack.c.bf16 %v1458, %v1452
    %v1549 = vpack.c.bf16 %v1459, %v1453
    %v1550 = vpack.c.bf16 %v1466, %v1460
    %v1551 = vpack.c.bf16 %v1467, %v1461
    %v1552 = vpack.c.bf16 %v1468, %v1462
    %v1553 = vpack.c.bf16 %v1469, %v1463
    %v1554 = vpack.c.bf16 %v1470, %v1464
    %v1555 = vpack.c.bf16 %v1471, %v1465
    %v1556 = vpack.c.bf16 %v1478, %v1472
    %v1557 = vpack.c.bf16 %v1479, %v1473
    %v1558 = vpack.c.bf16 %v1480, %v1474
    %v1559 = vpack.c.bf16 %v1481, %v1475
    %v1560 = vpack.c.bf16 %v1482, %v1476
    %v1561 = vpack.c.bf16 %v1483, %v1477
    %v1562 = vpack.c.bf16 %v1490, %v1484
    %v1563 = vpack.c.bf16 %v1491, %v1485
    %v1564 = vpack.c.bf16 %v1492, %v1486
    %v1565 = vpack.c.bf16 %v1493, %v1487
    %v1566 = vpack.c.bf16 %v1494, %v1488
    %v1567 = vpack.c.bf16 %v1495, %v1489
    %v1568 = vpack.c.bf16 %v1502, %v1496
    %v1569 = vpack.c.bf16 %v1503, %v1497
    %v1570 = vpack.c.bf16 %v1504, %v1498
    %v1571 = vpack.c.bf16 %v1505, %v1499
    %v1572 = vpack.c.bf16 %v1506, %v1500
    %v1573 = vpack.c.bf16 %v1507, %v1501
    %v1574 = vpack.c.bf16 %v1514, %v1508
    %v1575 = vpack.c.bf16 %v1515, %v1509
    %v1576 = vpack.c.bf16 %v1516, %v1510
    %v1577 = vpack.c.bf16 %v1517, %v1511
    %v1578 = vpack.c.bf16 %v1518, %v1512
    %v1579 = vpack.c.bf16 %v1519, %v1513
    %v1580 = vpack.c.bf16 %v1526, %v1520
    %v1581 = vpack.c.bf16 %v1527, %v1521
    %v1582 = vpack.c.bf16 %v1528, %v1522
    %v1583 = vpack.c.bf16 %v1529, %v1523
    %v1584 = vpack.c.bf16 %v1530, %v1524
    %v1585 = vpack.c.bf16 %v1531, %v1525
    %v1586 = vpack.c.bf16 %v1538, %v1532
    %v1587 = vpack.c.bf16 %v1539, %v1533
    %v1588 = vpack.c.bf16 %v1540, %v1534
    %v1589 = vpack.c.bf16 %v1541, %v1535
    %v1590 = vpack.c.bf16 %v1542, %v1536
    %v1591 = vpack.c.bf16 %v1543, %v1537
    %1592 = vmatprep.subr.bf16.mxu0 %v1545
    %1593 = vmatpush1.bf16.msra.mxu0 %v1544
    %1594 = vmatprep.subr.bf16.mxu0 %v1551
    %1595 = vmatpush1.bf16.msra.mxu0 %v1550
    %1596 = vmatprep.subr.bf16.mxu0 %v1557
    %1597 = vmatpush1.bf16.msra.mxu0 %v1556
    %1598 = vmatprep.subr.bf16.mxu0 %v1563
    %1599 = vmatpush1.bf16.msra.mxu0 %v1562
    %1600 = vmatprep.subr.bf16.mxu0 %v1569
    %1601 = vmatpush1.bf16.msra.mxu0 %v1568
    %1602 = vmatprep.subr.bf16.mxu0 %v1575
    %1603 = vmatpush1.bf16.msra.mxu0 %v1574
    %1604 = vmatprep.subr.bf16.mxu0 %v1581
    %1605 = vmatpush1.bf16.msra.mxu0 %v1580
    %1606 = vmatprep.subr.bf16.mxu0 %v1587
    %1607 = vmatpush1.bf16.msra.mxu0 %v1586
    %1608 = vmatprep.subr.bf16.mxu0 0
    %1609 = vmatpush1.bf16.msra.mxu0 0
    %1610 = vmatprep.subr.bf16.mxu0 0
    %1611 = vmatpush1.bf16.msra.mxu0 0
    %1612 = vmatprep.subr.bf16.mxu0 0
    %1613 = vmatpush1.bf16.msra.mxu0 0
    %1614 = vmatprep.subr.bf16.mxu0 0
    %1615 = vmatpush1.bf16.msra.mxu0 0
    %1616 = vmatprep.subr.bf16.mxu0 0
    %1617 = vmatpush1.bf16.msra.mxu0 0
    %1618 = vmatprep.subr.bf16.mxu0 0
    %1619 = vmatpush1.bf16.msra.mxu0 0
    %1620 = vmatprep.subr.bf16.mxu0 0
    %1621 = vmatpush1.bf16.msra.mxu0 0
    %1622 = vmatprep.subr.bf16.mxu0 0
    %1623 = vmatpush1.bf16.msra.mxu0 0
    %1624 = vmatprep.mubr.bf16.mxu0 0
    %1625 = vmatmul.mubr.bf16.gmra.mrb[0].mxu0 %v1446
    %v1626 = vpop.f32.mrb[0].mxu0
    %v1627 = vadd.f32 0.0, %v1626
    %v1628 = vpop.f32.mrb[0].mxu0
    %v1629 = vadd.f32 0.0, %v1628
    %v1630 = vpop.f32.mrb[0].mxu0
    %v1631 = vadd.f32 0.0, %v1630
    %v1632 = vpop.f32.mrb[0].mxu0
    %v1633 = vadd.f32 0.0, %v1632
    %1634 = vmatprep.mubr.bf16.mxu0 0
    %1635 = vmatmul.mubr.bf16.gmra.mrb[0].mxu0 %v1447
    %v1636 = vpop.f32.mrb[0].mxu0
    %v1637 = vadd.f32 0.0, %v1636
    %v1638 = vpop.f32.mrb[0].mxu0
    %v1639 = vadd.f32 0.0, %v1638
    %v1640 = vpop.f32.mrb[0].mxu0
    %v1641 = vadd.f32 0.0, %v1640
    %v1642 = vpop.f32.mrb[0].mxu0
    %v1643 = vadd.f32 0.0, %v1642
    %1644 = vdwg.mxu0
    %1645 = vmatprep.subr.bf16.mxu0 %v1547
    %1646 = vmatpush1.bf16.msra.mxu0 %v1546
    %1647 = vmatprep.subr.bf16.mxu0 %v1553
    %1648 = vmatpush1.bf16.msra.mxu0 %v1552
    %1649 = vmatprep.subr.bf16.mxu0 %v1559
    %1650 = vmatpush1.bf16.msra.mxu0 %v1558
    %1651 = vmatprep.subr.bf16.mxu0 %v1565
    %1652 = vmatpush1.bf16.msra.mxu0 %v1564
    %1653 = vmatprep.subr.bf16.mxu0 %v1571
    %1654 = vmatpush1.bf16.msra.mxu0 %v1570
    %1655 = vmatprep.subr.bf16.mxu0 %v1577
    %1656 = vmatpush1.bf16.msra.mxu0 %v1576
    %1657 = vmatprep.subr.bf16.mxu0 %v1583
    %1658 = vmatpush1.bf16.msra.mxu0 %v1582
    %1659 = vmatprep.subr.bf16.mxu0 %v1589
    %1660 = vmatpush1.bf16.msra.mxu0 %v1588
    %1661 = vmatprep.subr.bf16.mxu0 0
    %1662 = vmatpush1.bf16.msra.mxu0 0
    %1663 = vmatprep.subr.bf16.mxu0 0
    %1664 = vmatpush1.bf16.msra.mxu0 0
    %1665 = vmatprep.subr.bf16.mxu0 0
    %1666 = vmatpush1.bf16.msra.mxu0 0
    %1667 = vmatprep.subr.bf16.mxu0 0
    %1668 = vmatpush1.bf16.msra.mxu0 0
    %1669 = vmatprep.subr.bf16.mxu0 0
    %1670 = vmatpush1.bf16.msra.mxu0 0
    %1671 = vmatprep.subr.bf16.mxu0 0
    %1672 = vmatpush1.bf16.msra.mxu0 0
    %1673 = vmatprep.subr.bf16.mxu0 0
    %1674 = vmatpush1.bf16.msra.mxu0 0
    %1675 = vmatprep.subr.bf16.mxu0 0
    %1676 = vmatpush1.bf16.msra.mxu0 0
    %1677 = vmatprep.mubr.bf16.mxu0 0
    %1678 = vmatmul.mubr.bf16.gmra.mrb[0].mxu0 %v1446
    %v1679 = vpop.f32.mrb[0].mxu0
    %v1680 = vadd.f32 0.0, %v1679
    %v1681 = vpop.f32.mrb[0].mxu0
    %v1682 = vadd.f32 0.0, %v1681
    %v1683 = vpop.f32.mrb[0].mxu0
    %v1684 = vadd.f32 0.0, %v1683
    %v1685 = vpop.f32.mrb[0].mxu0
    %v1686 = vadd.f32 0.0, %v1685
    %1687 = vmatprep.mubr.bf16.mxu0 0
    %1688 = vmatmul.mubr.bf16.gmra.mrb[0].mxu0 %v1447
    %v1689 = vpop.f32.mrb[0].mxu0
    %v1690 = vadd.f32 0.0, %v1689
    %v1691 = vpop.f32.mrb[0].mxu0
    %v1692 = vadd.f32 0.0, %v1691
    %v1693 = vpop.f32.mrb[0].mxu0
    %v1694 = vadd.f32 0.0, %v1693
    %v1695 = vpop.f32.mrb[0].mxu0
    %v1696 = vadd.f32 0.0, %v1695
    %1697 = vdwg.mxu0
    %1698 = vmatprep.subr.bf16.mxu0 %v1549
    %1699 = vmatpush1.bf16.msra.mxu0 %v1548
    %1700 = vmatprep.subr.bf16.mxu0 %v1555
    %1701 = vmatpush1.bf16.msra.mxu0 %v1554
    %1702 = vmatprep.subr.bf16.mxu0 %v1561
    %1703 = vmatpush1.bf16.msra.mxu0 %v1560
    %1704 = vmatprep.subr.bf16.mxu0 %v1567
    %1705 = vmatpush1.bf16.msra.mxu0 %v1566
    %1706 = vmatprep.subr.bf16.mxu0 %v1573
    %1707 = vmatpush1.bf16.msra.mxu0 %v1572
    %1708 = vmatprep.subr.bf16.mxu0 %v1579
    %1709 = vmatpush1.bf16.msra.mxu0 %v1578
    %1710 = vmatprep.subr.bf16.mxu0 %v1585
    %1711 = vmatpush1.bf16.msra.mxu0 %v1584
    %1712 = vmatprep.subr.bf16.mxu0 %v1591
    %1713 = vmatpush1.bf16.msra.mxu0 %v1590
    %1714 = vmatprep.subr.bf16.mxu0 0
    %1715 = vmatpush1.bf16.msra.mxu0 0
    %1716 = vmatprep.subr.bf16.mxu0 0
    %1717 = vmatpush1.bf16.msra.mxu0 0
    %1718 = vmatprep.subr.bf16.mxu0 0
    %1719 = vmatpush1.bf16.msra.mxu0 0
    %1720 = vmatprep.subr.bf16.mxu0 0
    %1721 = vmatpush1.bf16.msra.mxu0 0
    %1722 = vmatprep.subr.bf16.mxu0 0
    %1723 = vmatpush1.bf16.msra.mxu0 0
    %1724 = vmatprep.subr.bf16.mxu0 0
    %1725 = vmatpush1.bf16.msra.mxu0 0
    %1726 = vmatprep.subr.bf16.mxu0 0
    %1727 = vmatpush1.bf16.msra.mxu0 0
    %1728 = vmatprep.subr.bf16.mxu0 0
    %1729 = vmatpush1.bf16.msra.mxu0 0
    %1730 = vmatprep.mubr.bf16.mxu0 0
    %1731 = vmatmul.mubr.bf16.gmra.mrb[0].mxu0 %v1446
    %v1732 = vpop.f32.mrb[0].mxu0
    %v1733 = vadd.f32 0.0, %v1732
    %v1734 = vpop.f32.mrb[0].mxu0
    %v1735 = vadd.f32 0.0, %v1734
    %v1736 = vpop.f32.mrb[0].mxu0
    %v1737 = vadd.f32 0.0, %v1736
    %v1738 = vpop.f32.mrb[0].mxu0
    %v1739 = vadd.f32 0.0, %v1738
    %1740 = vmatprep.mubr.bf16.mxu0 0
    %1741 = vmatmul.mubr.bf16.gmra.mrb[0].mxu0 %v1447
    %v1742 = vpop.f32.mrb[0].mxu0
    %v1743 = vadd.f32 0.0, %v1742
    %v1744 = vpop.f32.mrb[0].mxu0
    %v1745 = vadd.f32 0.0, %v1744
    %v1746 = vpop.f32.mrb[0].mxu0
    %v1747 = vadd.f32 0.0, %v1746
    %v1748 = vpop.f32.mrb[0].mxu0
    %v1749 = vadd.f32 0.0, %v1748
    %1750 = vdwg.mxu0
    %v1751 = vpack.c.bf16 %v1631, %v1627
    %v1752 = vpack.c.bf16 %v1641, %v1637
    %v1753 = vpack.c.bf16 %v1633, %v1629
    %v1754 = vpack.c.bf16 %v1643, %v1639
    %v1755 = vpack.c.bf16 %v1684, %v1680
    %v1756 = vpack.c.bf16 %v1694, %v1690
    %v1757 = vmul.f32 %v412, %v1682
    %v1758 = vmul.f32 %v417, %v1686
    %v1759 = vmul.f32 %v422, %v1692
    %v1760 = vmul.f32 %v427, %v1696
    %1761 = vmatprep.subr.bf16.mxu0 0
    %1762 = vmatpush1.bf16.msra.mxu0 %v1751
    %1763 = vmatprep.subr.bf16.mxu0 0
    %1764 = vmatpush1.bf16.msra.mxu0 %v1752
    %1765 = vmatprep.subr.bf16.mxu0 0
    %1766 = vmatpush1.bf16.msra.mxu0 %v1753
    %1767 = vmatprep.subr.bf16.mxu0 0
    %1768 = vmatpush1.bf16.msra.mxu0 %v1754
    %1769 = vmatprep.subr.bf16.mxu0 0
    %1770 = vmatpush1.bf16.msra.mxu0 %v1755
    %1771 = vmatprep.subr.bf16.mxu0 0
    %1772 = vmatpush1.bf16.msra.mxu0 %v1756
    %1773 = vmatprep.subr.bf16.mxu0 0
    %1774 = vmatpush1.bf16.msra.mxu0 0
    %1775 = vmatprep.subr.bf16.mxu0 0
    %1776 = vmatpush1.bf16.msra.mxu0 0
    %1777 = vmatprep.subr.bf16.mxu0 0
    %1778 = vmatpush1.bf16.msra.mxu0 0
    %1779 = vmatprep.subr.bf16.mxu0 0
    %1780 = vmatpush1.bf16.msra.mxu0 0
    %1781 = vmatprep.subr.bf16.mxu0 0
    %1782 = vmatpush1.bf16.msra.mxu0 0
    %1783 = vmatprep.subr.bf16.mxu0 0
    %1784 = vmatpush1.bf16.msra.mxu0 0
    %1785 = vmatprep.subr.bf16.mxu0 0
    %1786 = vmatpush1.bf16.msra.mxu0 0
    %1787 = vmatprep.subr.bf16.mxu0 0
    %1788 = vmatpush1.bf16.msra.mxu0 0
    %1789 = vmatprep.subr.bf16.mxu0 0
    %1790 = vmatpush1.bf16.msra.mxu0 0
    %1791 = vmatprep.subr.bf16.mxu0 0
    %1792 = vmatpush1.bf16.msra.mxu0 0
    %1793 = vmatprep.mubr.bf16.mxu0 0
    %1794 = vmatmul.mubr.bf16.gmra.mrb[0].mxu0 %v435
    %v1795 = vpop.f32.mrb[0].mxu0
    %v1796 = vadd.f32 %v1757, %v1795
    %v1797 = vpop.f32.mrb[0].mxu0
    %v1798 = vpop.f32.mrb[0].mxu0
    %v1799 = vadd.f32 %v1758, %v1798
    %v1800 = vpop.f32.mrb[0].mxu0
    %1801 = vmatprep.mubr.bf16.mxu0 0
    %1802 = vmatmul.mubr.bf16.gmra.mrb[0].mxu0 %v438
    %v1803 = vpop.f32.mrb[0].mxu0
    %v1804 = vadd.f32 %v1759, %v1803
    %v1805 = vpop.f32.mrb[0].mxu0
    %v1806 = vpop.f32.mrb[0].mxu0
    %v1807 = vadd.f32 %v1760, %v1806
    %v1808 = vpop.f32.mrb[0].mxu0
    %1809 = vdwg.mxu0
    %v1810 = vmul.f32 %v492, %v1733
    %v1811 = vmul.f32 %v497, %v1737
    %v1812 = vmul.f32 %v502, %v1743
    %v1813 = vmul.f32 %v507, %v1747
    %v1814 = vadd.f32 %v1796, %v1810
    %v1815 = vadd.f32 %v1799, %v1811
    %v1816 = vadd.f32 %v1804, %v1812
    %v1817 = vadd.f32 %v1807, %v1813
    %v1818 = vmul.f32 %v520, %v1735
    %v1819 = vmul.f32 %v525, %v1739
    %v1820 = vmul.f32 %v530, %v1745
    %v1821 = vmul.f32 %v535, %v1749
    %v1822 = vadd.f32 %v1814, %v1818
    %v1823 = vadd.f32 %v1815, %v1819
    %v1824 = vadd.f32 %v1816, %v1820
    %v1825 = vadd.f32 %v1817, %v1821
    %v1826 = vmul.f32 %v1822, 0.5
    %v1827 = vmul.f32 %v1823, 0.5
    %v1828 = vmul.f32 %v1824, 0.5
    %v1829 = vmul.f32 %v1825, 0.5
    %v1830 = vmul.f32 %v1822, 0.70710677
    %v1831 = vmul.f32 %v1823, 0.70710677
    %v1832 = vmul.f32 %v1824, 0.70710677
    %v1833 = vmul.f32 %v1825, 0.70710677
    %vm1834 = vcmp.ge.f32.partialorder %v1830, 0.0
    %vm1835 = vcmp.ge.f32.partialorder %v1831, 0.0
    %vm1836 = vcmp.ge.f32.partialorder %v1832, 0.0
    %vm1837 = vcmp.ge.f32.partialorder %v1833, 0.0
    %v1838 = vsel %vm1834, 1.0, -1.0
    %v1839 = vsel %vm1835, 1.0, -1.0
    %v1840 = vsel %vm1836, 1.0, -1.0
    %v1841 = vsel %vm1837, 1.0, -1.0
    %v1842 = vand.u32 2147483647, %v1830
    %v1843 = vand.u32 2147483647, %v1831
    %v1844 = vand.u32 2147483647, %v1832
    %v1845 = vand.u32 2147483647, %v1833
    %v1846 = vmul.f32 %v1842, 0.3275911
    %v1847 = vmul.f32 %v1843, 0.3275911
    %v1848 = vmul.f32 %v1844, 0.3275911
    %v1849 = vmul.f32 %v1845, 0.3275911
    %v1850 = vadd.f32 %v1846, 1.0
    %v1851 = vadd.f32 %v1847, 1.0
    %v1852 = vadd.f32 %v1848, 1.0
    %v1853 = vadd.f32 %v1849, 1.0
    %v1854 = vrcp.pop %v1850
    %v1855 = vmul.f32 1.0, %v1854
    %v1856 = vrcp.pop %v1851
    %v1857 = vmul.f32 1.0, %v1856
    %v1858 = vrcp.pop %v1852
    %v1859 = vmul.f32 1.0, %v1858
    %v1860 = vrcp.pop %v1853
    %v1861 = vmul.f32 1.0, %v1860
    %v1862 = vmul.f32 %v1855, 1.0614054
    %v1863 = vmul.f32 %v1857, 1.0614054
    %v1864 = vmul.f32 %v1859, 1.0614054
    %v1865 = vmul.f32 %v1861, 1.0614054
    %v1866 = vadd.f32 %v1862, -1.4531521
    %v1867 = vadd.f32 %v1863, -1.4531521
    %v1868 = vadd.f32 %v1864, -1.4531521
    %v1869 = vadd.f32 %v1865, -1.4531521
    %v1870 = vmul.f32 %v1866, %v1855
    %v1871 = vmul.f32 %v1867, %v1857
    %v1872 = vmul.f32 %v1868, %v1859
    %v1873 = vmul.f32 %v1869, %v1861
    %v1874 = vadd.f32 %v1870, 1.4214138
    %v1875 = vadd.f32 %v1871, 1.4214138
    %v1876 = vadd.f32 %v1872, 1.4214138
    %v1877 = vadd.f32 %v1873, 1.4214138
    %v1878 = vmul.f32 %v1874, %v1855
    %v1879 = vmul.f32 %v1875, %v1857
    %v1880 = vmul.f32 %v1876, %v1859
    %v1881 = vmul.f32 %v1877, %v1861
    %v1882 = vadd.f32 %v1878, -0.28449672
    %v1883 = vadd.f32 %v1879, -0.28449672
    %v1884 = vadd.f32 %v1880, -0.28449672
    %v1885 = vadd.f32 %v1881, -0.28449672
    %v1886 = vmul.f32 %v1882, %v1855
    %v1887 = vmul.f32 %v1883, %v1857
    %v1888 = vmul.f32 %v1884, %v1859
    %v1889 = vmul.f32 %v1885, %v1861
    %v1890 = vadd.f32 %v1886, 0.2548296
    %v1891 = vadd.f32 %v1887, 0.2548296
    %v1892 = vadd.f32 %v1888, 0.2548296
    %v1893 = vadd.f32 %v1889, 0.2548296
    %v1894 = vmul.f32 %v1890, %v1855
    %v1895 = vmul.f32 %v1891, %v1857
    %v1896 = vmul.f32 %v1892, %v1859
    %v1897 = vmul.f32 %v1893, %v1861
    %v1898 = vsub.f32 0.0, %v1842
    %v1899 = vsub.f32 0.0, %v1843
    %v1900 = vsub.f32 0.0, %v1844
    %v1901 = vsub.f32 0.0, %v1845
    %v1902 = vmul.f32 %v1898, %v1842
    %v1903 = vmul.f32 %v1899, %v1843
    %v1904 = vmul.f32 %v1900, %v1844
    %v1905 = vmul.f32 %v1901, %v1845
    %v1906 = vmul.f32 %v1902, 1.442695
    %v1907 = vpow.pop %v1906
    %v1908 = vmul.f32 %v1903, 1.442695
    %v1909 = vpow.pop %v1908
    %v1910 = vmul.f32 %v1904, 1.442695
    %v1911 = vpow.pop %v1910
    %v1912 = vmul.f32 %v1905, 1.442695
    %v1913 = vpow.pop %v1912
    %v1914 = vmul.f32 %v1894, %v1907
    %v1915 = vmul.f32 %v1895, %v1909
    %v1916 = vmul.f32 %v1896, %v1911
    %v1917 = vmul.f32 %v1897, %v1913
    %v1918 = vsub.f32 1.0, %v1914
    %v1919 = vsub.f32 1.0, %v1915
    %v1920 = vsub.f32 1.0, %v1916
    %v1921 = vsub.f32 1.0, %v1917
    %v1922 = vmul.f32 %v1838, %v1918
    %v1923 = vmul.f32 %v1839, %v1919
    %v1924 = vmul.f32 %v1840, %v1920
    %v1925 = vmul.f32 %v1841, %v1921
    %v1926 = vadd.f32 %v1922, 1.0
    %v1927 = vadd.f32 %v1923, 1.0
    %v1928 = vadd.f32 %v1924, 1.0
    %v1929 = vadd.f32 %v1925, 1.0
    %v1930 = vmul.f32 %v1826, %v1926
    %v1931 = vmul.f32 %v1827, %v1927
    %v1932 = vmul.f32 %v1828, %v1928
    %v1933 = vmul.f32 %v1829, %v1929
    %1934 = vadd.xlane.f32.xlu0 %v1930
    %v1935 = vpop.xlane.xlu0 %1934
    %1936 = vadd.xlane.f32.xlu0 %v1931
    %v1937 = vpop.xlane.xlu0 %1936
    %1938 = vadd.xlane.f32.xlu0 %v1932
    %v1939 = vpop.xlane.xlu0 %1938
    %1940 = vadd.xlane.f32.xlu0 %v1933
    %v1941 = vpop.xlane.xlu0 %1940
    %v1942 = vmul.f32 %v1935, %v661
    %v1943 = vmul.f32 %v1937, %v661
    %v1944 = vmul.f32 %v1939, %v661
    %v1945 = vmul.f32 %v1941, %v661
    %v1946 = vsub.f32 %v1930, %v1942
    %v1947 = vsub.f32 %v1931, %v1943
    %v1948 = vsub.f32 %v1932, %v1944
    %v1949 = vsub.f32 %v1933, %v1945
    %v1950 = vmul.f32 %v1946, %v1946
    %v1951 = vmul.f32 %v1947, %v1947
    %v1952 = vmul.f32 %v1948, %v1948
    %v1953 = vmul.f32 %v1949, %v1949
    %1954 = vadd.xlane.f32.xlu0 %v1950
    %v1955 = vpop.xlane.xlu0 %1954
    %1956 = vadd.xlane.f32.xlu0 %v1951
    %v1957 = vpop.xlane.xlu0 %1956
    %1958 = vadd.xlane.f32.xlu0 %v1952
    %v1959 = vpop.xlane.xlu0 %1958
    %1960 = vadd.xlane.f32.xlu0 %v1953
    %v1961 = vpop.xlane.xlu0 %1960
    %v1962 = vmul.f32 %v1955, %v661
    %v1963 = vmul.f32 %v1957, %v661
    %v1964 = vmul.f32 %v1959, %v661
    %v1965 = vmul.f32 %v1961, %v661
    %v1966 = vadd.f32 %v1962, 1e-05
    %v1967 = vadd.f32 %v1963, 1e-05
    %v1968 = vadd.f32 %v1964, 1e-05
    %v1969 = vadd.f32 %v1965, 1e-05
    %v1970 = vrsqrt.pop %v1966
    %v1971 = vrsqrt.pop %v1967
    %v1972 = vrsqrt.pop %v1968
    %v1973 = vrsqrt.pop %v1969
    %v1974 = vmul.f32 %v1946, %v1970
    %v1975 = vmul.f32 %v1947, %v1971
    %v1976 = vmul.f32 %v1948, %v1972
    %v1977 = vmul.f32 %v1949, %v1973
    %v1978 = vld [vmem:[%s14] sm:$0x1]
    %v1980 = vlaneseq
    %v1981 = vshrl.u32 %v1980, 7
    %v1982 = vsub.s32 0, %v1981
    %v1983 = vrot.slane %v1978, %v1982
    %v1985 = vmul.f32 %v1974, %v1983
    %v1986 = vmul.f32 %v1975, %v1983
    %v1987 = vmul.f32 %v1976, %v1983
    %v1988 = vmul.f32 %v1977, %v1983
    %v1989 = vld [vmem:[%s15] sm:$0x1]
    %v1991 = vlaneseq
    %v1992 = vshrl.u32 %v1991, 7
    %v1993 = vsub.s32 0, %v1992
    %v1994 = vrot.slane %v1989, %v1993
    %v1996 = vadd.f32 %v1985, %v1994
    %v1997 = vadd.f32 %v1986, %v1994
    %v1998 = vadd.f32 %v1987, %v1994
    %v1999 = vadd.f32 %v1988, %v1994
    %v2000 = vpack.c.bf16 %v1997, %v1996
    %v2001 = vpack.c.bf16 %v1999, %v1998
    %v2002 = vld [vmem:[%s16] sm:$0xff]
    %v2003 = vld [vmem:[%s16 + $0x8] sm:$0xff]
    %v2004 = vld [vmem:[%s16 + $0x10] sm:$0xff]
    %v2005 = vld [vmem:[%s16 + $0x18] sm:$0xff]
    %v2006 = vld [vmem:[%s16 + $0x20] sm:$0xff]
    %v2007 = vld [vmem:[%s16 + $0x28] sm:$0xff]
    %v2008 = vld [vmem:[%s16 + $0x30] sm:$0xff]
    %v2009 = vld [vmem:[%s16 + $0x38] sm:$0xff]
    %v2010 = vld [vmem:[%s16 + $0x40] sm:$0xff]
    %v2011 = vld [vmem:[%s16 + $0x48] sm:$0xff]
    %v2012 = vld [vmem:[%s16 + $0x50] sm:$0xff]
    %v2013 = vld [vmem:[%s16 + $0x58] sm:$0xff]
    %v2014 = vld [vmem:[%s16 + $0x60] sm:$0xff]
    %v2015 = vld [vmem:[%s16 + $0x68] sm:$0xff]
    %v2016 = vld [vmem:[%s16 + $0x70] sm:$0xff]
    %v2017 = vld [vmem:[%s16 + $0x78] sm:$0xff]
    %v2018 = vpack.c.bf16 %v2003, %v2002
    %v2019 = vpack.c.bf16 %v2005, %v2004
    %v2020 = vpack.c.bf16 %v2007, %v2006
    %v2021 = vpack.c.bf16 %v2009, %v2008
    %v2022 = vpack.c.bf16 %v2011, %v2010
    %v2023 = vpack.c.bf16 %v2013, %v2012
    %v2024 = vpack.c.bf16 %v2015, %v2014
    %v2025 = vpack.c.bf16 %v2017, %v2016
    %v2026 = vld [vmem:[%s17] sm:$0x1]
    %v2028 = vlaneseq
    %v2029 = vshrl.u32 %v2028, 7
    %v2030 = vsub.s32 0, %v2029
    %v2031 = vrot.slane %v2026, %v2030
    %2033 = vmatprep.subr.bf16.mxu0 0
    %2034 = vmatpush1.bf16.msra.mxu0 %v2018
    %2035 = vmatprep.subr.bf16.mxu0 0
    %2036 = vmatpush1.bf16.msra.mxu0 %v2019
    %2037 = vmatprep.subr.bf16.mxu0 0
    %2038 = vmatpush1.bf16.msra.mxu0 %v2020
    %2039 = vmatprep.subr.bf16.mxu0 0
    %2040 = vmatpush1.bf16.msra.mxu0 %v2021
    %2041 = vmatprep.subr.bf16.mxu0 0
    %2042 = vmatpush1.bf16.msra.mxu0 %v2022
    %2043 = vmatprep.subr.bf16.mxu0 0
    %2044 = vmatpush1.bf16.msra.mxu0 %v2023
    %2045 = vmatprep.subr.bf16.mxu0 0
    %2046 = vmatpush1.bf16.msra.mxu0 %v2024
    %2047 = vmatprep.subr.bf16.mxu0 0
    %2048 = vmatpush1.bf16.msra.mxu0 %v2025
    %2049 = vmatprep.subr.bf16.mxu0 0
    %2050 = vmatpush1.bf16.msra.mxu0 0
    %2051 = vmatprep.subr.bf16.mxu0 0
    %2052 = vmatpush1.bf16.msra.mxu0 0
    %2053 = vmatprep.subr.bf16.mxu0 0
    %2054 = vmatpush1.bf16.msra.mxu0 0
    %2055 = vmatprep.subr.bf16.mxu0 0
    %2056 = vmatpush1.bf16.msra.mxu0 0
    %2057 = vmatprep.subr.bf16.mxu0 0
    %2058 = vmatpush1.bf16.msra.mxu0 0
    %2059 = vmatprep.subr.bf16.mxu0 0
    %2060 = vmatpush1.bf16.msra.mxu0 0
    %2061 = vmatprep.subr.bf16.mxu0 0
    %2062 = vmatpush1.bf16.msra.mxu0 0
    %2063 = vmatprep.subr.bf16.mxu0 0
    %2064 = vmatpush1.bf16.msra.mxu0 0
    %2065 = vmatprep.mubr.bf16.mxu0 0
    %2066 = vmatmul.mubr.bf16.gmra.mrb[0].mxu0 %v2000
    %v2067 = vpop.f32.mrb[0].mxu0
    %v2068 = vadd.f32 %v2031, %v2067
    %v2069 = vpop.f32.mrb[0].mxu0
    %v2070 = vpop.f32.mrb[0].mxu0
    %v2071 = vadd.f32 %v2031, %v2070
    %v2072 = vpop.f32.mrb[0].mxu0
    %2073 = vmatprep.mubr.bf16.mxu0 0
    %2074 = vmatmul.mubr.bf16.gmra.mrb[0].mxu0 %v2001
    %v2075 = vpop.f32.mrb[0].mxu0
    %v2076 = vadd.f32 %v2031, %v2075
    %v2077 = vpop.f32.mrb[0].mxu0
    %v2078 = vpop.f32.mrb[0].mxu0
    %v2079 = vadd.f32 %v2031, %v2078
    %v2080 = vpop.f32.mrb[0].mxu0
    %2081 = vdwg.mxu0
    %v2082 = vtanh.pop %v2068
    %v2083 = vtanh.pop %v2071
    %v2084 = vtanh.pop %v2076
    %v2085 = vtanh.pop %v2079
    %v2086 = vpack.c.bf16 %v2083, %v2082
    %v2087 = vpack.c.bf16 %v2085, %v2084
    %v2088 = vld [vmem:[%s18] sm:$0xff]
    %v2089 = vld [vmem:[%s18 + $0x8] sm:$0xff]
    %v2090 = vld [vmem:[%s18 + $0x10] sm:$0xff]
    %v2091 = vld [vmem:[%s18 + $0x18] sm:$0xff]
    %v2092 = vld [vmem:[%s18 + $0x20] sm:$0xff]
    %v2093 = vld [vmem:[%s18 + $0x28] sm:$0xff]
    %v2094 = vld [vmem:[%s18 + $0x30] sm:$0xff]
    %v2095 = vld [vmem:[%s18 + $0x38] sm:$0xff]
    %v2096 = vld [vmem:[%s18 + $0x40] sm:$0xff]
    %v2097 = vld [vmem:[%s18 + $0x48] sm:$0xff]
    %v2098 = vld [vmem:[%s18 + $0x50] sm:$0xff]
    %v2099 = vld [vmem:[%s18 + $0x58] sm:$0xff]
    %v2100 = vld [vmem:[%s18 + $0x60] sm:$0xff]
    %v2101 = vld [vmem:[%s18 + $0x68] sm:$0xff]
    %v2102 = vld [vmem:[%s18 + $0x70] sm:$0xff]
    %v2103 = vld [vmem:[%s18 + $0x78] sm:$0xff]
    %v2104 = vld [vmem:[%s18 + $0x80] sm:$0xff]
    %v2105 = vld [vmem:[%s18 + $0x88] sm:$0xff]
    %v2106 = vld [vmem:[%s18 + $0x90] sm:$0xff]
    %v2107 = vld [vmem:[%s18 + $0x98] sm:$0xff]
    %v2108 = vld [vmem:[%s18 + $0xa0] sm:$0xff]
    %v2109 = vld [vmem:[%s18 + $0xa8] sm:$0xff]
    %v2110 = vld [vmem:[%s18 + $0xb0] sm:$0xff]
    %v2111 = vld [vmem:[%s18 + $0xb8] sm:$0xff]
    %v2112 = vld [vmem:[%s18 + $0xc0] sm:$0xff]
    %v2113 = vld [vmem:[%s18 + $0xc8] sm:$0xff]
    %v2114 = vld [vmem:[%s18 + $0xd0] sm:$0xff]
    %v2115 = vld [vmem:[%s18 + $0xd8] sm:$0xff]
    %v2116 = vld [vmem:[%s18 + $0xe0] sm:$0xff]
    %v2117 = vld [vmem:[%s18 + $0xe8] sm:$0xff]
    %v2118 = vld [vmem:[%s18 + $0xf0] sm:$0xff]
    %v2119 = vld [vmem:[%s18 + $0xf8] sm:$0xff]
    %v2120 = vld [vmem:[%s18 + $0x100] sm:$0xff]
    %v2121 = vld [vmem:[%s18 + $0x108] sm:$0xff]
    %v2122 = vld [vmem:[%s18 + $0x110] sm:$0xff]
    %v2123 = vld [vmem:[%s18 + $0x118] sm:$0xff]
    %v2124 = vld [vmem:[%s18 + $0x120] sm:$0xff]
    %v2125 = vld [vmem:[%s18 + $0x128] sm:$0xff]
    %v2126 = vld [vmem:[%s18 + $0x130] sm:$0xff]
    %v2127 = vld [vmem:[%s18 + $0x138] sm:$0xff]
    %v2128 = vld [vmem:[%s18 + $0x140] sm:$0xff]
    %v2129 = vld [vmem:[%s18 + $0x148] sm:$0xff]
    %v2130 = vld [vmem:[%s18 + $0x150] sm:$0xff]
    %v2131 = vld [vmem:[%s18 + $0x158] sm:$0xff]
    %v2132 = vld [vmem:[%s18 + $0x160] sm:$0xff]
    %v2133 = vld [vmem:[%s18 + $0x168] sm:$0xff]
    %v2134 = vld [vmem:[%s18 + $0x170] sm:$0xff]
    %v2135 = vld [vmem:[%s18 + $0x178] sm:$0xff]
    %v2136 = vld [vmem:[%s18 + $0x180] sm:$0xff]
    %v2137 = vld [vmem:[%s18 + $0x188] sm:$0xff]
    %v2138 = vld [vmem:[%s18 + $0x190] sm:$0xff]
    %v2139 = vld [vmem:[%s18 + $0x198] sm:$0xff]
    %v2140 = vld [vmem:[%s18 + $0x1a0] sm:$0xff]
    %v2141 = vld [vmem:[%s18 + $0x1a8] sm:$0xff]
    %v2142 = vld [vmem:[%s18 + $0x1b0] sm:$0xff]
    %v2143 = vld [vmem:[%s18 + $0x1b8] sm:$0xff]
    %v2144 = vld [vmem:[%s18 + $0x1c0] sm:$0xff]
    %v2145 = vld [vmem:[%s18 + $0x1c8] sm:$0xff]
    %v2146 = vld [vmem:[%s18 + $0x1d0] sm:$0xff]
    %v2147 = vld [vmem:[%s18 + $0x1d8] sm:$0xff]
    %v2148 = vld [vmem:[%s18 + $0x1e0] sm:$0xff]
    %v2149 = vld [vmem:[%s18 + $0x1e8] sm:$0xff]
    %v2150 = vld [vmem:[%s18 + $0x1f0] sm:$0xff]
    %v2151 = vld [vmem:[%s18 + $0x1f8] sm:$0xff]
    %v2152 = vld [vmem:[%s18 + $0x200] sm:$0xff]
    %v2153 = vld [vmem:[%s18 + $0x208] sm:$0xff]
    %v2154 = vld [vmem:[%s18 + $0x210] sm:$0xff]
    %v2155 = vld [vmem:[%s18 + $0x218] sm:$0xff]
    %v2156 = vld [vmem:[%s18 + $0x220] sm:$0xff]
    %v2157 = vld [vmem:[%s18 + $0x228] sm:$0xff]
    %v2158 = vld [vmem:[%s18 + $0x230] sm:$0xff]
    %v2159 = vld [vmem:[%s18 + $0x238] sm:$0xff]
    %v2160 = vld [vmem:[%s18 + $0x240] sm:$0xff]
    %v2161 = vld [vmem:[%s18 + $0x248] sm:$0xff]
    %v2162 = vld [vmem:[%s18 + $0x250] sm:$0xff]
    %v2163 = vld [vmem:[%s18 + $0x258] sm:$0xff]
    %v2164 = vld [vmem:[%s18 + $0x260] sm:$0xff]
    %v2165 = vld [vmem:[%s18 + $0x268] sm:$0xff]
    %v2166 = vld [vmem:[%s18 + $0x270] sm:$0xff]
    %v2167 = vld [vmem:[%s18 + $0x278] sm:$0xff]
    %v2168 = vld [vmem:[%s18 + $0x280] sm:$0xff]
    %v2169 = vld [vmem:[%s18 + $0x288] sm:$0xff]
    %v2170 = vld [vmem:[%s18 + $0x290] sm:$0xff]
    %v2171 = vld [vmem:[%s18 + $0x298] sm:$0xff]
    %v2172 = vld [vmem:[%s18 + $0x2a0] sm:$0xff]
    %v2173 = vld [vmem:[%s18 + $0x2a8] sm:$0xff]
    %v2174 = vld [vmem:[%s18 + $0x2b0] sm:$0xff]
    %v2175 = vld [vmem:[%s18 + $0x2b8] sm:$0xff]
    %v2176 = vld [vmem:[%s18 + $0x2c0] sm:$0xff]
    %v2177 = vld [vmem:[%s18 + $0x2c8] sm:$0xff]
    %v2178 = vld [vmem:[%s18 + $0x2d0] sm:$0xff]
    %v2179 = vld [vmem:[%s18 + $0x2d8] sm:$0xff]
    %v2180 = vld [vmem:[%s18 + $0x2e0] sm:$0xff]
    %v2181 = vld [vmem:[%s18 + $0x2e8] sm:$0xff]
    %v2182 = vld [vmem:[%s18 + $0x2f0] sm:$0xff]
    %v2183 = vld [vmem:[%s18 + $0x2f8] sm:$0xff]
    %v2184 = vld [vmem:[%s18 + $0x300] sm:$0xff]
    %v2185 = vld [vmem:[%s18 + $0x308] sm:$0xff]
    %v2186 = vld [vmem:[%s18 + $0x310] sm:$0xff]
    %v2187 = vld [vmem:[%s18 + $0x318] sm:$0xff]
    %v2188 = vld [vmem:[%s18 + $0x320] sm:$0xff]
    %v2189 = vld [vmem:[%s18 + $0x328] sm:$0xff]
    %v2190 = vld [vmem:[%s18 + $0x330] sm:$0xff]
    %v2191 = vld [vmem:[%s18 + $0x338] sm:$0xff]
    %v2192 = vld [vmem:[%s18 + $0x340] sm:$0xff]
    %v2193 = vld [vmem:[%s18 + $0x348] sm:$0xff]
    %v2194 = vld [vmem:[%s18 + $0x350] sm:$0xff]
    %v2195 = vld [vmem:[%s18 + $0x358] sm:$0xff]
    %v2196 = vld [vmem:[%s18 + $0x360] sm:$0xff]
    %v2197 = vld [vmem:[%s18 + $0x368] sm:$0xff]
    %v2198 = vld [vmem:[%s18 + $0x370] sm:$0xff]
    %v2199 = vld [vmem:[%s18 + $0x378] sm:$0xff]
    %v2200 = vld [vmem:[%s18 + $0x380] sm:$0xff]
    %v2201 = vld [vmem:[%s18 + $0x388] sm:$0xff]
    %v2202 = vld [vmem:[%s18 + $0x390] sm:$0xff]
    %v2203 = vld [vmem:[%s18 + $0x398] sm:$0xff]
    %v2204 = vld [vmem:[%s18 + $0x3a0] sm:$0xff]
    %v2205 = vld [vmem:[%s18 + $0x3a8] sm:$0xff]
    %v2206 = vld [vmem:[%s18 + $0x3b0] sm:$0xff]
    %v2207 = vld [vmem:[%s18 + $0x3b8] sm:$0xff]
    %v2208 = vld [vmem:[%s18 + $0x3c0] sm:$0xff]
    %v2209 = vld [vmem:[%s18 + $0x3c8] sm:$0xff]
    %v2210 = vld [vmem:[%s18 + $0x3d0] sm:$0xff]
    %v2211 = vld [vmem:[%s18 + $0x3d8] sm:$0xff]
    %v2212 = vld [vmem:[%s18 + $0x3e0] sm:$0xff]
    %v2213 = vld [vmem:[%s18 + $0x3e8] sm:$0xff]
    %v2214 = vld [vmem:[%s18 + $0x3f0] sm:$0xff]
    %v2215 = vld [vmem:[%s18 + $0x3f8] sm:$0xff]
    %v2216 = vld [vmem:[%s18 + $0x400] sm:$0xff]
    %v2217 = vld [vmem:[%s18 + $0x408] sm:$0xff]
    %v2218 = vld [vmem:[%s18 + $0x410] sm:$0xff]
    %v2219 = vld [vmem:[%s18 + $0x418] sm:$0xff]
    %v2220 = vld [vmem:[%s18 + $0x420] sm:$0xff]
    %v2221 = vld [vmem:[%s18 + $0x428] sm:$0xff]
    %v2222 = vld [vmem:[%s18 + $0x430] sm:$0xff]
    %v2223 = vld [vmem:[%s18 + $0x438] sm:$0xff]
    %v2224 = vld [vmem:[%s18 + $0x440] sm:$0xff]
    %v2225 = vld [vmem:[%s18 + $0x448] sm:$0xff]
    %v2226 = vld [vmem:[%s18 + $0x450] sm:$0xff]
    %v2227 = vld [vmem:[%s18 + $0x458] sm:$0xff]
    %v2228 = vld [vmem:[%s18 + $0x460] sm:$0xff]
    %v2229 = vld [vmem:[%s18 + $0x468] sm:$0xff]
    %v2230 = vld [vmem:[%s18 + $0x470] sm:$0xff]
    %v2231 = vld [vmem:[%s18 + $0x478] sm:$0xff]
    %v2232 = vld [vmem:[%s18 + $0x480] sm:$0xff]
    %v2233 = vld [vmem:[%s18 + $0x488] sm:$0xff]
    %v2234 = vld [vmem:[%s18 + $0x490] sm:$0xff]
    %v2235 = vld [vmem:[%s18 + $0x498] sm:$0xff]
    %v2236 = vld [vmem:[%s18 + $0x4a0] sm:$0xff]
    %v2237 = vld [vmem:[%s18 + $0x4a8] sm:$0xff]
    %v2238 = vld [vmem:[%s18 + $0x4b0] sm:$0xff]
    %v2239 = vld [vmem:[%s18 + $0x4b8] sm:$0xff]
    %v2240 = vld [vmem:[%s18 + $0x4c0] sm:$0xff]
    %v2241 = vld [vmem:[%s18 + $0x4c8] sm:$0xff]
    %v2242 = vld [vmem:[%s18 + $0x4d0] sm:$0xff]
    %v2243 = vld [vmem:[%s18 + $0x4d8] sm:$0xff]
    %v2244 = vld [vmem:[%s18 + $0x4e0] sm:$0xff]
    %v2245 = vld [vmem:[%s18 + $0x4e8] sm:$0xff]
    %v2246 = vld [vmem:[%s18 + $0x4f0] sm:$0xff]
    %v2247 = vld [vmem:[%s18 + $0x4f8] sm:$0xff]
    %v2248 = vld [vmem:[%s18 + $0x500] sm:$0xff]
    %v2249 = vld [vmem:[%s18 + $0x508] sm:$0xff]
    %v2250 = vld [vmem:[%s18 + $0x510] sm:$0xff]
    %v2251 = vld [vmem:[%s18 + $0x518] sm:$0xff]
    %v2252 = vld [vmem:[%s18 + $0x520] sm:$0xff]
    %v2253 = vld [vmem:[%s18 + $0x528] sm:$0xff]
    %v2254 = vld [vmem:[%s18 + $0x530] sm:$0xff]
    %v2255 = vld [vmem:[%s18 + $0x538] sm:$0xff]
    %v2256 = vld [vmem:[%s18 + $0x540] sm:$0xff]
    %v2257 = vld [vmem:[%s18 + $0x548] sm:$0xff]
    %v2258 = vld [vmem:[%s18 + $0x550] sm:$0xff]
    %v2259 = vld [vmem:[%s18 + $0x558] sm:$0xff]
    %v2260 = vld [vmem:[%s18 + $0x560] sm:$0xff]
    %v2261 = vld [vmem:[%s18 + $0x568] sm:$0xff]
    %v2262 = vld [vmem:[%s18 + $0x570] sm:$0xff]
    %v2263 = vld [vmem:[%s18 + $0x578] sm:$0xff]
    %v2264 = vld [vmem:[%s18 + $0x580] sm:$0xff]
    %v2265 = vld [vmem:[%s18 + $0x588] sm:$0xff]
    %v2266 = vld [vmem:[%s18 + $0x590] sm:$0xff]
    %v2267 = vld [vmem:[%s18 + $0x598] sm:$0xff]
    %v2268 = vld [vmem:[%s18 + $0x5a0] sm:$0xff]
    %v2269 = vld [vmem:[%s18 + $0x5a8] sm:$0xff]
    %v2270 = vld [vmem:[%s18 + $0x5b0] sm:$0xff]
    %v2271 = vld [vmem:[%s18 + $0x5b8] sm:$0xff]
    %v2272 = vld [vmem:[%s18 + $0x5c0] sm:$0xff]
    %v2273 = vld [vmem:[%s18 + $0x5c8] sm:$0xff]
    %v2274 = vld [vmem:[%s18 + $0x5d0] sm:$0xff]
    %v2275 = vld [vmem:[%s18 + $0x5d8] sm:$0xff]
    %v2276 = vld [vmem:[%s18 + $0x5e0] sm:$0xff]
    %v2277 = vld [vmem:[%s18 + $0x5e8] sm:$0xff]
    %v2278 = vld [vmem:[%s18 + $0x5f0] sm:$0xff]
    %v2279 = vld [vmem:[%s18 + $0x5f8] sm:$0xff]
    %v2280 = vld [vmem:[%s18 + $0x600] sm:$0xff]
    %v2281 = vld [vmem:[%s18 + $0x608] sm:$0xff]
    %v2282 = vld [vmem:[%s18 + $0x610] sm:$0xff]
    %v2283 = vld [vmem:[%s18 + $0x618] sm:$0xff]
    %v2284 = vld [vmem:[%s18 + $0x620] sm:$0xff]
    %v2285 = vld [vmem:[%s18 + $0x628] sm:$0xff]
    %v2286 = vld [vmem:[%s18 + $0x630] sm:$0xff]
    %v2287 = vld [vmem:[%s18 + $0x638] sm:$0xff]
    %v2288 = vld [vmem:[%s18 + $0x640] sm:$0xff]
    %v2289 = vld [vmem:[%s18 + $0x648] sm:$0xff]
    %v2290 = vld [vmem:[%s18 + $0x650] sm:$0xff]
    %v2291 = vld [vmem:[%s18 + $0x658] sm:$0xff]
    %v2292 = vld [vmem:[%s18 + $0x660] sm:$0xff]
    %v2293 = vld [vmem:[%s18 + $0x668] sm:$0xff]
    %v2294 = vld [vmem:[%s18 + $0x670] sm:$0xff]
    %v2295 = vld [vmem:[%s18 + $0x678] sm:$0xff]
    %v2296 = vld [vmem:[%s18 + $0x680] sm:$0xff]
    %v2297 = vld [vmem:[%s18 + $0x688] sm:$0xff]
    %v2298 = vld [vmem:[%s18 + $0x690] sm:$0xff]
    %v2299 = vld [vmem:[%s18 + $0x698] sm:$0xff]
    %v2300 = vld [vmem:[%s18 + $0x6a0] sm:$0xff]
    %v2301 = vld [vmem:[%s18 + $0x6a8] sm:$0xff]
    %v2302 = vld [vmem:[%s18 + $0x6b0] sm:$0xff]
    %v2303 = vld [vmem:[%s18 + $0x6b8] sm:$0xff]
    %v2304 = vld [vmem:[%s18 + $0x6c0] sm:$0xff]
    %v2305 = vld [vmem:[%s18 + $0x6c8] sm:$0xff]
    %v2306 = vld [vmem:[%s18 + $0x6d0] sm:$0xff]
    %v2307 = vld [vmem:[%s18 + $0x6d8] sm:$0xff]
    %v2308 = vld [vmem:[%s18 + $0x6e0] sm:$0xff]
    %v2309 = vld [vmem:[%s18 + $0x6e8] sm:$0xff]
    %v2310 = vld [vmem:[%s18 + $0x6f0] sm:$0xff]
    %v2311 = vld [vmem:[%s18 + $0x6f8] sm:$0xff]
    %v2312 = vld [vmem:[%s18 + $0x700] sm:$0xff]
    %v2313 = vld [vmem:[%s18 + $0x708] sm:$0xff]
    %v2314 = vld [vmem:[%s18 + $0x710] sm:$0xff]
    %v2315 = vld [vmem:[%s18 + $0x718] sm:$0xff]
    %v2316 = vld [vmem:[%s18 + $0x720] sm:$0xff]
    %v2317 = vld [vmem:[%s18 + $0x728] sm:$0xff]
    %v2318 = vld [vmem:[%s18 + $0x730] sm:$0xff]
    %v2319 = vld [vmem:[%s18 + $0x738] sm:$0xff]
    %v2320 = vld [vmem:[%s18 + $0x740] sm:$0xff]
    %v2321 = vld [vmem:[%s18 + $0x748] sm:$0xff]
    %v2322 = vld [vmem:[%s18 + $0x750] sm:$0xff]
    %v2323 = vld [vmem:[%s18 + $0x758] sm:$0xff]
    %v2324 = vld [vmem:[%s18 + $0x760] sm:$0xff]
    %v2325 = vld [vmem:[%s18 + $0x768] sm:$0xff]
    %v2326 = vld [vmem:[%s18 + $0x770] sm:$0xff]
    %v2327 = vld [vmem:[%s18 + $0x778] sm:$0xff]
    %v2328 = vld [vmem:[%s18 + $0x780] sm:$0xff]
    %v2329 = vld [vmem:[%s18 + $0x788] sm:$0xff]
    %v2330 = vld [vmem:[%s18 + $0x790] sm:$0xff]
    %v2331 = vld [vmem:[%s18 + $0x798] sm:$0xff]
    %v2332 = vld [vmem:[%s18 + $0x7a0] sm:$0xff]
    %v2333 = vld [vmem:[%s18 + $0x7a8] sm:$0xff]
    %v2334 = vld [vmem:[%s18 + $0x7b0] sm:$0xff]
    %v2335 = vld [vmem:[%s18 + $0x7b8] sm:$0xff]
    %v2336 = vld [vmem:[%s18 + $0x7c0] sm:$0xff]
    %v2337 = vld [vmem:[%s18 + $0x7c8] sm:$0xff]
    %v2338 = vld [vmem:[%s18 + $0x7d0] sm:$0xff]
    %v2339 = vld [vmem:[%s18 + $0x7d8] sm:$0xff]
    %v2340 = vld [vmem:[%s18 + $0x7e0] sm:$0xff]
    %v2341 = vld [vmem:[%s18 + $0x7e8] sm:$0xff]
    %v2342 = vld [vmem:[%s18 + $0x7f0] sm:$0xff]
    %v2343 = vld [vmem:[%s18 + $0x7f8] sm:$0xff]
    %v2344 = vld [vmem:[%s18 + $0x800] sm:$0xff]
    %v2345 = vld [vmem:[%s18 + $0x808] sm:$0xff]
    %v2346 = vld [vmem:[%s18 + $0x810] sm:$0xff]
    %v2347 = vld [vmem:[%s18 + $0x818] sm:$0xff]
    %v2348 = vld [vmem:[%s18 + $0x820] sm:$0xff]
    %v2349 = vld [vmem:[%s18 + $0x828] sm:$0xff]
    %v2350 = vld [vmem:[%s18 + $0x830] sm:$0xff]
    %v2351 = vld [vmem:[%s18 + $0x838] sm:$0xff]
    %v2352 = vld [vmem:[%s18 + $0x840] sm:$0xff]
    %v2353 = vld [vmem:[%s18 + $0x848] sm:$0xff]
    %v2354 = vld [vmem:[%s18 + $0x850] sm:$0xff]
    %v2355 = vld [vmem:[%s18 + $0x858] sm:$0xff]
    %v2356 = vld [vmem:[%s18 + $0x860] sm:$0xff]
    %v2357 = vld [vmem:[%s18 + $0x868] sm:$0xff]
    %v2358 = vld [vmem:[%s18 + $0x870] sm:$0xff]
    %v2359 = vld [vmem:[%s18 + $0x878] sm:$0xff]
    %v2360 = vld [vmem:[%s18 + $0x880] sm:$0xff]
    %v2361 = vld [vmem:[%s18 + $0x888] sm:$0xff]
    %v2362 = vld [vmem:[%s18 + $0x890] sm:$0xff]
    %v2363 = vld [vmem:[%s18 + $0x898] sm:$0xff]
    %v2364 = vld [vmem:[%s18 + $0x8a0] sm:$0xff]
    %v2365 = vld [vmem:[%s18 + $0x8a8] sm:$0xff]
    %v2366 = vld [vmem:[%s18 + $0x8b0] sm:$0xff]
    %v2367 = vld [vmem:[%s18 + $0x8b8] sm:$0xff]
    %v2368 = vld [vmem:[%s18 + $0x8c0] sm:$0xff]
    %v2369 = vld [vmem:[%s18 + $0x8c8] sm:$0xff]
    %v2370 = vld [vmem:[%s18 + $0x8d0] sm:$0xff]
    %v2371 = vld [vmem:[%s18 + $0x8d8] sm:$0xff]
    %v2372 = vld [vmem:[%s18 + $0x8e0] sm:$0xff]
    %v2373 = vld [vmem:[%s18 + $0x8e8] sm:$0xff]
    %v2374 = vld [vmem:[%s18 + $0x8f0] sm:$0xff]
    %v2375 = vld [vmem:[%s18 + $0x8f8] sm:$0xff]
    %v2376 = vld [vmem:[%s18 + $0x900] sm:$0xff]
    %v2377 = vld [vmem:[%s18 + $0x908] sm:$0xff]
    %v2378 = vld [vmem:[%s18 + $0x910] sm:$0xff]
    %v2379 = vld [vmem:[%s18 + $0x918] sm:$0xff]
    %v2380 = vld [vmem:[%s18 + $0x920] sm:$0xff]
    %v2381 = vld [vmem:[%s18 + $0x928] sm:$0xff]
    %v2382 = vld [vmem:[%s18 + $0x930] sm:$0xff]
    %v2383 = vld [vmem:[%s18 + $0x938] sm:$0xff]
    %v2384 = vld [vmem:[%s18 + $0x940] sm:$0xff]
    %v2385 = vld [vmem:[%s18 + $0x948] sm:$0xff]
    %v2386 = vld [vmem:[%s18 + $0x950] sm:$0xff]
    %v2387 = vld [vmem:[%s18 + $0x958] sm:$0xff]
    %v2388 = vld [vmem:[%s18 + $0x960] sm:$0xff]
    %v2389 = vld [vmem:[%s18 + $0x968] sm:$0xff]
    %v2390 = vld [vmem:[%s18 + $0x970] sm:$0xff]
    %v2391 = vld [vmem:[%s18 + $0x978] sm:$0xff]
    %v2392 = vld [vmem:[%s18 + $0x980] sm:$0xff]
    %v2393 = vld [vmem:[%s18 + $0x988] sm:$0xff]
    %v2394 = vld [vmem:[%s18 + $0x990] sm:$0xff]
    %v2395 = vld [vmem:[%s18 + $0x998] sm:$0xff]
    %v2396 = vld [vmem:[%s18 + $0x9a0] sm:$0xff]
    %v2397 = vld [vmem:[%s18 + $0x9a8] sm:$0xff]
    %v2398 = vld [vmem:[%s18 + $0x9b0] sm:$0xff]
    %v2399 = vld [vmem:[%s18 + $0x9b8] sm:$0xff]
    %v2400 = vld [vmem:[%s18 + $0x9c0] sm:$0xff]
    %v2401 = vld [vmem:[%s18 + $0x9c8] sm:$0xff]
    %v2402 = vld [vmem:[%s18 + $0x9d0] sm:$0xff]
    %v2403 = vld [vmem:[%s18 + $0x9d8] sm:$0xff]
    %v2404 = vld [vmem:[%s18 + $0x9e0] sm:$0xff]
    %v2405 = vld [vmem:[%s18 + $0x9e8] sm:$0xff]
    %v2406 = vld [vmem:[%s18 + $0x9f0] sm:$0xff]
    %v2407 = vld [vmem:[%s18 + $0x9f8] sm:$0xff]
    %v2408 = vld [vmem:[%s18 + $0xa00] sm:$0xff]
    %v2409 = vld [vmem:[%s18 + $0xa08] sm:$0xff]
    %v2410 = vld [vmem:[%s18 + $0xa10] sm:$0xff]
    %v2411 = vld [vmem:[%s18 + $0xa18] sm:$0xff]
    %v2412 = vld [vmem:[%s18 + $0xa20] sm:$0xff]
    %v2413 = vld [vmem:[%s18 + $0xa28] sm:$0xff]
    %v2414 = vld [vmem:[%s18 + $0xa30] sm:$0xff]
    %v2415 = vld [vmem:[%s18 + $0xa38] sm:$0xff]
    %v2416 = vld [vmem:[%s18 + $0xa40] sm:$0xff]
    %v2417 = vld [vmem:[%s18 + $0xa48] sm:$0xff]
    %v2418 = vld [vmem:[%s18 + $0xa50] sm:$0xff]
    %v2419 = vld [vmem:[%s18 + $0xa58] sm:$0xff]
    %v2420 = vld [vmem:[%s18 + $0xa60] sm:$0xff]
    %v2421 = vld [vmem:[%s18 + $0xa68] sm:$0xff]
    %v2422 = vld [vmem:[%s18 + $0xa70] sm:$0xff]
    %v2423 = vld [vmem:[%s18 + $0xa78] sm:$0xff]
    %v2424 = vld [vmem:[%s18 + $0xa80] sm:$0xff]
    %v2425 = vld [vmem:[%s18 + $0xa88] sm:$0xff]
    %v2426 = vld [vmem:[%s18 + $0xa90] sm:$0xff]
    %v2427 = vld [vmem:[%s18 + $0xa98] sm:$0xff]
    %v2428 = vld [vmem:[%s18 + $0xaa0] sm:$0xff]
    %v2429 = vld [vmem:[%s18 + $0xaa8] sm:$0xff]
    %v2430 = vld [vmem:[%s18 + $0xab0] sm:$0xff]
    %v2431 = vld [vmem:[%s18 + $0xab8] sm:$0xff]
    %v2432 = vld [vmem:[%s18 + $0xac0] sm:$0xff]
    %v2433 = vld [vmem:[%s18 + $0xac8] sm:$0xff]
    %v2434 = vld [vmem:[%s18 + $0xad0] sm:$0xff]
    %v2435 = vld [vmem:[%s18 + $0xad8] sm:$0xff]
    %v2436 = vld [vmem:[%s18 + $0xae0] sm:$0xff]
    %v2437 = vld [vmem:[%s18 + $0xae8] sm:$0xff]
    %v2438 = vld [vmem:[%s18 + $0xaf0] sm:$0xff]
    %v2439 = vld [vmem:[%s18 + $0xaf8] sm:$0xff]
    %v2440 = vld [vmem:[%s18 + $0xb00] sm:$0xff]
    %v2441 = vld [vmem:[%s18 + $0xb08] sm:$0xff]
    %v2442 = vld [vmem:[%s18 + $0xb10] sm:$0xff]
    %v2443 = vld [vmem:[%s18 + $0xb18] sm:$0xff]
    %v2444 = vld [vmem:[%s18 + $0xb20] sm:$0xff]
    %v2445 = vld [vmem:[%s18 + $0xb28] sm:$0xff]
    %v2446 = vld [vmem:[%s18 + $0xb30] sm:$0xff]
    %v2447 = vld [vmem:[%s18 + $0xb38] sm:$0xff]
    %v2448 = vld [vmem:[%s18 + $0xb40] sm:$0xff]
    %v2449 = vld [vmem:[%s18 + $0xb48] sm:$0xff]
    %v2450 = vld [vmem:[%s18 + $0xb50] sm:$0xff]
    %v2451 = vld [vmem:[%s18 + $0xb58] sm:$0xff]
    %v2452 = vld [vmem:[%s18 + $0xb60] sm:$0xff]
    %v2453 = vld [vmem:[%s18 + $0xb68] sm:$0xff]
    %v2454 = vld [vmem:[%s18 + $0xb70] sm:$0xff]
    %v2455 = vld [vmem:[%s18 + $0xb78] sm:$0xff]
    %v2456 = vld [vmem:[%s18 + $0xb80] sm:$0xff]
    %v2457 = vld [vmem:[%s18 + $0xb88] sm:$0xff]
    %v2458 = vld [vmem:[%s18 + $0xb90] sm:$0xff]
    %v2459 = vld [vmem:[%s18 + $0xb98] sm:$0xff]
    %v2460 = vld [vmem:[%s18 + $0xba0] sm:$0xff]
    %v2461 = vld [vmem:[%s18 + $0xba8] sm:$0xff]
    %v2462 = vld [vmem:[%s18 + $0xbb0] sm:$0xff]
    %v2463 = vld [vmem:[%s18 + $0xbb8] sm:$0xff]
    %v2464 = vld [vmem:[%s18 + $0xbc0] sm:$0xff]
    %v2465 = vld [vmem:[%s18 + $0xbc8] sm:$0xff]
    %v2466 = vld [vmem:[%s18 + $0xbd0] sm:$0xff]
    %v2467 = vld [vmem:[%s18 + $0xbd8] sm:$0xff]
    %v2468 = vld [vmem:[%s18 + $0xbe0] sm:$0xff]
    %v2469 = vld [vmem:[%s18 + $0xbe8] sm:$0xff]
    %v2470 = vld [vmem:[%s18 + $0xbf0] sm:$0xff]
    %v2471 = vld [vmem:[%s18 + $0xbf8] sm:$0xff]
    %v2472 = vpack.c.bf16 %v2100, %v2088
    %v2473 = vpack.c.bf16 %v2101, %v2089
    %v2474 = vpack.c.bf16 %v2102, %v2090
    %v2475 = vpack.c.bf16 %v2103, %v2091
    %v2476 = vpack.c.bf16 %v2104, %v2092
    %v2477 = vpack.c.bf16 %v2105, %v2093
    %v2478 = vpack.c.bf16 %v2106, %v2094
    %v2479 = vpack.c.bf16 %v2107, %v2095
    %v2480 = vpack.c.bf16 %v2108, %v2096
    %v2481 = vpack.c.bf16 %v2109, %v2097
    %v2482 = vpack.c.bf16 %v2110, %v2098
    %v2483 = vpack.c.bf16 %v2111, %v2099
    %v2484 = vpack.c.bf16 %v2124, %v2112
    %v2485 = vpack.c.bf16 %v2125, %v2113
    %v2486 = vpack.c.bf16 %v2126, %v2114
    %v2487 = vpack.c.bf16 %v2127, %v2115
    %v2488 = vpack.c.bf16 %v2128, %v2116
    %v2489 = vpack.c.bf16 %v2129, %v2117
    %v2490 = vpack.c.bf16 %v2130, %v2118
    %v2491 = vpack.c.bf16 %v2131, %v2119
    %v2492 = vpack.c.bf16 %v2132, %v2120
    %v2493 = vpack.c.bf16 %v2133, %v2121
    %v2494 = vpack.c.bf16 %v2134, %v2122
    %v2495 = vpack.c.bf16 %v2135, %v2123
    %v2496 = vpack.c.bf16 %v2148, %v2136
    %v2497 = vpack.c.bf16 %v2149, %v2137
    %v2498 = vpack.c.bf16 %v2150, %v2138
    %v2499 = vpack.c.bf16 %v2151, %v2139
    %v2500 = vpack.c.bf16 %v2152, %v2140
    %v2501 = vpack.c.bf16 %v2153, %v2141
    %v2502 = vpack.c.bf16 %v2154, %v2142
    %v2503 = vpack.c.bf16 %v2155, %v2143
    %v2504 = vpack.c.bf16 %v2156, %v2144
    %v2505 = vpack.c.bf16 %v2157, %v2145
    %v2506 = vpack.c.bf16 %v2158, %v2146
    %v2507 = vpack.c.bf16 %v2159, %v2147
    %v2508 = vpack.c.bf16 %v2172, %v2160
    %v2509 = vpack.c.bf16 %v2173, %v2161
    %v2510 = vpack.c.bf16 %v2174, %v2162
    %v2511 = vpack.c.bf16 %v2175, %v2163
    %v2512 = vpack.c.bf16 %v2176, %v2164
    %v2513 = vpack.c.bf16 %v2177, %v2165
    %v2514 = vpack.c.bf16 %v2178, %v2166
    %v2515 = vpack.c.bf16 %v2179, %v2167
    %v2516 = vpack.c.bf16 %v2180, %v2168
    %v2517 = vpack.c.bf16 %v2181, %v2169
    %v2518 = vpack.c.bf16 %v2182, %v2170
    %v2519 = vpack.c.bf16 %v2183, %v2171
    %v2520 = vpack.c.bf16 %v2196, %v2184
    %v2521 = vpack.c.bf16 %v2197, %v2185
    %v2522 = vpack.c.bf16 %v2198, %v2186
    %v2523 = vpack.c.bf16 %v2199, %v2187
    %v2524 = vpack.c.bf16 %v2200, %v2188
    %v2525 = vpack.c.bf16 %v2201, %v2189
    %v2526 = vpack.c.bf16 %v2202, %v2190
    %v2527 = vpack.c.bf16 %v2203, %v2191
    %v2528 = vpack.c.bf16 %v2204, %v2192
    %v2529 = vpack.c.bf16 %v2205, %v2193
    %v2530 = vpack.c.bf16 %v2206, %v2194
    %v2531 = vpack.c.bf16 %v2207, %v2195
    %v2532 = vpack.c.bf16 %v2220, %v2208
    %v2533 = vpack.c.bf16 %v2221, %v2209
    %v2534 = vpack.c.bf16 %v2222, %v2210
    %v2535 = vpack.c.bf16 %v2223, %v2211
    %v2536 = vpack.c.bf16 %v2224, %v2212
    %v2537 = vpack.c.bf16 %v2225, %v2213
    %v2538 = vpack.c.bf16 %v2226, %v2214
    %v2539 = vpack.c.bf16 %v2227, %v2215
    %v2540 = vpack.c.bf16 %v2228, %v2216
    %v2541 = vpack.c.bf16 %v2229, %v2217
    %v2542 = vpack.c.bf16 %v2230, %v2218
    %v2543 = vpack.c.bf16 %v2231, %v2219
    %v2544 = vpack.c.bf16 %v2244, %v2232
    %v2545 = vpack.c.bf16 %v2245, %v2233
    %v2546 = vpack.c.bf16 %v2246, %v2234
    %v2547 = vpack.c.bf16 %v2247, %v2235
    %v2548 = vpack.c.bf16 %v2248, %v2236
    %v2549 = vpack.c.bf16 %v2249, %v2237
    %v2550 = vpack.c.bf16 %v2250, %v2238
    %v2551 = vpack.c.bf16 %v2251, %v2239
    %v2552 = vpack.c.bf16 %v2252, %v2240
    %v2553 = vpack.c.bf16 %v2253, %v2241
    %v2554 = vpack.c.bf16 %v2254, %v2242
    %v2555 = vpack.c.bf16 %v2255, %v2243
    %v2556 = vpack.c.bf16 %v2268, %v2256
    %v2557 = vpack.c.bf16 %v2269, %v2257
    %v2558 = vpack.c.bf16 %v2270, %v2258
    %v2559 = vpack.c.bf16 %v2271, %v2259
    %v2560 = vpack.c.bf16 %v2272, %v2260
    %v2561 = vpack.c.bf16 %v2273, %v2261
    %v2562 = vpack.c.bf16 %v2274, %v2262
    %v2563 = vpack.c.bf16 %v2275, %v2263
    %v2564 = vpack.c.bf16 %v2276, %v2264
    %v2565 = vpack.c.bf16 %v2277, %v2265
    %v2566 = vpack.c.bf16 %v2278, %v2266
    %v2567 = vpack.c.bf16 %v2279, %v2267
    %v2568 = vpack.c.bf16 %v2292, %v2280
    %v2569 = vpack.c.bf16 %v2293, %v2281
    %v2570 = vpack.c.bf16 %v2294, %v2282
    %v2571 = vpack.c.bf16 %v2295, %v2283
    %v2572 = vpack.c.bf16 %v2296, %v2284
    %v2573 = vpack.c.bf16 %v2297, %v2285
    %v2574 = vpack.c.bf16 %v2298, %v2286
    %v2575 = vpack.c.bf16 %v2299, %v2287
    %v2576 = vpack.c.bf16 %v2300, %v2288
    %v2577 = vpack.c.bf16 %v2301, %v2289
    %v2578 = vpack.c.bf16 %v2302, %v2290
    %v2579 = vpack.c.bf16 %v2303, %v2291
    %v2580 = vpack.c.bf16 %v2316, %v2304
    %v2581 = vpack.c.bf16 %v2317, %v2305
    %v2582 = vpack.c.bf16 %v2318, %v2306
    %v2583 = vpack.c.bf16 %v2319, %v2307
    %v2584 = vpack.c.bf16 %v2320, %v2308
    %v2585 = vpack.c.bf16 %v2321, %v2309
    %v2586 = vpack.c.bf16 %v2322, %v2310
    %v2587 = vpack.c.bf16 %v2323, %v2311
    %v2588 = vpack.c.bf16 %v2324, %v2312
    %v2589 = vpack.c.bf16 %v2325, %v2313
    %v2590 = vpack.c.bf16 %v2326, %v2314
    %v2591 = vpack.c.bf16 %v2327, %v2315
    %v2592 = vpack.c.bf16 %v2340, %v2328
    %v2593 = vpack.c.bf16 %v2341, %v2329
    %v2594 = vpack.c.bf16 %v2342, %v2330
    %v2595 = vpack.c.bf16 %v2343, %v2331
    %v2596 = vpack.c.bf16 %v2344, %v2332
    %v2597 = vpack.c.bf16 %v2345, %v2333
    %v2598 = vpack.c.bf16 %v2346, %v2334
    %v2599 = vpack.c.bf16 %v2347, %v2335
    %v2600 = vpack.c.bf16 %v2348, %v2336
    %v2601 = vpack.c.bf16 %v2349, %v2337
    %v2602 = vpack.c.bf16 %v2350, %v2338
    %v2603 = vpack.c.bf16 %v2351, %v2339
    %v2604 = vpack.c.bf16 %v2364, %v2352
    %v2605 = vpack.c.bf16 %v2365, %v2353
    %v2606 = vpack.c.bf16 %v2366, %v2354
    %v2607 = vpack.c.bf16 %v2367, %v2355
    %v2608 = vpack.c.bf16 %v2368, %v2356
    %v2609 = vpack.c.bf16 %v2369, %v2357
    %v2610 = vpack.c.bf16 %v2370, %v2358
    %v2611 = vpack.c.bf16 %v2371, %v2359
    %v2612 = vpack.c.bf16 %v2372, %v2360
    %v2613 = vpack.c.bf16 %v2373, %v2361
    %v2614 = vpack.c.bf16 %v2374, %v2362
    %v2615 = vpack.c.bf16 %v2375, %v2363
    %v2616 = vpack.c.bf16 %v2388, %v2376
    %v2617 = vpack.c.bf16 %v2389, %v2377
    %v2618 = vpack.c.bf16 %v2390, %v2378
    %v2619 = vpack.c.bf16 %v2391, %v2379
    %v2620 = vpack.c.bf16 %v2392, %v2380
    %v2621 = vpack.c.bf16 %v2393, %v2381
    %v2622 = vpack.c.bf16 %v2394, %v2382
    %v2623 = vpack.c.bf16 %v2395, %v2383
    %v2624 = vpack.c.bf16 %v2396, %v2384
    %v2625 = vpack.c.bf16 %v2397, %v2385
    %v2626 = vpack.c.bf16 %v2398, %v2386
    %v2627 = vpack.c.bf16 %v2399, %v2387
    %v2628 = vpack.c.bf16 %v2412, %v2400
    %v2629 = vpack.c.bf16 %v2413, %v2401
    %v2630 = vpack.c.bf16 %v2414, %v2402
    %v2631 = vpack.c.bf16 %v2415, %v2403
    %v2632 = vpack.c.bf16 %v2416, %v2404
    %v2633 = vpack.c.bf16 %v2417, %v2405
    %v2634 = vpack.c.bf16 %v2418, %v2406
    %v2635 = vpack.c.bf16 %v2419, %v2407
    %v2636 = vpack.c.bf16 %v2420, %v2408
    %v2637 = vpack.c.bf16 %v2421, %v2409
    %v2638 = vpack.c.bf16 %v2422, %v2410
    %v2639 = vpack.c.bf16 %v2423, %v2411
    %v2640 = vpack.c.bf16 %v2436, %v2424
    %v2641 = vpack.c.bf16 %v2437, %v2425
    %v2642 = vpack.c.bf16 %v2438, %v2426
    %v2643 = vpack.c.bf16 %v2439, %v2427
    %v2644 = vpack.c.bf16 %v2440, %v2428
    %v2645 = vpack.c.bf16 %v2441, %v2429
    %v2646 = vpack.c.bf16 %v2442, %v2430
    %v2647 = vpack.c.bf16 %v2443, %v2431
    %v2648 = vpack.c.bf16 %v2444, %v2432
    %v2649 = vpack.c.bf16 %v2445, %v2433
    %v2650 = vpack.c.bf16 %v2446, %v2434
    %v2651 = vpack.c.bf16 %v2447, %v2435
    %v2652 = vpack.c.bf16 %v2460, %v2448
    %v2653 = vpack.c.bf16 %v2461, %v2449
    %v2654 = vpack.c.bf16 %v2462, %v2450
    %v2655 = vpack.c.bf16 %v2463, %v2451
    %v2656 = vpack.c.bf16 %v2464, %v2452
    %v2657 = vpack.c.bf16 %v2465, %v2453
    %v2658 = vpack.c.bf16 %v2466, %v2454
    %v2659 = vpack.c.bf16 %v2467, %v2455
    %v2660 = vpack.c.bf16 %v2468, %v2456
    %v2661 = vpack.c.bf16 %v2469, %v2457
    %v2662 = vpack.c.bf16 %v2470, %v2458
    %v2663 = vpack.c.bf16 %v2471, %v2459
    %2664 = vmatprep.subr.bf16.mxu0 %v2473
    %2665 = vmatpush1.bf16.msra.mxu0 %v2472
    %2666 = vmatprep.subr.bf16.mxu0 %v2485
    %2667 = vmatpush1.bf16.msra.mxu0 %v2484
    %2668 = vmatprep.subr.bf16.mxu0 %v2497
    %2669 = vmatpush1.bf16.msra.mxu0 %v2496
    %2670 = vmatprep.subr.bf16.mxu0 %v2509
    %2671 = vmatpush1.bf16.msra.mxu0 %v2508
    %2672 = vmatprep.subr.bf16.mxu0 %v2521
    %2673 = vmatpush1.bf16.msra.mxu0 %v2520
    %2674 = vmatprep.subr.bf16.mxu0 %v2533
    %2675 = vmatpush1.bf16.msra.mxu0 %v2532
    %2676 = vmatprep.subr.bf16.mxu0 %v2545
    %2677 = vmatpush1.bf16.msra.mxu0 %v2544
    %2678 = vmatprep.subr.bf16.mxu0 %v2557
    %2679 = vmatpush1.bf16.msra.mxu0 %v2556
    %2680 = vmatprep.subr.bf16.mxu0 %v2569
    %2681 = vmatpush1.bf16.msra.mxu0 %v2568
    %2682 = vmatprep.subr.bf16.mxu0 %v2581
    %2683 = vmatpush1.bf16.msra.mxu0 %v2580
    %2684 = vmatprep.subr.bf16.mxu0 %v2593
    %2685 = vmatpush1.bf16.msra.mxu0 %v2592
    %2686 = vmatprep.subr.bf16.mxu0 %v2605
    %2687 = vmatpush1.bf16.msra.mxu0 %v2604
    %2688 = vmatprep.subr.bf16.mxu0 %v2617
    %2689 = vmatpush1.bf16.msra.mxu0 %v2616
    %2690 = vmatprep.subr.bf16.mxu0 %v2629
    %2691 = vmatpush1.bf16.msra.mxu0 %v2628
    %2692 = vmatprep.subr.bf16.mxu0 %v2641
    %2693 = vmatpush1.bf16.msra.mxu0 %v2640
    %2694 = vmatprep.subr.bf16.mxu0 %v2653
    %2695 = vmatpush1.bf16.msra.mxu0 %v2652
    %2696 = vmatprep.mubr.bf16.mxu0 %v2086
    %2697 = vmatmul.mubr.bf16.gmra.mrb[0].mxu0 %v98
    %v2698 = vpop.f32.mrb[0].mxu0
    %v2699 = vadd.f32 0.0, %v2698
    %v2700 = vpop.f32.mrb[0].mxu0
    %v2701 = vadd.f32 0.0, %v2700
    %v2702 = vpop.f32.mrb[0].mxu0
    %v2703 = vadd.f32 0.0, %v2702
    %v2704 = vpop.f32.mrb[0].mxu0
    %v2705 = vadd.f32 0.0, %v2704
    %2706 = vmatprep.mubr.bf16.mxu0 %v2087
    %2707 = vmatmul.mubr.bf16.gmra.mrb[0].mxu0 %v99
    %v2708 = vpop.f32.mrb[0].mxu0
    %v2709 = vadd.f32 0.0, %v2708
    %v2710 = vpop.f32.mrb[0].mxu0
    %v2711 = vadd.f32 0.0, %v2710
    %v2712 = vpop.f32.mrb[0].mxu0
    %v2713 = vadd.f32 0.0, %v2712
    %v2714 = vpop.f32.mrb[0].mxu0
    %v2715 = vadd.f32 0.0, %v2714
    %2716 = vdwg.mxu0
    %2717 = vmatprep.subr.bf16.mxu0 %v2475
    %2718 = vmatpush1.bf16.msra.mxu0 %v2474
    %2719 = vmatprep.subr.bf16.mxu0 %v2487
    %2720 = vmatpush1.bf16.msra.mxu0 %v2486
    %2721 = vmatprep.subr.bf16.mxu0 %v2499
    %2722 = vmatpush1.bf16.msra.mxu0 %v2498
    %2723 = vmatprep.subr.bf16.mxu0 %v2511
    %2724 = vmatpush1.bf16.msra.mxu0 %v2510
    %2725 = vmatprep.subr.bf16.mxu0 %v2523
    %2726 = vmatpush1.bf16.msra.mxu0 %v2522
    %2727 = vmatprep.subr.bf16.mxu0 %v2535
    %2728 = vmatpush1.bf16.msra.mxu0 %v2534
    %2729 = vmatprep.subr.bf16.mxu0 %v2547
    %2730 = vmatpush1.bf16.msra.mxu0 %v2546
    %2731 = vmatprep.subr.bf16.mxu0 %v2559
    %2732 = vmatpush1.bf16.msra.mxu0 %v2558
    %2733 = vmatprep.subr.bf16.mxu0 %v2571
    %2734 = vmatpush1.bf16.msra.mxu0 %v2570
    %2735 = vmatprep.subr.bf16.mxu0 %v2583
    %2736 = vmatpush1.bf16.msra.mxu0 %v2582
    %2737 = vmatprep.subr.bf16.mxu0 %v2595
    %2738 = vmatpush1.bf16.msra.mxu0 %v2594
    %2739 = vmatprep.subr.bf16.mxu0 %v2607
    %2740 = vmatpush1.bf16.msra.mxu0 %v2606
    %2741 = vmatprep.subr.bf16.mxu0 %v2619
    %2742 = vmatpush1.bf16.msra.mxu0 %v2618
    %2743 = vmatprep.subr.bf16.mxu0 %v2631
    %2744 = vmatpush1.bf16.msra.mxu0 %v2630
    %2745 = vmatprep.subr.bf16.mxu0 %v2643
    %2746 = vmatpush1.bf16.msra.mxu0 %v2642
    %2747 = vmatprep.subr.bf16.mxu0 %v2655
    %2748 = vmatpush1.bf16.msra.mxu0 %v2654
    %2749 = vmatprep.mubr.bf16.mxu0 %v2086
    %2750 = vmatmul.mubr.bf16.gmra.mrb[0].mxu0 %v98
    %v2751 = vpop.f32.mrb[0].mxu0
    %v2752 = vadd.f32 0.0, %v2751
    %v2753 = vpop.f32.mrb[0].mxu0
    %v2754 = vadd.f32 0.0, %v2753
    %v2755 = vpop.f32.mrb[0].mxu0
    %v2756 = vadd.f32 0.0, %v2755
    %v2757 = vpop.f32.mrb[0].mxu0
    %v2758 = vadd.f32 0.0, %v2757
    %2759 = vmatprep.mubr.bf16.mxu0 %v2087
    %2760 = vmatmul.mubr.bf16.gmra.mrb[0].mxu0 %v99
    %v2761 = vpop.f32.mrb[0].mxu0
    %v2762 = vadd.f32 0.0, %v2761
    %v2763 = vpop.f32.mrb[0].mxu0
    %v2764 = vadd.f32 0.0, %v2763
    %v2765 = vpop.f32.mrb[0].mxu0
    %v2766 = vadd.f32 0.0, %v2765
    %v2767 = vpop.f32.mrb[0].mxu0
    %v2768 = vadd.f32 0.0, %v2767
    %2769 = vdwg.mxu0
    %2770 = vmatprep.subr.bf16.mxu0 %v2477
    %2771 = vmatpush1.bf16.msra.mxu0 %v2476
    %2772 = vmatprep.subr.bf16.mxu0 %v2489
    %2773 = vmatpush1.bf16.msra.mxu0 %v2488
    %2774 = vmatprep.subr.bf16.mxu0 %v2501
    %2775 = vmatpush1.bf16.msra.mxu0 %v2500
    %2776 = vmatprep.subr.bf16.mxu0 %v2513
    %2777 = vmatpush1.bf16.msra.mxu0 %v2512
    %2778 = vmatprep.subr.bf16.mxu0 %v2525
    %2779 = vmatpush1.bf16.msra.mxu0 %v2524
    %2780 = vmatprep.subr.bf16.mxu0 %v2537
    %2781 = vmatpush1.bf16.msra.mxu0 %v2536
    %2782 = vmatprep.subr.bf16.mxu0 %v2549
    %2783 = vmatpush1.bf16.msra.mxu0 %v2548
    %2784 = vmatprep.subr.bf16.mxu0 %v2561
    %2785 = vmatpush1.bf16.msra.mxu0 %v2560
    %2786 = vmatprep.subr.bf16.mxu0 %v2573
    %2787 = vmatpush1.bf16.msra.mxu0 %v2572
    %2788 = vmatprep.subr.bf16.mxu0 %v2585
    %2789 = vmatpush1.bf16.msra.mxu0 %v2584
    %2790 = vmatprep.subr.bf16.mxu0 %v2597
    %2791 = vmatpush1.bf16.msra.mxu0 %v2596
    %2792 = vmatprep.subr.bf16.mxu0 %v2609
    %2793 = vmatpush1.bf16.msra.mxu0 %v2608
    %2794 = vmatprep.subr.bf16.mxu0 %v2621
    %2795 = vmatpush1.bf16.msra.mxu0 %v2620
    %2796 = vmatprep.subr.bf16.mxu0 %v2633
    %2797 = vmatpush1.bf16.msra.mxu0 %v2632
    %2798 = vmatprep.subr.bf16.mxu0 %v2645
    %2799 = vmatpush1.bf16.msra.mxu0 %v2644
    %2800 = vmatprep.subr.bf16.mxu0 %v2657
    %2801 = vmatpush1.bf16.msra.mxu0 %v2656
    %2802 = vmatprep.mubr.bf16.mxu0 %v2086
    %2803 = vmatmul.mubr.bf16.gmra.mrb[0].mxu0 %v98
    %v2804 = vpop.f32.mrb[0].mxu0
    %v2805 = vadd.f32 0.0, %v2804
    %v2806 = vpop.f32.mrb[0].mxu0
    %v2807 = vadd.f32 0.0, %v2806
    %v2808 = vpop.f32.mrb[0].mxu0
    %v2809 = vadd.f32 0.0, %v2808
    %v2810 = vpop.f32.mrb[0].mxu0
    %v2811 = vadd.f32 0.0, %v2810
    %2812 = vmatprep.mubr.bf16.mxu0 %v2087
    %2813 = vmatmul.mubr.bf16.gmra.mrb[0].mxu0 %v99
    %v2814 = vpop.f32.mrb[0].mxu0
    %v2815 = vadd.f32 0.0, %v2814
    %v2816 = vpop.f32.mrb[0].mxu0
    %v2817 = vadd.f32 0.0, %v2816
    %v2818 = vpop.f32.mrb[0].mxu0
    %v2819 = vadd.f32 0.0, %v2818
    %v2820 = vpop.f32.mrb[0].mxu0
    %v2821 = vadd.f32 0.0, %v2820
    %2822 = vdwg.mxu0
    %2823 = vmatprep.subr.bf16.mxu0 %v2479
    %2824 = vmatpush1.bf16.msra.mxu0 %v2478
    %2825 = vmatprep.subr.bf16.mxu0 %v2491
    %2826 = vmatpush1.bf16.msra.mxu0 %v2490
    %2827 = vmatprep.subr.bf16.mxu0 %v2503
    %2828 = vmatpush1.bf16.msra.mxu0 %v2502
    %2829 = vmatprep.subr.bf16.mxu0 %v2515
    %2830 = vmatpush1.bf16.msra.mxu0 %v2514
    %2831 = vmatprep.subr.bf16.mxu0 %v2527
    %2832 = vmatpush1.bf16.msra.mxu0 %v2526
    %2833 = vmatprep.subr.bf16.mxu0 %v2539
    %2834 = vmatpush1.bf16.msra.mxu0 %v2538
    %2835 = vmatprep.subr.bf16.mxu0 %v2551
    %2836 = vmatpush1.bf16.msra.mxu0 %v2550
    %2837 = vmatprep.subr.bf16.mxu0 %v2563
    %2838 = vmatpush1.bf16.msra.mxu0 %v2562
    %2839 = vmatprep.subr.bf16.mxu0 %v2575
    %2840 = vmatpush1.bf16.msra.mxu0 %v2574
    %2841 = vmatprep.subr.bf16.mxu0 %v2587
    %2842 = vmatpush1.bf16.msra.mxu0 %v2586
    %2843 = vmatprep.subr.bf16.mxu0 %v2599
    %2844 = vmatpush1.bf16.msra.mxu0 %v2598
    %2845 = vmatprep.subr.bf16.mxu0 %v2611
    %2846 = vmatpush1.bf16.msra.mxu0 %v2610
    %2847 = vmatprep.subr.bf16.mxu0 %v2623
    %2848 = vmatpush1.bf16.msra.mxu0 %v2622
    %2849 = vmatprep.subr.bf16.mxu0 %v2635
    %2850 = vmatpush1.bf16.msra.mxu0 %v2634
    %2851 = vmatprep.subr.bf16.mxu0 %v2647
    %2852 = vmatpush1.bf16.msra.mxu0 %v2646
    %2853 = vmatprep.subr.bf16.mxu0 %v2659
    %2854 = vmatpush1.bf16.msra.mxu0 %v2658
    %2855 = vmatprep.mubr.bf16.mxu0 %v2086
    %2856 = vmatmul.mubr.bf16.gmra.mrb[0].mxu0 %v98
    %v2857 = vpop.f32.mrb[0].mxu0
    %v2858 = vadd.f32 0.0, %v2857
    %v2859 = vpop.f32.mrb[0].mxu0
    %v2860 = vadd.f32 0.0, %v2859
    %v2861 = vpop.f32.mrb[0].mxu0
    %v2862 = vadd.f32 0.0, %v2861
    %v2863 = vpop.f32.mrb[0].mxu0
    %v2864 = vadd.f32 0.0, %v2863
    %2865 = vmatprep.mubr.bf16.mxu0 %v2087
    %2866 = vmatmul.mubr.bf16.gmra.mrb[0].mxu0 %v99
    %v2867 = vpop.f32.mrb[0].mxu0
    %v2868 = vadd.f32 0.0, %v2867
    %v2869 = vpop.f32.mrb[0].mxu0
    %v2870 = vadd.f32 0.0, %v2869
    %v2871 = vpop.f32.mrb[0].mxu0
    %v2872 = vadd.f32 0.0, %v2871
    %v2873 = vpop.f32.mrb[0].mxu0
    %v2874 = vadd.f32 0.0, %v2873
    %2875 = vdwg.mxu0
    %2876 = vmatprep.subr.bf16.mxu0 %v2481
    %2877 = vmatpush1.bf16.msra.mxu0 %v2480
    %2878 = vmatprep.subr.bf16.mxu0 %v2493
    %2879 = vmatpush1.bf16.msra.mxu0 %v2492
    %2880 = vmatprep.subr.bf16.mxu0 %v2505
    %2881 = vmatpush1.bf16.msra.mxu0 %v2504
    %2882 = vmatprep.subr.bf16.mxu0 %v2517
    %2883 = vmatpush1.bf16.msra.mxu0 %v2516
    %2884 = vmatprep.subr.bf16.mxu0 %v2529
    %2885 = vmatpush1.bf16.msra.mxu0 %v2528
    %2886 = vmatprep.subr.bf16.mxu0 %v2541
    %2887 = vmatpush1.bf16.msra.mxu0 %v2540
    %2888 = vmatprep.subr.bf16.mxu0 %v2553
    %2889 = vmatpush1.bf16.msra.mxu0 %v2552
    %2890 = vmatprep.subr.bf16.mxu0 %v2565
    %2891 = vmatpush1.bf16.msra.mxu0 %v2564
    %2892 = vmatprep.subr.bf16.mxu0 %v2577
    %2893 = vmatpush1.bf16.msra.mxu0 %v2576
    %2894 = vmatprep.subr.bf16.mxu0 %v2589
    %2895 = vmatpush1.bf16.msra.mxu0 %v2588
    %2896 = vmatprep.subr.bf16.mxu0 %v2601
    %2897 = vmatpush1.bf16.msra.mxu0 %v2600
    %2898 = vmatprep.subr.bf16.mxu0 %v2613
    %2899 = vmatpush1.bf16.msra.mxu0 %v2612
    %2900 = vmatprep.subr.bf16.mxu0 %v2625
    %2901 = vmatpush1.bf16.msra.mxu0 %v2624
    %2902 = vmatprep.subr.bf16.mxu0 %v2637
    %2903 = vmatpush1.bf16.msra.mxu0 %v2636
    %2904 = vmatprep.subr.bf16.mxu0 %v2649
    %2905 = vmatpush1.bf16.msra.mxu0 %v2648
    %2906 = vmatprep.subr.bf16.mxu0 %v2661
    %2907 = vmatpush1.bf16.msra.mxu0 %v2660
    %2908 = vmatprep.mubr.bf16.mxu0 %v2086
    %2909 = vmatmul.mubr.bf16.gmra.mrb[0].mxu0 %v98
    %v2910 = vpop.f32.mrb[0].mxu0
    %v2911 = vadd.f32 0.0, %v2910
    %v2912 = vpop.f32.mrb[0].mxu0
    %v2913 = vadd.f32 0.0, %v2912
    %v2914 = vpop.f32.mrb[0].mxu0
    %v2915 = vadd.f32 0.0, %v2914
    %v2916 = vpop.f32.mrb[0].mxu0
    %v2917 = vadd.f32 0.0, %v2916
    %2918 = vmatprep.mubr.bf16.mxu0 %v2087
    %2919 = vmatmul.mubr.bf16.gmra.mrb[0].mxu0 %v99
    %v2920 = vpop.f32.mrb[0].mxu0
    %v2921 = vadd.f32 0.0, %v2920
    %v2922 = vpop.f32.mrb[0].mxu0
    %v2923 = vadd.f32 0.0, %v2922
    %v2924 = vpop.f32.mrb[0].mxu0
    %v2925 = vadd.f32 0.0, %v2924
    %v2926 = vpop.f32.mrb[0].mxu0
    %v2927 = vadd.f32 0.0, %v2926
    %2928 = vdwg.mxu0
    %2929 = vmatprep.subr.bf16.mxu0 %v2483
    %2930 = vmatpush1.bf16.msra.mxu0 %v2482
    %2931 = vmatprep.subr.bf16.mxu0 %v2495
    %2932 = vmatpush1.bf16.msra.mxu0 %v2494
    %2933 = vmatprep.subr.bf16.mxu0 %v2507
    %2934 = vmatpush1.bf16.msra.mxu0 %v2506
    %2935 = vmatprep.subr.bf16.mxu0 %v2519
    %2936 = vmatpush1.bf16.msra.mxu0 %v2518
    %2937 = vmatprep.subr.bf16.mxu0 %v2531
    %2938 = vmatpush1.bf16.msra.mxu0 %v2530
    %2939 = vmatprep.subr.bf16.mxu0 %v2543
    %2940 = vmatpush1.bf16.msra.mxu0 %v2542
    %2941 = vmatprep.subr.bf16.mxu0 %v2555
    %2942 = vmatpush1.bf16.msra.mxu0 %v2554
    %2943 = vmatprep.subr.bf16.mxu0 %v2567
    %2944 = vmatpush1.bf16.msra.mxu0 %v2566
    %2945 = vmatprep.subr.bf16.mxu0 %v2579
    %2946 = vmatpush1.bf16.msra.mxu0 %v2578
    %2947 = vmatprep.subr.bf16.mxu0 %v2591
    %2948 = vmatpush1.bf16.msra.mxu0 %v2590
    %2949 = vmatprep.subr.bf16.mxu0 %v2603
    %2950 = vmatpush1.bf16.msra.mxu0 %v2602
    %2951 = vmatprep.subr.bf16.mxu0 %v2615
    %2952 = vmatpush1.bf16.msra.mxu0 %v2614
    %2953 = vmatprep.subr.bf16.mxu0 %v2627
    %2954 = vmatpush1.bf16.msra.mxu0 %v2626
    %2955 = vmatprep.subr.bf16.mxu0 %v2639
    %2956 = vmatpush1.bf16.msra.mxu0 %v2638
    %2957 = vmatprep.subr.bf16.mxu0 %v2651
    %2958 = vmatpush1.bf16.msra.mxu0 %v2650
    %2959 = vmatprep.subr.bf16.mxu0 %v2663
    %2960 = vmatpush1.bf16.msra.mxu0 %v2662
    %2961 = vmatprep.mubr.bf16.mxu0 %v2086
    %2962 = vmatmul.mubr.bf16.gmra.mrb[0].mxu0 %v98
    %v2963 = vpop.f32.mrb[0].mxu0
    %v2964 = vadd.f32 0.0, %v2963
    %v2965 = vpop.f32.mrb[0].mxu0
    %v2966 = vadd.f32 0.0, %v2965
    %v2967 = vpop.f32.mrb[0].mxu0
    %v2968 = vadd.f32 0.0, %v2967
    %v2969 = vpop.f32.mrb[0].mxu0
    %v2970 = vadd.f32 0.0, %v2969
    %2971 = vmatprep.mubr.bf16.mxu0 %v2087
    %2972 = vmatmul.mubr.bf16.gmra.mrb[0].mxu0 %v99
    %v2973 = vpop.f32.mrb[0].mxu0
    %v2974 = vadd.f32 0.0, %v2973
    %v2975 = vpop.f32.mrb[0].mxu0
    %v2976 = vadd.f32 0.0, %v2975
    %v2977 = vpop.f32.mrb[0].mxu0
    %v2978 = vadd.f32 0.0, %v2977
    %v2979 = vpop.f32.mrb[0].mxu0
    %v2980 = vadd.f32 0.0, %v2979
    %2981 = vdwg.mxu0
    %v2982 = vpack.c.bf16 %v2703, %v2699
    %v2983 = vpack.c.bf16 %v2705, %v2701
    %v2984 = vpack.c.bf16 %v2713, %v2709
    %v2985 = vpack.c.bf16 %v2715, %v2711
    %v2986 = vpack.c.bf16 %v2756, %v2752
    %v2987 = vpack.c.bf16 %v2758, %v2754
    %v2988 = vpack.c.bf16 %v2766, %v2762
    %v2989 = vpack.c.bf16 %v2768, %v2764
    %v2990 = vpack.c.bf16 %v2809, %v2805
    %v2991 = vpack.c.bf16 %v2811, %v2807
    %v2992 = vpack.c.bf16 %v2819, %v2815
    %v2993 = vpack.c.bf16 %v2821, %v2817
    %v2994 = vmul.f32 %v412, %v2858
    %v2995 = vmul.f32 %v412, %v2860
    %v2996 = vmul.f32 %v417, %v2862
    %v2997 = vmul.f32 %v417, %v2864
    %v2998 = vmul.f32 %v422, %v2868
    %v2999 = vmul.f32 %v422, %v2870
    %v3000 = vmul.f32 %v427, %v2872
    %v3001 = vmul.f32 %v427, %v2874
    %3002 = vmatprep.subr.bf16.mxu0 %v2983
    %3003 = vmatpush1.bf16.msra.mxu0 %v2982
    %3004 = vmatprep.subr.bf16.mxu0 %v2985
    %3005 = vmatpush1.bf16.msra.mxu0 %v2984
    %3006 = vmatprep.subr.bf16.mxu0 %v2987
    %3007 = vmatpush1.bf16.msra.mxu0 %v2986
    %3008 = vmatprep.subr.bf16.mxu0 %v2989
    %3009 = vmatpush1.bf16.msra.mxu0 %v2988
    %3010 = vmatprep.subr.bf16.mxu0 %v2991
    %3011 = vmatpush1.bf16.msra.mxu0 %v2990
    %3012 = vmatprep.subr.bf16.mxu0 %v2993
    %3013 = vmatpush1.bf16.msra.mxu0 %v2992
    %3014 = vmatprep.subr.bf16.mxu0 0
    %3015 = vmatpush1.bf16.msra.mxu0 0
    %3016 = vmatprep.subr.bf16.mxu0 0
    %3017 = vmatpush1.bf16.msra.mxu0 0
    %3018 = vmatprep.subr.bf16.mxu0 0
    %3019 = vmatpush1.bf16.msra.mxu0 0
    %3020 = vmatprep.subr.bf16.mxu0 0
    %3021 = vmatpush1.bf16.msra.mxu0 0
    %3022 = vmatprep.subr.bf16.mxu0 0
    %3023 = vmatpush1.bf16.msra.mxu0 0
    %3024 = vmatprep.subr.bf16.mxu0 0
    %3025 = vmatpush1.bf16.msra.mxu0 0
    %3026 = vmatprep.subr.bf16.mxu0 0
    %3027 = vmatpush1.bf16.msra.mxu0 0
    %3028 = vmatprep.subr.bf16.mxu0 0
    %3029 = vmatpush1.bf16.msra.mxu0 0
    %3030 = vmatprep.subr.bf16.mxu0 0
    %3031 = vmatpush1.bf16.msra.mxu0 0
    %3032 = vmatprep.subr.bf16.mxu0 0
    %3033 = vmatpush1.bf16.msra.mxu0 0
    %3034 = vmatprep.mubr.bf16.mxu0 0
    %3035 = vmatmul.mubr.bf16.gmra.mrb[0].mxu0 %v435
    %v3036 = vpop.f32.mrb[0].mxu0
    %v3037 = vadd.f32 %v2994, %v3036
    %v3038 = vpop.f32.mrb[0].mxu0
    %v3039 = vadd.f32 %v2995, %v3038
    %v3040 = vpop.f32.mrb[0].mxu0
    %v3041 = vadd.f32 %v2996, %v3040
    %v3042 = vpop.f32.mrb[0].mxu0
    %v3043 = vadd.f32 %v2997, %v3042
    %3044 = vmatprep.mubr.bf16.mxu0 0
    %3045 = vmatmul.mubr.bf16.gmra.mrb[0].mxu0 %v438
    %v3046 = vpop.f32.mrb[0].mxu0
    %v3047 = vadd.f32 %v2998, %v3046
    %v3048 = vpop.f32.mrb[0].mxu0
    %v3049 = vadd.f32 %v2999, %v3048
    %v3050 = vpop.f32.mrb[0].mxu0
    %v3051 = vadd.f32 %v3000, %v3050
    %v3052 = vpop.f32.mrb[0].mxu0
    %v3053 = vadd.f32 %v3001, %v3052
    %3054 = vdwg.mxu0
    %v3055 = vmul.f32 %v492, %v2911
    %v3056 = vmul.f32 %v492, %v2913
    %v3057 = vmul.f32 %v497, %v2915
    %v3058 = vmul.f32 %v497, %v2917
    %v3059 = vmul.f32 %v502, %v2921
    %v3060 = vmul.f32 %v502, %v2923
    %v3061 = vmul.f32 %v507, %v2925
    %v3062 = vmul.f32 %v507, %v2927
    %v3063 = vadd.f32 %v3037, %v3055
    %v3064 = vadd.f32 %v3039, %v3056
    %v3065 = vadd.f32 %v3041, %v3057
    %v3066 = vadd.f32 %v3043, %v3058
    %v3067 = vadd.f32 %v3047, %v3059
    %v3068 = vadd.f32 %v3049, %v3060
    %v3069 = vadd.f32 %v3051, %v3061
    %v3070 = vadd.f32 %v3053, %v3062
    %v3071 = vmul.f32 %v520, %v2964
    %v3072 = vmul.f32 %v520, %v2966
    %v3073 = vmul.f32 %v525, %v2968
    %v3074 = vmul.f32 %v525, %v2970
    %v3075 = vmul.f32 %v530, %v2974
    %v3076 = vmul.f32 %v530, %v2976
    %v3077 = vmul.f32 %v535, %v2978
    %v3078 = vmul.f32 %v535, %v2980
    %v3079 = vadd.f32 %v3063, %v3071
    %v3080 = vadd.f32 %v3064, %v3072
    %v3081 = vadd.f32 %v3065, %v3073
    %v3082 = vadd.f32 %v3066, %v3074
    %v3083 = vadd.f32 %v3067, %v3075
    %v3084 = vadd.f32 %v3068, %v3076
    %v3085 = vadd.f32 %v3069, %v3077
    %v3086 = vadd.f32 %v3070, %v3078
    %v3087 = vmul.f32 %v3079, 0.5
    %v3088 = vmul.f32 %v3080, 0.5
    %v3089 = vmul.f32 %v3081, 0.5
    %v3090 = vmul.f32 %v3082, 0.5
    %v3091 = vmul.f32 %v3083, 0.5
    %v3092 = vmul.f32 %v3084, 0.5
    %v3093 = vmul.f32 %v3085, 0.5
    %v3094 = vmul.f32 %v3086, 0.5
    %v3095 = vmul.f32 %v3079, 0.70710677
    %v3096 = vmul.f32 %v3080, 0.70710677
    %v3097 = vmul.f32 %v3081, 0.70710677
    %v3098 = vmul.f32 %v3082, 0.70710677
    %v3099 = vmul.f32 %v3083, 0.70710677
    %v3100 = vmul.f32 %v3084, 0.70710677
    %v3101 = vmul.f32 %v3085, 0.70710677
    %v3102 = vmul.f32 %v3086, 0.70710677
    %vm3103 = vcmp.ge.f32.partialorder %v3095, 0.0
    %vm3104 = vcmp.ge.f32.partialorder %v3096, 0.0
    %vm3105 = vcmp.ge.f32.partialorder %v3097, 0.0
    %vm3106 = vcmp.ge.f32.partialorder %v3098, 0.0
    %vm3107 = vcmp.ge.f32.partialorder %v3099, 0.0
    %vm3108 = vcmp.ge.f32.partialorder %v3100, 0.0
    %vm3109 = vcmp.ge.f32.partialorder %v3101, 0.0
    %vm3110 = vcmp.ge.f32.partialorder %v3102, 0.0
    %v3111 = vsel %vm3103, 1.0, -1.0
    %v3112 = vsel %vm3104, 1.0, -1.0
    %v3113 = vsel %vm3105, 1.0, -1.0
    %v3114 = vsel %vm3106, 1.0, -1.0
    %v3115 = vsel %vm3107, 1.0, -1.0
    %v3116 = vsel %vm3108, 1.0, -1.0
    %v3117 = vsel %vm3109, 1.0, -1.0
    %v3118 = vsel %vm3110, 1.0, -1.0
    %v3119 = vand.u32 2147483647, %v3095
    %v3120 = vand.u32 2147483647, %v3096
    %v3121 = vand.u32 2147483647, %v3097
    %v3122 = vand.u32 2147483647, %v3098
    %v3123 = vand.u32 2147483647, %v3099
    %v3124 = vand.u32 2147483647, %v3100
    %v3125 = vand.u32 2147483647, %v3101
    %v3126 = vand.u32 2147483647, %v3102
    %v3127 = vmul.f32 %v3119, 0.3275911
    %v3128 = vmul.f32 %v3120, 0.3275911
    %v3129 = vmul.f32 %v3121, 0.3275911
    %v3130 = vmul.f32 %v3122, 0.3275911
    %v3131 = vmul.f32 %v3123, 0.3275911
    %v3132 = vmul.f32 %v3124, 0.3275911
    %v3133 = vmul.f32 %v3125, 0.3275911
    %v3134 = vmul.f32 %v3126, 0.3275911
    %v3135 = vadd.f32 %v3127, 1.0
    %v3136 = vadd.f32 %v3128, 1.0
    %v3137 = vadd.f32 %v3129, 1.0
    %v3138 = vadd.f32 %v3130, 1.0
    %v3139 = vadd.f32 %v3131, 1.0
    %v3140 = vadd.f32 %v3132, 1.0
    %v3141 = vadd.f32 %v3133, 1.0
    %v3142 = vadd.f32 %v3134, 1.0
    %v3143 = vrcp.pop %v3135
    %v3144 = vmul.f32 1.0, %v3143
    %v3145 = vrcp.pop %v3136
    %v3146 = vmul.f32 1.0, %v3145
    %v3147 = vrcp.pop %v3137
    %v3148 = vmul.f32 1.0, %v3147
    %v3149 = vrcp.pop %v3138
    %v3150 = vmul.f32 1.0, %v3149
    %v3151 = vrcp.pop %v3139
    %v3152 = vmul.f32 1.0, %v3151
    %v3153 = vrcp.pop %v3140
    %v3154 = vmul.f32 1.0, %v3153
    %v3155 = vrcp.pop %v3141
    %v3156 = vmul.f32 1.0, %v3155
    %v3157 = vrcp.pop %v3142
    %v3158 = vmul.f32 1.0, %v3157
    %v3159 = vmul.f32 %v3144, 1.0614054
    %v3160 = vmul.f32 %v3146, 1.0614054
    %v3161 = vmul.f32 %v3148, 1.0614054
    %v3162 = vmul.f32 %v3150, 1.0614054
    %v3163 = vmul.f32 %v3152, 1.0614054
    %v3164 = vmul.f32 %v3154, 1.0614054
    %v3165 = vmul.f32 %v3156, 1.0614054
    %v3166 = vmul.f32 %v3158, 1.0614054
    %v3167 = vadd.f32 %v3159, -1.4531521
    %v3168 = vadd.f32 %v3160, -1.4531521
    %v3169 = vadd.f32 %v3161, -1.4531521
    %v3170 = vadd.f32 %v3162, -1.4531521
    %v3171 = vadd.f32 %v3163, -1.4531521
    %v3172 = vadd.f32 %v3164, -1.4531521
    %v3173 = vadd.f32 %v3165, -1.4531521
    %v3174 = vadd.f32 %v3166, -1.4531521
    %v3175 = vmul.f32 %v3167, %v3144
    %v3176 = vmul.f32 %v3168, %v3146
    %v3177 = vmul.f32 %v3169, %v3148
    %v3178 = vmul.f32 %v3170, %v3150
    %v3179 = vmul.f32 %v3171, %v3152
    %v3180 = vmul.f32 %v3172, %v3154
    %v3181 = vmul.f32 %v3173, %v3156
    %v3182 = vmul.f32 %v3174, %v3158
    %v3183 = vadd.f32 %v3175, 1.4214138
    %v3184 = vadd.f32 %v3176, 1.4214138
    %v3185 = vadd.f32 %v3177, 1.4214138
    %v3186 = vadd.f32 %v3178, 1.4214138
    %v3187 = vadd.f32 %v3179, 1.4214138
    %v3188 = vadd.f32 %v3180, 1.4214138
    %v3189 = vadd.f32 %v3181, 1.4214138
    %v3190 = vadd.f32 %v3182, 1.4214138
    %v3191 = vmul.f32 %v3183, %v3144
    %v3192 = vmul.f32 %v3184, %v3146
    %v3193 = vmul.f32 %v3185, %v3148
    %v3194 = vmul.f32 %v3186, %v3150
    %v3195 = vmul.f32 %v3187, %v3152
    %v3196 = vmul.f32 %v3188, %v3154
    %v3197 = vmul.f32 %v3189, %v3156
    %v3198 = vmul.f32 %v3190, %v3158
    %v3199 = vadd.f32 %v3191, -0.28449672
    %v3200 = vadd.f32 %v3192, -0.28449672
    %v3201 = vadd.f32 %v3193, -0.28449672
    %v3202 = vadd.f32 %v3194, -0.28449672
    %v3203 = vadd.f32 %v3195, -0.28449672
    %v3204 = vadd.f32 %v3196, -0.28449672
    %v3205 = vadd.f32 %v3197, -0.28449672
    %v3206 = vadd.f32 %v3198, -0.28449672
    %v3207 = vmul.f32 %v3199, %v3144
    %v3208 = vmul.f32 %v3200, %v3146
    %v3209 = vmul.f32 %v3201, %v3148
    %v3210 = vmul.f32 %v3202, %v3150
    %v3211 = vmul.f32 %v3203, %v3152
    %v3212 = vmul.f32 %v3204, %v3154
    %v3213 = vmul.f32 %v3205, %v3156
    %v3214 = vmul.f32 %v3206, %v3158
    %v3215 = vadd.f32 %v3207, 0.2548296
    %v3216 = vadd.f32 %v3208, 0.2548296
    %v3217 = vadd.f32 %v3209, 0.2548296
    %v3218 = vadd.f32 %v3210, 0.2548296
    %v3219 = vadd.f32 %v3211, 0.2548296
    %v3220 = vadd.f32 %v3212, 0.2548296
    %v3221 = vadd.f32 %v3213, 0.2548296
    %v3222 = vadd.f32 %v3214, 0.2548296
    %v3223 = vmul.f32 %v3215, %v3144
    %v3224 = vmul.f32 %v3216, %v3146
    %v3225 = vmul.f32 %v3217, %v3148
    %v3226 = vmul.f32 %v3218, %v3150
    %v3227 = vmul.f32 %v3219, %v3152
    %v3228 = vmul.f32 %v3220, %v3154
    %v3229 = vmul.f32 %v3221, %v3156
    %v3230 = vmul.f32 %v3222, %v3158
    %v3231 = vsub.f32 0.0, %v3119
    %v3232 = vsub.f32 0.0, %v3120
    %v3233 = vsub.f32 0.0, %v3121
    %v3234 = vsub.f32 0.0, %v3122
    %v3235 = vsub.f32 0.0, %v3123
    %v3236 = vsub.f32 0.0, %v3124
    %v3237 = vsub.f32 0.0, %v3125
    %v3238 = vsub.f32 0.0, %v3126
    %v3239 = vmul.f32 %v3231, %v3119
    %v3240 = vmul.f32 %v3232, %v3120
    %v3241 = vmul.f32 %v3233, %v3121
    %v3242 = vmul.f32 %v3234, %v3122
    %v3243 = vmul.f32 %v3235, %v3123
    %v3244 = vmul.f32 %v3236, %v3124
    %v3245 = vmul.f32 %v3237, %v3125
    %v3246 = vmul.f32 %v3238, %v3126
    %v3247 = vmul.f32 %v3239, 1.442695
    %v3248 = vpow.pop %v3247
    %v3249 = vmul.f32 %v3240, 1.442695
    %v3250 = vpow.pop %v3249
    %v3251 = vmul.f32 %v3241, 1.442695
    %v3252 = vpow.pop %v3251
    %v3253 = vmul.f32 %v3242, 1.442695
    %v3254 = vpow.pop %v3253
    %v3255 = vmul.f32 %v3243, 1.442695
    %v3256 = vpow.pop %v3255
    %v3257 = vmul.f32 %v3244, 1.442695
    %v3258 = vpow.pop %v3257
    %v3259 = vmul.f32 %v3245, 1.442695
    %v3260 = vpow.pop %v3259
    %v3261 = vmul.f32 %v3246, 1.442695
    %v3262 = vpow.pop %v3261
    %v3263 = vmul.f32 %v3223, %v3248
    %v3264 = vmul.f32 %v3224, %v3250
    %v3265 = vmul.f32 %v3225, %v3252
    %v3266 = vmul.f32 %v3226, %v3254
    %v3267 = vmul.f32 %v3227, %v3256
    %v3268 = vmul.f32 %v3228, %v3258
    %v3269 = vmul.f32 %v3229, %v3260
    %v3270 = vmul.f32 %v3230, %v3262
    %v3271 = vsub.f32 1.0, %v3263
    %v3272 = vsub.f32 1.0, %v3264
    %v3273 = vsub.f32 1.0, %v3265
    %v3274 = vsub.f32 1.0, %v3266
    %v3275 = vsub.f32 1.0, %v3267
    %v3276 = vsub.f32 1.0, %v3268
    %v3277 = vsub.f32 1.0, %v3269
    %v3278 = vsub.f32 1.0, %v3270
    %v3279 = vmul.f32 %v3111, %v3271
    %v3280 = vmul.f32 %v3112, %v3272
    %v3281 = vmul.f32 %v3113, %v3273
    %v3282 = vmul.f32 %v3114, %v3274
    %v3283 = vmul.f32 %v3115, %v3275
    %v3284 = vmul.f32 %v3116, %v3276
    %v3285 = vmul.f32 %v3117, %v3277
    %v3286 = vmul.f32 %v3118, %v3278
    %v3287 = vadd.f32 %v3279, 1.0
    %v3288 = vadd.f32 %v3280, 1.0
    %v3289 = vadd.f32 %v3281, 1.0
    %v3290 = vadd.f32 %v3282, 1.0
    %v3291 = vadd.f32 %v3283, 1.0
    %v3292 = vadd.f32 %v3284, 1.0
    %v3293 = vadd.f32 %v3285, 1.0
    %v3294 = vadd.f32 %v3286, 1.0
    %v3295 = vmul.f32 %v3087, %v3287
    %v3296 = vmul.f32 %v3088, %v3288
    %v3297 = vmul.f32 %v3089, %v3289
    %v3298 = vmul.f32 %v3090, %v3290
    %v3299 = vmul.f32 %v3091, %v3291
    %v3300 = vmul.f32 %v3092, %v3292
    %v3301 = vmul.f32 %v3093, %v3293
    %v3302 = vmul.f32 %v3094, %v3294
    %v3303 = vadd.f32 %v3295, %v3296
    %3304 = vadd.xlane.f32.xlu0 %v3303
    %v3305 = vpop.xlane.xlu0 %3304
    %v3306 = vadd.f32 %v3297, %v3298
    %3307 = vadd.xlane.f32.xlu0 %v3306
    %v3308 = vpop.xlane.xlu0 %3307
    %v3309 = vadd.f32 %v3299, %v3300
    %3310 = vadd.xlane.f32.xlu0 %v3309
    %v3311 = vpop.xlane.xlu0 %3310
    %v3312 = vadd.f32 %v3301, %v3302
    %3313 = vadd.xlane.f32.xlu0 %v3312
    %v3314 = vpop.xlane.xlu0 %3313
    %v3315 = vrcp.pop 256.0
    %v3316 = vmul.f32 %v3305, %v3315
    %v3317 = vmul.f32 %v3308, %v3315
    %v3318 = vmul.f32 %v3311, %v3315
    %v3319 = vmul.f32 %v3314, %v3315
    %v3320 = vsub.f32 %v3295, %v3316
    %v3321 = vsub.f32 %v3296, %v3316
    %v3322 = vsub.f32 %v3297, %v3317
    %v3323 = vsub.f32 %v3298, %v3317
    %v3324 = vsub.f32 %v3299, %v3318
    %v3325 = vsub.f32 %v3300, %v3318
    %v3326 = vsub.f32 %v3301, %v3319
    %v3327 = vsub.f32 %v3302, %v3319
    %v3328 = vmul.f32 %v3320, %v3320
    %v3329 = vmul.f32 %v3321, %v3321
    %v3330 = vmul.f32 %v3322, %v3322
    %v3331 = vmul.f32 %v3323, %v3323
    %v3332 = vmul.f32 %v3324, %v3324
    %v3333 = vmul.f32 %v3325, %v3325
    %v3334 = vmul.f32 %v3326, %v3326
    %v3335 = vmul.f32 %v3327, %v3327
    %v3336 = vadd.f32 %v3328, %v3329
    %3337 = vadd.xlane.f32.xlu0 %v3336
    %v3338 = vpop.xlane.xlu0 %3337
    %v3339 = vadd.f32 %v3330, %v3331
    %3340 = vadd.xlane.f32.xlu0 %v3339
    %v3341 = vpop.xlane.xlu0 %3340
    %v3342 = vadd.f32 %v3332, %v3333
    %3343 = vadd.xlane.f32.xlu0 %v3342
    %v3344 = vpop.xlane.xlu0 %3343
    %v3345 = vadd.f32 %v3334, %v3335
    %3346 = vadd.xlane.f32.xlu0 %v3345
    %v3347 = vpop.xlane.xlu0 %3346
    %v3348 = vmul.f32 %v3338, %v3315
    %v3349 = vmul.f32 %v3341, %v3315
    %v3350 = vmul.f32 %v3344, %v3315
    %v3351 = vmul.f32 %v3347, %v3315
    %v3352 = vadd.f32 %v3348, 1e-05
    %v3353 = vadd.f32 %v3349, 1e-05
    %v3354 = vadd.f32 %v3350, 1e-05
    %v3355 = vadd.f32 %v3351, 1e-05
    %v3356 = vrsqrt.pop %v3352
    %v3357 = vrsqrt.pop %v3353
    %v3358 = vrsqrt.pop %v3354
    %v3359 = vrsqrt.pop %v3355
    %v3360 = vmul.f32 %v3320, %v3356
    %v3361 = vmul.f32 %v3321, %v3356
    %v3362 = vmul.f32 %v3322, %v3357
    %v3363 = vmul.f32 %v3323, %v3357
    %v3364 = vmul.f32 %v3324, %v3358
    %v3365 = vmul.f32 %v3325, %v3358
    %v3366 = vmul.f32 %v3326, %v3359
    %v3367 = vmul.f32 %v3327, %v3359
    %v3368 = vld [vmem:[%s19] sm:$0x3]
    %v3370 = vlaneseq
    %v3371 = vshrl.u32 %v3370, 7
    %v3372 = vsub.s32 0, %v3371
    %v3373 = vrot.slane %v3368, %v3372
    %v3374 = vlaneseq
    %v3375 = vshrl.u32 %v3374, 7
    %v3376 = vsub.s32 1, %v3375
    %v3377 = vrot.slane %v3368, %v3376
    %v3380 = vmul.f32 %v3360, %v3373
    %v3381 = vmul.f32 %v3361, %v3377
    %v3382 = vmul.f32 %v3362, %v3373
    %v3383 = vmul.f32 %v3363, %v3377
    %v3384 = vmul.f32 %v3364, %v3373
    %v3385 = vmul.f32 %v3365, %v3377
    %v3386 = vmul.f32 %v3366, %v3373
    %v3387 = vmul.f32 %v3367, %v3377
    %v3388 = vld [vmem:[%s20] sm:$0x3]
    %v3390 = vlaneseq
    %v3391 = vshrl.u32 %v3390, 7
    %v3392 = vsub.s32 0, %v3391
    %v3393 = vrot.slane %v3388, %v3392
    %v3394 = vlaneseq
    %v3395 = vshrl.u32 %v3394, 7
    %v3396 = vsub.s32 1, %v3395
    %v3397 = vrot.slane %v3388, %v3396
    %v3400 = vadd.f32 %v3380, %v3393
    %v3401 = vadd.f32 %v3381, %v3397
    %v3402 = vadd.f32 %v3382, %v3393
    %v3403 = vadd.f32 %v3383, %v3397
    %v3404 = vadd.f32 %v3384, %v3393
    %v3405 = vadd.f32 %v3385, %v3397
    %v3406 = vadd.f32 %v3386, %v3393
    %v3407 = vadd.f32 %v3387, %v3397
    %v3408 = vpack.c.bf16 %v3402, %v3400
    %v3409 = vpack.c.bf16 %v3403, %v3401
    %v3410 = vpack.c.bf16 %v3406, %v3404
    %v3411 = vpack.c.bf16 %v3407, %v3405
    %v3412 = vld [vmem:[%s21] sm:$0xff]
    %v3413 = vld [vmem:[%s21 + $0x8] sm:$0xff]
    %v3414 = vld [vmem:[%s21 + $0x10] sm:$0xff]
    %v3415 = vld [vmem:[%s21 + $0x18] sm:$0xff]
    %v3416 = vld [vmem:[%s21 + $0x20] sm:$0xff]
    %v3417 = vld [vmem:[%s21 + $0x28] sm:$0xff]
    %v3418 = vld [vmem:[%s21 + $0x30] sm:$0xff]
    %v3419 = vld [vmem:[%s21 + $0x38] sm:$0xff]
    %v3420 = vld [vmem:[%s21 + $0x40] sm:$0xff]
    %v3421 = vld [vmem:[%s21 + $0x48] sm:$0xff]
    %v3422 = vld [vmem:[%s21 + $0x50] sm:$0xff]
    %v3423 = vld [vmem:[%s21 + $0x58] sm:$0xff]
    %v3424 = vld [vmem:[%s21 + $0x60] sm:$0xff]
    %v3425 = vld [vmem:[%s21 + $0x68] sm:$0xff]
    %v3426 = vld [vmem:[%s21 + $0x70] sm:$0xff]
    %v3427 = vld [vmem:[%s21 + $0x78] sm:$0xff]
    %v3428 = vld [vmem:[%s21 + $0x80] sm:$0xff]
    %v3429 = vld [vmem:[%s21 + $0x88] sm:$0xff]
    %v3430 = vld [vmem:[%s21 + $0x90] sm:$0xff]
    %v3431 = vld [vmem:[%s21 + $0x98] sm:$0xff]
    %v3432 = vld [vmem:[%s21 + $0xa0] sm:$0xff]
    %v3433 = vld [vmem:[%s21 + $0xa8] sm:$0xff]
    %v3434 = vld [vmem:[%s21 + $0xb0] sm:$0xff]
    %v3435 = vld [vmem:[%s21 + $0xb8] sm:$0xff]
    %v3436 = vld [vmem:[%s21 + $0xc0] sm:$0xff]
    %v3437 = vld [vmem:[%s21 + $0xc8] sm:$0xff]
    %v3438 = vld [vmem:[%s21 + $0xd0] sm:$0xff]
    %v3439 = vld [vmem:[%s21 + $0xd8] sm:$0xff]
    %v3440 = vld [vmem:[%s21 + $0xe0] sm:$0xff]
    %v3441 = vld [vmem:[%s21 + $0xe8] sm:$0xff]
    %v3442 = vld [vmem:[%s21 + $0xf0] sm:$0xff]
    %v3443 = vld [vmem:[%s21 + $0xf8] sm:$0xff]
    %v3444 = vpack.c.bf16 %v3413, %v3412
    %v3445 = vpack.c.bf16 %v3415, %v3414
    %v3446 = vpack.c.bf16 %v3417, %v3416
    %v3447 = vpack.c.bf16 %v3419, %v3418
    %v3448 = vpack.c.bf16 %v3421, %v3420
    %v3449 = vpack.c.bf16 %v3423, %v3422
    %v3450 = vpack.c.bf16 %v3425, %v3424
    %v3451 = vpack.c.bf16 %v3427, %v3426
    %v3452 = vpack.c.bf16 %v3429, %v3428
    %v3453 = vpack.c.bf16 %v3431, %v3430
    %v3454 = vpack.c.bf16 %v3433, %v3432
    %v3455 = vpack.c.bf16 %v3435, %v3434
    %v3456 = vpack.c.bf16 %v3437, %v3436
    %v3457 = vpack.c.bf16 %v3439, %v3438
    %v3458 = vpack.c.bf16 %v3441, %v3440
    %v3459 = vpack.c.bf16 %v3443, %v3442
    %v3460 = vld [vmem:[%s22] sm:$0x1]
    %v3462 = vlaneseq
    %v3463 = vshrl.u32 %v3462, 7
    %v3464 = vsub.s32 0, %v3463
    %v3465 = vrot.slane %v3460, %v3464
    %3467 = vmatprep.subr.bf16.mxu0 0
    %3468 = vmatpush1.bf16.msra.mxu0 %v3444
    %3469 = vmatprep.subr.bf16.mxu0 0
    %3470 = vmatpush1.bf16.msra.mxu0 %v3445
    %3471 = vmatprep.subr.bf16.mxu0 0
    %3472 = vmatpush1.bf16.msra.mxu0 %v3446
    %3473 = vmatprep.subr.bf16.mxu0 0
    %3474 = vmatpush1.bf16.msra.mxu0 %v3447
    %3475 = vmatprep.subr.bf16.mxu0 0
    %3476 = vmatpush1.bf16.msra.mxu0 %v3448
    %3477 = vmatprep.subr.bf16.mxu0 0
    %3478 = vmatpush1.bf16.msra.mxu0 %v3449
    %3479 = vmatprep.subr.bf16.mxu0 0
    %3480 = vmatpush1.bf16.msra.mxu0 %v3450
    %3481 = vmatprep.subr.bf16.mxu0 0
    %3482 = vmatpush1.bf16.msra.mxu0 %v3451
    %3483 = vmatprep.subr.bf16.mxu0 0
    %3484 = vmatpush1.bf16.msra.mxu0 %v3452
    %3485 = vmatprep.subr.bf16.mxu0 0
    %3486 = vmatpush1.bf16.msra.mxu0 %v3453
    %3487 = vmatprep.subr.bf16.mxu0 0
    %3488 = vmatpush1.bf16.msra.mxu0 %v3454
    %3489 = vmatprep.subr.bf16.mxu0 0
    %3490 = vmatpush1.bf16.msra.mxu0 %v3455
    %3491 = vmatprep.subr.bf16.mxu0 0
    %3492 = vmatpush1.bf16.msra.mxu0 %v3456
    %3493 = vmatprep.subr.bf16.mxu0 0
    %3494 = vmatpush1.bf16.msra.mxu0 %v3457
    %3495 = vmatprep.subr.bf16.mxu0 0
    %3496 = vmatpush1.bf16.msra.mxu0 %v3458
    %3497 = vmatprep.subr.bf16.mxu0 0
    %3498 = vmatpush1.bf16.msra.mxu0 %v3459
    %3499 = vmatprep.mubr.bf16.mxu0 %v3409
    %3500 = vmatmul.mubr.bf16.gmra.mrb[0].mxu0 %v3408
    %v3501 = vpop.f32.mrb[0].mxu0
    %v3502 = vadd.f32 %v3465, %v3501
    %v3503 = vpop.f32.mrb[0].mxu0
    %v3504 = vpop.f32.mrb[0].mxu0
    %v3505 = vadd.f32 %v3465, %v3504
    %v3506 = vpop.f32.mrb[0].mxu0
    %3507 = vmatprep.mubr.bf16.mxu0 %v3411
    %3508 = vmatmul.mubr.bf16.gmra.mrb[0].mxu0 %v3410
    %v3509 = vpop.f32.mrb[0].mxu0
    %v3510 = vadd.f32 %v3465, %v3509
    %v3511 = vpop.f32.mrb[0].mxu0
    %v3512 = vpop.f32.mrb[0].mxu0
    %v3513 = vadd.f32 %v3465, %v3512
    %v3514 = vpop.f32.mrb[0].mxu0
    %3515 = vdwg.mxu0
    %v3516 = vtanh.pop %v3502
    %v3517 = vtanh.pop %v3505
    %v3518 = vtanh.pop %v3510
    %v3519 = vtanh.pop %v3513
    %3520 = vst [vmem:[#allocation2] sm:$0xff] %v3516
    %3521 = vst [vmem:[#allocation2 + $0x8] sm:$0xff] %v3517
    %3522 = vst [vmem:[#allocation2 + $0x10] sm:$0xff] %v3518
    %3523 = vst [vmem:[#allocation2 + $0x18] sm:$0xff] %v3519
    // Predicated region
    $region94: #{concat_layer_forward.1} parent=1 // pred_check
      _
    $region95: #{concat_layer_forward.1} parent=1 // pred_check_branch
      %3525 = sbr.rel (0) target = $region97
    $region96: #{concat_layer_forward.1} parent=1 // pred_region
      %s3527 = ssub.s32 512, 512
      %3528 = vsyncadd [#allocation3], %s3527
      %s3529 = sshll.u32 [#allocation2], 4
      %s3530 = int_to_ptr.vmem [resolvable:$true] %s3529
      %3535 = dma.vmem_to_hbm [thread:$0]  %s3530, 512, %s23, [#allocation3], 128, 128, 8
    $region97: #{concat_layer_forward.1} parent=1 // pred_fallthru
      _
    // Predicated region
    $region98: #{concat_layer_forward.1} parent=1 // pred_check
      _
    $region99: #{concat_layer_forward.1} parent=1 // pred_check_branch
      %3537 = sbr.rel (0) target = $region101
    $region100: #{concat_layer_forward.1} parent=1 // pred_region
      %3538 = dma.done [#allocation3], 512
    $region101: #{concat_layer_forward.1} parent=1 // pred_fallthru
      _
    %3539 = vsyncpa [#allocation3], 1

</llo_original>
